<compile_context>
chip_gen: v6e
topology: v6e:2x2x1
jax: 0.10.0
libtpu: 0.0.40
codegen_flags: <defaults>
</compile_context>

<pallas_src>
import functools

import numpy as np

import jax
import jax.numpy as jnp
from jax.experimental import pallas as pl
from jax.experimental.pallas import tpu as pltpu

NEG_SLOPE = 0.2
_SUB = 8  # channel padding unit (f32 sublane tile)


def _leaky_relu(v):
    return jnp.where(v >= 0, v, NEG_SLOPE * v)


def _round_up(v, m):
    return -(-v // m) * m


def _preact_block_kernel(x_ref, masks_ref, dmask_ref, w1_ref, w2_ref, out_ref,
                         ext1_ref, ext2_ref, slab1_ref, slab2_ref,
                         *, Dt, H, W, halo, mxu_dtype):
    """One (batch, depth-slab) grid step.

    x_ref     : [Cin_p , L_in ] f32, L_in = (Dt+4)*H*W (2 halo planes per side)
    masks_ref : [9, 1, L_mid]   per-(dy,dx) validity over output lanes
    dmask_ref : [1, L_mid]      1.0 where the conv1-output plane is a real plane
    w1_ref    : [Cmid_p, 27*Cin_p ] folded conv1 weights (tap-major, channel-minor)
    w2_ref    : [Cout_p, 27*Cmid_p] folded conv2 weights
    out_ref   : [Cout_p, L_out] with L_out = Dt*H*W
    ext*_ref  : lane-haloed activation scratch; slab*_ref: im2col scratch.
    """
    HW = H * W
    L_in = (Dt + 4) * HW
    L_mid = (Dt + 2) * HW
    L_out = Dt * HW
    f32 = jnp.float32

    def im2col_conv(act, ext_ref, slab_ref, w_ref, L_src, L_dst):
        # act: [C, L_src] already activated / boundary-masked.  Fold all 27 taps
        # into the contraction dim: slab[k*C:(k+1)*C, :] = shifted+masked act,
        # then a single MXU matmul with K = 27*C.
        C = act.shape[0]
        # Zero only the halo lanes; the interior is fully overwritten next line.
        ext_ref[:, :halo] = jnp.zeros((C, halo), f32)
        ext_ref[:, halo + L_src:] = jnp.zeros((C, halo), f32)
        ext_ref[:, halo:halo + L_src] = act
        k = 0
        for kd in range(3):
            for kh in range(3):
                for kw in range(3):
                    # Output lane l reads source lane l + HW + delta (outputs sit
                    # one depth plane inside the source slab).
                    delta = (kd - 1) * HW + (kh - 1) * W + (kw - 1)
                    start = halo + HW + delta
                    src = ext_ref[:, start:start + L_dst]           # [C, L_dst]
                    m = masks_ref[kh * 3 + kw, :, :L_dst]           # [1, L_dst]
                    slab_ref[k * C:(k + 1) * C, :] = src * m
                    k += 1
        # Single MXU matmul per conv, bf16 operands, f32 accumulation.
        return jnp.dot(w_ref[...], slab_ref[...].astype(mxu_dtype),
                       preferred_element_type=f32)

    x = x_ref[...]                                                   # [Cin_p, L_in]
    o1 = im2col_conv(_leaky_relu(x), ext1_ref, slab1_ref, w1_ref, L_in, L_mid)
    # conv2's input must be zero outside the real depth range (conv zero padding);
    # dmask also kills the padded depth planes introduced by slab tiling.
    a2 = _leaky_relu(o1) * dmask_ref[...]
    o2 = im2col_conv(a2, ext2_ref, slab2_ref, w2_ref, L_mid, L_out)
    out_ref[...] = (o2 + x[:, 2 * HW:2 * HW + L_out]).astype(out_ref.dtype)


def preact_block(x, conv1_weight, conv2_weight, *, stride=1, slab_depth=None,
                 mxu_dtype=jnp.bfloat16):
    """x: [B, Cin, D, H, W]; weights: [Cout, Cin, 3, 3, 3] (PyTorch OIDHW)."""
    B, Cin, D, H, W = x.shape
    Cmid = conv1_weight.shape[0]
    Cout = conv2_weight.shape[0]
    assert conv1_weight.shape == (Cmid, Cin, 3, 3, 3)
    assert conv2_weight.shape == (Cout, Cmid, 3, 3, 3)
    # TODO(synk): stride > 1 for conv1 is not implemented; the reference module
    # has no shortcut conv, so its residual add would shape-mismatch anyway.
    assert stride == 1
    assert Cout == Cin, "residual add requires matching channel counts"

    HW = H * W
    f32 = jnp.float32
    orig_dtype = x.dtype

    Cin_p = _round_up(max(Cin, 1), _SUB)
    Cmid_p = _round_up(max(Cmid, 1), _SUB)
    Cout_p = Cin_p

    # Depth-slab tiling: each grid step handles Dt output planes (+2 halo planes
    # per side so conv1 is evaluated on a 1-plane halo for conv2).
    if slab_depth is None:
        slab_depth = max(1, -(-1024 // HW))        # target >= ~1024 output lanes
    Dt = int(min(slab_depth, D))
    nslabs = -(-D // Dt)
    Dp = nslabs * Dt

    L_in = (Dt + 4) * HW
    L_mid = (Dt + 2) * HW
    L_out = Dt * HW
    halo = _round_up(W + 2, 128)   # > W+1 lanes of slack/side, keeps writes aligned

    # ---- activations: pad channels + depth, flatten spatial, overlapping slabs.
    xp = jnp.pad(x.astype(f32),
                 ((0, 0), (0, Cin_p - Cin), (2, (Dp - D) + 2), (0, 0), (0, 0)))
    xp = xp.reshape(B, Cin_p, Dp + 4, HW)
    plane_idx = np.arange(nslabs)[:, None] * Dt + np.arange(Dt + 4)[None, :]
    x_slabs = xp[:, :, plane_idx, :]                 # [B, Cin_p, nslabs, Dt+4, HW]
    x_slabs = jnp.transpose(x_slabs, (0, 2, 1, 3, 4)).reshape(B, nslabs, Cin_p, L_in)

    # ---- 9 (dy,dx) boundary masks over output lanes (depth handled by halo data).
    lane = np.arange(L_mid)
    hh = (lane // W) % H
    ww = lane % W
    masks = np.empty((9, 1, L_mid), np.float32)
    j = 0
    for dy in (-1, 0, 1):
        for dx in (-1, 0, 1):
            ok = (hh + dy >= 0) & (hh + dy < H) & (ww + dx >= 0) & (ww + dx < W)
            masks[j, 0, :] = ok.astype(np.float32)
            j += 1
    masks = jnp.asarray(masks)

    # ---- per-slab depth-validity mask for conv2's input (conv1-output planes).
    mid_plane = lane // HW                           # 0 .. Dt+1
    abs_plane = np.arange(nslabs)[:, None] * Dt - 1 + mid_plane[None, :]
    dmask = ((abs_plane >= 0) & (abs_plane < D)).astype(np.float32)[:, None, :]
    dmask = jnp.asarray(dmask)                       # [nslabs, 1, L_mid]

    # ---- fold weights for the im2col contraction: row index = tap*Cin_p + ci.
    def fold(w, cin, cin_p, cout, cout_p):
        wk = jnp.transpose(w.astype(f32), (0, 2, 3, 4, 1)).reshape(cout, 27, cin)
        wk = jnp.pad(wk, ((0, cout_p - cout), (0, 0), (0, cin_p - cin)))
        return wk.reshape(cout_p, 27 * cin_p).astype(mxu_dtype)

    w1_f = fold(conv1_weight, Cin, Cin_p, Cmid, Cmid_p)
    w2_f = fold(conv2_weight, Cmid, Cmid_p, Cout, Cout_p)

    # ---- VMEM budget (actual per-step footprint) + cost estimate.
    def nbytes(shape, dt):
        return int(np.prod(shape)) * jnp.dtype(dt).itemsize

    footprint = (2 * nbytes((Cin_p, L_in), f32)          # double-buffered input blk
                 + 2 * nbytes((Cout_p, L_out), f32)      # double-buffered output blk
                 + nbytes((9, 1, L_mid), f32) + 2 * nbytes((1, L_mid), f32)
                 + nbytes(w1_f.shape, mxu_dtype) + nbytes(w2_f.shape, mxu_dtype)
                 + nbytes((Cin_p, L_in + 2 * halo), f32)
                 + nbytes((Cmid_p, L_mid + 2 * halo), f32)
                 + nbytes((27 * Cin_p, L_mid), f32)
                 + nbytes((27 * Cmid_p, L_out), f32))
    vmem_limit = int(min(100 * 1024 * 1024, max(2 * footprint, 8 * 1024 * 1024)))

    flops = int(B * nslabs * (2 * Cmid_p * 27 * Cin_p * L_mid
                              + 2 * Cout_p * 27 * Cmid_p * L_out))
    bytes_accessed = int(x_slabs.size * 4 + B * nslabs * Cout_p * L_out * 4
                         + masks.size * 4 + dmask.size * 4
                         + w1_f.size * w1_f.dtype.itemsize
                         + w2_f.size * w2_f.dtype.itemsize)

    kernel = functools.partial(_preact_block_kernel, Dt=Dt, H=H, W=W, halo=halo,
                               mxu_dtype=mxu_dtype)

    out = pl.pallas_call(
        kernel,
        out_shape=jax.ShapeDtypeStruct((B, nslabs, Cout_p, L_out), f32),
        grid_spec=pltpu.PrefetchScalarGridSpec(
            num_scalar_prefetch=0,
            grid=(B, nslabs),
            in_specs=[
                pl.BlockSpec((None, None, Cin_p, L_in), lambda b, s: (b, s, 0, 0)),
                pl.BlockSpec((9, 1, L_mid), lambda b, s: (0, 0, 0)),       # resident
                pl.BlockSpec((None, 1, L_mid), lambda b, s: (s, 0, 0)),
                pl.BlockSpec((Cmid_p, 27 * Cin_p), lambda b, s: (0, 0)),   # resident
                pl.BlockSpec((Cout_p, 27 * Cmid_p), lambda b, s: (0, 0)),  # resident
            ],
            out_specs=pl.BlockSpec((None, None, Cout_p, L_out),
                                   lambda b, s: (b, s, 0, 0)),
            scratch_shapes=[
                pltpu.VMEM((Cin_p, L_in + 2 * halo), f32),      # ext1 (lane halo)
                pltpu.VMEM((Cmid_p, L_mid + 2 * halo), f32),    # ext2 (lane halo)
                pltpu.VMEM((27 * Cin_p, L_mid), f32),           # im2col slab, conv1
                pltpu.VMEM((27 * Cmid_p, L_out), f32),          # im2col slab, conv2
            ],
        ),
        compiler_params=pltpu.CompilerParams(
            dimension_semantics=("parallel", "parallel"),
            vmem_limit_bytes=vmem_limit),
        cost_estimate=pl.CostEstimate(flops=flops, transcendentals=0,
                                      bytes_accessed=bytes_accessed),
    )(x_slabs, masks, dmask, w1_f, w2_f)

    out = out[:, :, :Cout, :].reshape(B, nslabs, Cout, Dt, H, W)
    out = jnp.transpose(out, (0, 2, 1, 3, 4, 5)).reshape(B, Cout, Dp, H, W)
    return out[:, :, :D].astype(orig_dtype)


def ref_preact_block(x, w1, w2):
    """Pure-JAX reference (f32, highest precision)."""
    dn = jax.lax.conv_dimension_numbers(x.shape, w1.shape,
                                        ("NCDHW", "OIDHW", "NCDHW"))
    conv = functools.partial(
        jax.lax.conv_general_dilated,
        window_strides=(1, 1, 1),
        padding=((1, 1), (1, 1), (1, 1)),
        dimension_numbers=dn,
        precision=jax.lax.Precision.HIGHEST)
    a = _leaky_relu(x)
    o = conv(a, w1)
    o = conv(_leaky_relu(o), w2)
    return o + x


if __name__ == "__main__":
    key = jax.random.PRNGKey(0)
    k_x, k_w1, k_w2 = jax.random.split(key, 3)

    B, C, D, H, W = 2, 4, 8, 8, 8
    x = jax.random.normal(k_x, (B, C, D, H, W), dtype=jnp.float32)
    fan_in = C * 3 * 3 * 3
    w1 = jax.random.normal(k_w1, (C, C, 3, 3, 3), jnp.float32) / jnp.sqrt(fan_in)
    w2 = jax.random.normal(k_w2, (C, C, 3, 3, 3), jnp.float32) / jnp.sqrt(fan_in)

    ref = ref_preact_block(x, w1, w2)

    configs = [
        # whole-volume slab, bf16 MXU feed
        dict(slab_depth=None, mxu_dtype=jnp.bfloat16, atol=4e-2, rtol=4e-2),
        # 2 depth slabs per batch (exercises halo path + 2nd parallel grid axis)
        dict(slab_depth=4, mxu_dtype=jnp.bfloat16, atol=4e-2, rtol=4e-2),
        # uneven slabs (Dp > D) + f32 MXU feed: tight structural check
        dict(slab_depth=3, mxu_dtype=jnp.float32, atol=2e-3, rtol=2e-3),
    ]
    for cfg in configs:
        out = preact_block(x, w1, w2, slab_depth=cfg["slab_depth"],
                           mxu_dtype=cfg["mxu_dtype"])
        out = jax.block_until_ready(out)
        assert out.shape == (B, C, D, H, W)
        max_err = float(jnp.max(jnp.abs(out - ref)))
        assert jnp.allclose(out, ref, atol=cfg["atol"], rtol=cfg["rtol"]), \
            f"cfg={cfg} max_err={max_err}"

    print("KERNEL_OK")
</pallas_src>

<mosaic_0001>
module attributes {stable_mosaic.version = 11 : i64} {
  func.func @_preact_block_kernel(%arg0: i32, %arg1: i32, %arg2: memref<1x1x8x768xf32, #tpu.memory_space<vmem>>, %arg3: memref<9x1x640xf32, #tpu.memory_space<vmem>>, %arg4: memref<1x1x640xf32, #tpu.memory_space<vmem>>, %arg5: memref<8x216xbf16, #tpu.memory_space<vmem>>, %arg6: memref<8x216xbf16, #tpu.memory_space<vmem>>, %arg7: memref<1x1x8x512xf32, #tpu.memory_space<vmem>>, %arg8: memref<8x1024xf32, #tpu.memory_space<vmem>>, %arg9: memref<8x896xf32, #tpu.memory_space<vmem>>, %arg10: memref<216x640xf32, #tpu.memory_space<vmem>>, %arg11: memref<216x512xf32, #tpu.memory_space<vmem>>) attributes {dimension_semantics = [#tpu.dimension_semantics<parallel>, #tpu.dimension_semantics<parallel>], iteration_bounds = array<i64: 2, 1>, scalar_prefetch = 0 : i64, scratch_operands = 4 : i64, tpu.core_type = #tpu.core_type<tc>, window_params = [{transform_indices = @transform_0, window_bounds = array<i64: 1, 1, 8, 768>}, {pipeline_mode = #tpu.pipeline_mode<synchronous>, transform_indices = @transform_1, window_bounds = array<i64: 9, 1, 640>}, {transform_indices = @transform_2, window_bounds = array<i64: 1, 1, 640>}, {pipeline_mode = #tpu.pipeline_mode<synchronous>, transform_indices = @transform_3, window_bounds = array<i64: 8, 216>}, {pipeline_mode = #tpu.pipeline_mode<synchronous>, transform_indices = @transform_4, window_bounds = array<i64: 8, 216>}, {transform_indices = @transform_5, window_bounds = array<i64: 1, 1, 8, 512>}]} {
    %c0 = arith.constant 0 : index
    %c0_0 = arith.constant 0 : index
    %c0_1 = arith.constant 0 : index
    %c0_2 = arith.constant 0 : index
    %0 = vector.load %arg2[%c0, %c0_0, %c0_1, %c0_2] : memref<1x1x8x768xf32, #tpu.memory_space<vmem>>, vector<1x1x8x768xf32>
    %1 = vector.shape_cast %0 : vector<1x1x8x768xf32> to vector<8x768xf32>
    %cst = arith.constant 0.000000e+00 : f32
    %2 = vector.broadcast %cst : f32 to vector<8x768xf32>
    %3 = arith.cmpf oge, %1, %2 : vector<8x768xf32>
    %cst_3 = arith.constant 2.000000e-01 : f32
    %4 = vector.broadcast %cst_3 : f32 to vector<8x768xf32>
    %5 = arith.mulf %4, %1 : vector<8x768xf32>
    %6 = arith.select %3, %1, %5 : vector<8x768xi1>, vector<8x768xf32>
    %cst_4 = arith.constant 0.000000e+00 : f32
    %7 = vector.broadcast %cst_4 : f32 to vector<8x128xf32>
    %c0_5 = arith.constant 0 : index
    %c0_6 = arith.constant 0 : index
    %8 = vector.load %arg8[%c0_5, %c0_6] : memref<8x1024xf32, #tpu.memory_space<vmem>>, vector<8x128xf32>
    tpu.vector_store %arg8[%c0_5, %c0_6], %7 {strides = array<i32>} : memref<8x1024xf32, #tpu.memory_space<vmem>>, vector<8x128xf32>,
    %cst_7 = arith.constant 0.000000e+00 : f32
    %9 = vector.broadcast %cst_7 : f32 to vector<8x128xf32>
    %c0_8 = arith.constant 0 : index
    %c896 = arith.constant 896 : index
    %10 = vector.load %arg8[%c0_8, %c896] : memref<8x1024xf32, #tpu.memory_space<vmem>>, vector<8x128xf32>
    tpu.vector_store %arg8[%c0_8, %c896], %9 {strides = array<i32>} : memref<8x1024xf32, #tpu.memory_space<vmem>>, vector<8x128xf32>,
    %c0_9 = arith.constant 0 : index
    %c128 = arith.constant 128 : index
    %11 = vector.load %arg8[%c0_9, %c128] : memref<8x1024xf32, #tpu.memory_space<vmem>>, vector<8x768xf32>
    tpu.vector_store %arg8[%c0_9, %c128], %6 {strides = array<i32>} : memref<8x1024xf32, #tpu.memory_space<vmem>>, vector<8x768xf32>,
    %c0_10 = arith.constant 0 : index
    %c119 = arith.constant 119 : index
    %12 = vector.load %arg8[%c0_10, %c119] : memref<8x1024xf32, #tpu.memory_space<vmem>>, vector<8x640xf32>
    %c0_11 = arith.constant 0 : index
    %c0_12 = arith.constant 0 : index
    %c0_13 = arith.constant 0 : index
    %13 = vector.load %arg3[%c0_11, %c0_12, %c0_13] : memref<9x1x640xf32, #tpu.memory_space<vmem>>, vector<1x1x640xf32>
    %14 = vector.shape_cast %13 : vector<1x1x640xf32> to vector<1x640xf32>
    %15 = vector.broadcast %14 : vector<1x640xf32> to vector<8x640xf32>
    %16 = arith.mulf %12, %15 : vector<8x640xf32>
    %c0_14 = arith.constant 0 : index
    %c0_15 = arith.constant 0 : index
    %17 = vector.load %arg10[%c0_14, %c0_15] : memref<216x640xf32, #tpu.memory_space<vmem>>, vector<8x640xf32>
    tpu.vector_store %arg10[%c0_14, %c0_15], %16 {strides = array<i32>} : memref<216x640xf32, #tpu.memory_space<vmem>>, vector<8x640xf32>,
    %c0_16 = arith.constant 0 : index
    %c120 = arith.constant 120 : index
    %18 = vector.load %arg8[%c0_16, %c120] : memref<8x1024xf32, #tpu.memory_space<vmem>>, vector<8x640xf32>
    %c1 = arith.constant 1 : index
    %c0_17 = arith.constant 0 : index
    %c0_18 = arith.constant 0 : index
    %19 = vector.load %arg3[%c1, %c0_17, %c0_18] : memref<9x1x640xf32, #tpu.memory_space<vmem>>, vector<1x1x640xf32>
    %20 = vector.shape_cast %19 : vector<1x1x640xf32> to vector<1x640xf32>
    %21 = vector.broadcast %20 : vector<1x640xf32> to vector<8x640xf32>
    %22 = arith.mulf %18, %21 : vector<8x640xf32>
    %c8 = arith.constant 8 : index
    %c0_19 = arith.constant 0 : index
    %23 = vector.load %arg10[%c8, %c0_19] : memref<216x640xf32, #tpu.memory_space<vmem>>, vector<8x640xf32>
    tpu.vector_store %arg10[%c8, %c0_19], %22 {strides = array<i32>} : memref<216x640xf32, #tpu.memory_space<vmem>>, vector<8x640xf32>,
    %c0_20 = arith.constant 0 : index
    %c121 = arith.constant 121 : index
    %24 = vector.load %arg8[%c0_20, %c121] : memref<8x1024xf32, #tpu.memory_space<vmem>>, vector<8x640xf32>
    %c2 = arith.constant 2 : index
    %c0_21 = arith.constant 0 : index
    %c0_22 = arith.constant 0 : index
    %25 = vector.load %arg3[%c2, %c0_21, %c0_22] : memref<9x1x640xf32, #tpu.memory_space<vmem>>, vector<1x1x640xf32>
    %26 = vector.shape_cast %25 : vector<1x1x640xf32> to vector<1x640xf32>
    %27 = vector.broadcast %26 : vector<1x640xf32> to vector<8x640xf32>
    %28 = arith.mulf %24, %27 : vector<8x640xf32>
    %c16 = arith.constant 16 : index
    %c0_23 = arith.constant 0 : index
    %29 = vector.load %arg10[%c16, %c0_23] : memref<216x640xf32, #tpu.memory_space<vmem>>, vector<8x640xf32>
    tpu.vector_store %arg10[%c16, %c0_23], %28 {strides = array<i32>} : memref<216x640xf32, #tpu.memory_space<vmem>>, vector<8x640xf32>,
    %c0_24 = arith.constant 0 : index
    %c127 = arith.constant 127 : index
    %30 = vector.load %arg8[%c0_24, %c127] : memref<8x1024xf32, #tpu.memory_space<vmem>>, vector<8x640xf32>
    %c3 = arith.constant 3 : index
    %c0_25 = arith.constant 0 : index
    %c0_26 = arith.constant 0 : index
    %31 = vector.load %arg3[%c3, %c0_25, %c0_26] : memref<9x1x640xf32, #tpu.memory_space<vmem>>, vector<1x1x640xf32>
    %32 = vector.shape_cast %31 : vector<1x1x640xf32> to vector<1x640xf32>
    %33 = vector.broadcast %32 : vector<1x640xf32> to vector<8x640xf32>
    %34 = arith.mulf %30, %33 : vector<8x640xf32>
    %c24 = arith.constant 24 : index
    %c0_27 = arith.constant 0 : index
    %35 = vector.load %arg10[%c24, %c0_27] : memref<216x640xf32, #tpu.memory_space<vmem>>, vector<8x640xf32>
    tpu.vector_store %arg10[%c24, %c0_27], %34 {strides = array<i32>} : memref<216x640xf32, #tpu.memory_space<vmem>>, vector<8x640xf32>,
    %c0_28 = arith.constant 0 : index
    %c128_29 = arith.constant 128 : index
    %36 = vector.load %arg8[%c0_28, %c128_29] : memref<8x1024xf32, #tpu.memory_space<vmem>>, vector<8x640xf32>
    %c4 = arith.constant 4 : index
    %c0_30 = arith.constant 0 : index
    %c0_31 = arith.constant 0 : index
    %37 = vector.load %arg3[%c4, %c0_30, %c0_31] : memref<9x1x640xf32, #tpu.memory_space<vmem>>, vector<1x1x640xf32>
    %38 = vector.shape_cast %37 : vector<1x1x640xf32> to vector<1x640xf32>
    %39 = vector.broadcast %38 : vector<1x640xf32> to vector<8x640xf32>
    %40 = arith.mulf %36, %39 : vector<8x640xf32>
    %c32 = arith.constant 32 : index
    %c0_32 = arith.constant 0 : index
    %41 = vector.load %arg10[%c32, %c0_32] : memref<216x640xf32, #tpu.memory_space<vmem>>, vector<8x640xf32>
    tpu.vector_store %arg10[%c32, %c0_32], %40 {strides = array<i32>} : memref<216x640xf32, #tpu.memory_space<vmem>>, vector<8x640xf32>,
    %c0_33 = arith.constant 0 : index
    %c129 = arith.constant 129 : index
    %42 = vector.load %arg8[%c0_33, %c129] : memref<8x1024xf32, #tpu.memory_space<vmem>>, vector<8x640xf32>
    %c5 = arith.constant 5 : index
    %c0_34 = arith.constant 0 : index
    %c0_35 = arith.constant 0 : index
    %43 = vector.load %arg3[%c5, %c0_34, %c0_35] : memref<9x1x640xf32, #tpu.memory_space<vmem>>, vector<1x1x640xf32>
    %44 = vector.shape_cast %43 : vector<1x1x640xf32> to vector<1x640xf32>
    %45 = vector.broadcast %44 : vector<1x640xf32> to vector<8x640xf32>
    %46 = arith.mulf %42, %45 : vector<8x640xf32>
    %c40 = arith.constant 40 : index
    %c0_36 = arith.constant 0 : index
    %47 = vector.load %arg10[%c40, %c0_36] : memref<216x640xf32, #tpu.memory_space<vmem>>, vector<8x640xf32>
    tpu.vector_store %arg10[%c40, %c0_36], %46 {strides = array<i32>} : memref<216x640xf32, #tpu.memory_space<vmem>>, vector<8x640xf32>,
    %c0_37 = arith.constant 0 : index
    %c135 = arith.constant 135 : index
    %48 = vector.load %arg8[%c0_37, %c135] : memref<8x1024xf32, #tpu.memory_space<vmem>>, vector<8x640xf32>
    %c6 = arith.constant 6 : index
    %c0_38 = arith.constant 0 : index
    %c0_39 = arith.constant 0 : index
    %49 = vector.load %arg3[%c6, %c0_38, %c0_39] : memref<9x1x640xf32, #tpu.memory_space<vmem>>, vector<1x1x640xf32>
    %50 = vector.shape_cast %49 : vector<1x1x640xf32> to vector<1x640xf32>
    %51 = vector.broadcast %50 : vector<1x640xf32> to vector<8x640xf32>
    %52 = arith.mulf %48, %51 : vector<8x640xf32>
    %c48 = arith.constant 48 : index
    %c0_40 = arith.constant 0 : index
    %53 = vector.load %arg10[%c48, %c0_40] : memref<216x640xf32, #tpu.memory_space<vmem>>, vector<8x640xf32>
    tpu.vector_store %arg10[%c48, %c0_40], %52 {strides = array<i32>} : memref<216x640xf32, #tpu.memory_space<vmem>>, vector<8x640xf32>,
    %c0_41 = arith.constant 0 : index
    %c136 = arith.constant 136 : index
    %54 = vector.load %arg8[%c0_41, %c136] : memref<8x1024xf32, #tpu.memory_space<vmem>>, vector<8x640xf32>
    %c7 = arith.constant 7 : index
    %c0_42 = arith.constant 0 : index
    %c0_43 = arith.constant 0 : index
    %55 = vector.load %arg3[%c7, %c0_42, %c0_43] : memref<9x1x640xf32, #tpu.memory_space<vmem>>, vector<1x1x640xf32>
    %56 = vector.shape_cast %55 : vector<1x1x640xf32> to vector<1x640xf32>
    %57 = vector.broadcast %56 : vector<1x640xf32> to vector<8x640xf32>
    %58 = arith.mulf %54, %57 : vector<8x640xf32>
    %c56 = arith.constant 56 : index
    %c0_44 = arith.constant 0 : index
    %59 = vector.load %arg10[%c56, %c0_44] : memref<216x640xf32, #tpu.memory_space<vmem>>, vector<8x640xf32>
    tpu.vector_store %arg10[%c56, %c0_44], %58 {strides = array<i32>} : memref<216x640xf32, #tpu.memory_space<vmem>>, vector<8x640xf32>,
    %c0_45 = arith.constant 0 : index
    %c137 = arith.constant 137 : index
    %60 = vector.load %arg8[%c0_45, %c137] : memref<8x1024xf32, #tpu.memory_space<vmem>>, vector<8x640xf32>
    %c8_46 = arith.constant 8 : index
    %c0_47 = arith.constant 0 : index
    %c0_48 = arith.constant 0 : index
    %61 = vector.load %arg3[%c8_46, %c0_47, %c0_48] : memref<9x1x640xf32, #tpu.memory_space<vmem>>, vector<1x1x640xf32>
    %62 = vector.shape_cast %61 : vector<1x1x640xf32> to vector<1x640xf32>
    %63 = vector.broadcast %62 : vector<1x640xf32> to vector<8x640xf32>
    %64 = arith.mulf %60, %63 : vector<8x640xf32>
    %c64 = arith.constant 64 : index
    %c0_49 = arith.constant 0 : index
    %65 = vector.load %arg10[%c64, %c0_49] : memref<216x640xf32, #tpu.memory_space<vmem>>, vector<8x640xf32>
    tpu.vector_store %arg10[%c64, %c0_49], %64 {strides = array<i32>} : memref<216x640xf32, #tpu.memory_space<vmem>>, vector<8x640xf32>,
    %c0_50 = arith.constant 0 : index
    %c183 = arith.constant 183 : index
    %66 = vector.load %arg8[%c0_50, %c183] : memref<8x1024xf32, #tpu.memory_space<vmem>>, vector<8x640xf32>
    %c0_51 = arith.constant 0 : index
    %c0_52 = arith.constant 0 : index
    %c0_53 = arith.constant 0 : index
    %67 = vector.load %arg3[%c0_51, %c0_52, %c0_53] : memref<9x1x640xf32, #tpu.memory_space<vmem>>, vector<1x1x640xf32>
    %68 = vector.shape_cast %67 : vector<1x1x640xf32> to vector<1x640xf32>
    %69 = vector.broadcast %68 : vector<1x640xf32> to vector<8x640xf32>
    %70 = arith.mulf %66, %69 : vector<8x640xf32>
    %c72 = arith.constant 72 : index
    %c0_54 = arith.constant 0 : index
    %71 = vector.load %arg10[%c72, %c0_54] : memref<216x640xf32, #tpu.memory_space<vmem>>, vector<8x640xf32>
    tpu.vector_store %arg10[%c72, %c0_54], %70 {strides = array<i32>} : memref<216x640xf32, #tpu.memory_space<vmem>>, vector<8x640xf32>,
    %c0_55 = arith.constant 0 : index
    %c184 = arith.constant 184 : index
    %72 = vector.load %arg8[%c0_55, %c184] : memref<8x1024xf32, #tpu.memory_space<vmem>>, vector<8x640xf32>
    %c1_56 = arith.constant 1 : index
    %c0_57 = arith.constant 0 : index
    %c0_58 = arith.constant 0 : index
    %73 = vector.load %arg3[%c1_56, %c0_57, %c0_58] : memref<9x1x640xf32, #tpu.memory_space<vmem>>, vector<1x1x640xf32>
    %74 = vector.shape_cast %73 : vector<1x1x640xf32> to vector<1x640xf32>
    %75 = vector.broadcast %74 : vector<1x640xf32> to vector<8x640xf32>
    %76 = arith.mulf %72, %75 : vector<8x640xf32>
    %c80 = arith.constant 80 : index
    %c0_59 = arith.constant 0 : index
    %77 = vector.load %arg10[%c80, %c0_59] : memref<216x640xf32, #tpu.memory_space<vmem>>, vector<8x640xf32>
    tpu.vector_store %arg10[%c80, %c0_59], %76 {strides = array<i32>} : memref<216x640xf32, #tpu.memory_space<vmem>>, vector<8x640xf32>,
    %c0_60 = arith.constant 0 : index
    %c185 = arith.constant 185 : index
    %78 = vector.load %arg8[%c0_60, %c185] : memref<8x1024xf32, #tpu.memory_space<vmem>>, vector<8x640xf32>
    %c2_61 = arith.constant 2 : index
    %c0_62 = arith.constant 0 : index
    %c0_63 = arith.constant 0 : index
    %79 = vector.load %arg3[%c2_61, %c0_62, %c0_63] : memref<9x1x640xf32, #tpu.memory_space<vmem>>, vector<1x1x640xf32>
    %80 = vector.shape_cast %79 : vector<1x1x640xf32> to vector<1x640xf32>
    %81 = vector.broadcast %80 : vector<1x640xf32> to vector<8x640xf32>
    %82 = arith.mulf %78, %81 : vector<8x640xf32>
    %c88 = arith.constant 88 : index
    %c0_64 = arith.constant 0 : index
    %83 = vector.load %arg10[%c88, %c0_64] : memref<216x640xf32, #tpu.memory_space<vmem>>, vector<8x640xf32>
    tpu.vector_store %arg10[%c88, %c0_64], %82 {strides = array<i32>} : memref<216x640xf32, #tpu.memory_space<vmem>>, vector<8x640xf32>,
    %c0_65 = arith.constant 0 : index
    %c191 = arith.constant 191 : index
    %84 = vector.load %arg8[%c0_65, %c191] : memref<8x1024xf32, #tpu.memory_space<vmem>>, vector<8x640xf32>
    %c3_66 = arith.constant 3 : index
    %c0_67 = arith.constant 0 : index
    %c0_68 = arith.constant 0 : index
    %85 = vector.load %arg3[%c3_66, %c0_67, %c0_68] : memref<9x1x640xf32, #tpu.memory_space<vmem>>, vector<1x1x640xf32>
    %86 = vector.shape_cast %85 : vector<1x1x640xf32> to vector<1x640xf32>
    %87 = vector.broadcast %86 : vector<1x640xf32> to vector<8x640xf32>
    %88 = arith.mulf %84, %87 : vector<8x640xf32>
    %c96 = arith.constant 96 : index
    %c0_69 = arith.constant 0 : index
    %89 = vector.load %arg10[%c96, %c0_69] : memref<216x640xf32, #tpu.memory_space<vmem>>, vector<8x640xf32>
    tpu.vector_store %arg10[%c96, %c0_69], %88 {strides = array<i32>} : memref<216x640xf32, #tpu.memory_space<vmem>>, vector<8x640xf32>,
    %c0_70 = arith.constant 0 : index
    %c192 = arith.constant 192 : index
    %90 = vector.load %arg8[%c0_70, %c192] : memref<8x1024xf32, #tpu.memory_space<vmem>>, vector<8x640xf32>
    %c4_71 = arith.constant 4 : index
    %c0_72 = arith.constant 0 : index
    %c0_73 = arith.constant 0 : index
    %91 = vector.load %arg3[%c4_71, %c0_72, %c0_73] : memref<9x1x640xf32, #tpu.memory_space<vmem>>, vector<1x1x640xf32>
    %92 = vector.shape_cast %91 : vector<1x1x640xf32> to vector<1x640xf32>
    %93 = vector.broadcast %92 : vector<1x640xf32> to vector<8x640xf32>
    %94 = arith.mulf %90, %93 : vector<8x640xf32>
    %c104 = arith.constant 104 : index
    %c0_74 = arith.constant 0 : index
    %95 = vector.load %arg10[%c104, %c0_74] : memref<216x640xf32, #tpu.memory_space<vmem>>, vector<8x640xf32>
    tpu.vector_store %arg10[%c104, %c0_74], %94 {strides = array<i32>} : memref<216x640xf32, #tpu.memory_space<vmem>>, vector<8x640xf32>,
    %c0_75 = arith.constant 0 : index
    %c193 = arith.constant 193 : index
    %96 = vector.load %arg8[%c0_75, %c193] : memref<8x1024xf32, #tpu.memory_space<vmem>>, vector<8x640xf32>
    %c5_76 = arith.constant 5 : index
    %c0_77 = arith.constant 0 : index
    %c0_78 = arith.constant 0 : index
    %97 = vector.load %arg3[%c5_76, %c0_77, %c0_78] : memref<9x1x640xf32, #tpu.memory_space<vmem>>, vector<1x1x640xf32>
    %98 = vector.shape_cast %97 : vector<1x1x640xf32> to vector<1x640xf32>
    %99 = vector.broadcast %98 : vector<1x640xf32> to vector<8x640xf32>
    %100 = arith.mulf %96, %99 : vector<8x640xf32>
    %c112 = arith.constant 112 : index
    %c0_79 = arith.constant 0 : index
    %101 = vector.load %arg10[%c112, %c0_79] : memref<216x640xf32, #tpu.memory_space<vmem>>, vector<8x640xf32>
    tpu.vector_store %arg10[%c112, %c0_79], %100 {strides = array<i32>} : memref<216x640xf32, #tpu.memory_space<vmem>>, vector<8x640xf32>,
    %c0_80 = arith.constant 0 : index
    %c199 = arith.constant 199 : index
    %102 = vector.load %arg8[%c0_80, %c199] : memref<8x1024xf32, #tpu.memory_space<vmem>>, vector<8x640xf32>
    %c6_81 = arith.constant 6 : index
    %c0_82 = arith.constant 0 : index
    %c0_83 = arith.constant 0 : index
    %103 = vector.load %arg3[%c6_81, %c0_82, %c0_83] : memref<9x1x640xf32, #tpu.memory_space<vmem>>, vector<1x1x640xf32>
    %104 = vector.shape_cast %103 : vector<1x1x640xf32> to vector<1x640xf32>
    %105 = vector.broadcast %104 : vector<1x640xf32> to vector<8x640xf32>
    %106 = arith.mulf %102, %105 : vector<8x640xf32>
    %c120_84 = arith.constant 120 : index
    %c0_85 = arith.constant 0 : index
    %107 = vector.load %arg10[%c120_84, %c0_85] : memref<216x640xf32, #tpu.memory_space<vmem>>, vector<8x640xf32>
    tpu.vector_store %arg10[%c120_84, %c0_85], %106 {strides = array<i32>} : memref<216x640xf32, #tpu.memory_space<vmem>>, vector<8x640xf32>,
    %c0_86 = arith.constant 0 : index
    %c200 = arith.constant 200 : index
    %108 = vector.load %arg8[%c0_86, %c200] : memref<8x1024xf32, #tpu.memory_space<vmem>>, vector<8x640xf32>
    %c7_87 = arith.constant 7 : index
    %c0_88 = arith.constant 0 : index
    %c0_89 = arith.constant 0 : index
    %109 = vector.load %arg3[%c7_87, %c0_88, %c0_89] : memref<9x1x640xf32, #tpu.memory_space<vmem>>, vector<1x1x640xf32>
    %110 = vector.shape_cast %109 : vector<1x1x640xf32> to vector<1x640xf32>
    %111 = vector.broadcast %110 : vector<1x640xf32> to vector<8x640xf32>
    %112 = arith.mulf %108, %111 : vector<8x640xf32>
    %c128_90 = arith.constant 128 : index
    %c0_91 = arith.constant 0 : index
    %113 = vector.load %arg10[%c128_90, %c0_91] : memref<216x640xf32, #tpu.memory_space<vmem>>, vector<8x640xf32>
    tpu.vector_store %arg10[%c128_90, %c0_91], %112 {strides = array<i32>} : memref<216x640xf32, #tpu.memory_space<vmem>>, vector<8x640xf32>,
    %c0_92 = arith.constant 0 : index
    %c201 = arith.constant 201 : index
    %114 = vector.load %arg8[%c0_92, %c201] : memref<8x1024xf32, #tpu.memory_space<vmem>>, vector<8x640xf32>
    %c8_93 = arith.constant 8 : index
    %c0_94 = arith.constant 0 : index
    %c0_95 = arith.constant 0 : index
    %115 = vector.load %arg3[%c8_93, %c0_94, %c0_95] : memref<9x1x640xf32, #tpu.memory_space<vmem>>, vector<1x1x640xf32>
    %116 = vector.shape_cast %115 : vector<1x1x640xf32> to vector<1x640xf32>
    %117 = vector.broadcast %116 : vector<1x640xf32> to vector<8x640xf32>
    %118 = arith.mulf %114, %117 : vector<8x640xf32>
    %c136_96 = arith.constant 136 : index
    %c0_97 = arith.constant 0 : index
    %119 = vector.load %arg10[%c136_96, %c0_97] : memref<216x640xf32, #tpu.memory_space<vmem>>, vector<8x640xf32>
    tpu.vector_store %arg10[%c136_96, %c0_97], %118 {strides = array<i32>} : memref<216x640xf32, #tpu.memory_space<vmem>>, vector<8x640xf32>,
    %c0_98 = arith.constant 0 : index
    %c247 = arith.constant 247 : index
    %120 = vector.load %arg8[%c0_98, %c247] : memref<8x1024xf32, #tpu.memory_space<vmem>>, vector<8x640xf32>
    %c0_99 = arith.constant 0 : index
    %c0_100 = arith.constant 0 : index
    %c0_101 = arith.constant 0 : index
    %121 = vector.load %arg3[%c0_99, %c0_100, %c0_101] : memref<9x1x640xf32, #tpu.memory_space<vmem>>, vector<1x1x640xf32>
    %122 = vector.shape_cast %121 : vector<1x1x640xf32> to vector<1x640xf32>
    %123 = vector.broadcast %122 : vector<1x640xf32> to vector<8x640xf32>
    %124 = arith.mulf %120, %123 : vector<8x640xf32>
    %c144 = arith.constant 144 : index
    %c0_102 = arith.constant 0 : index
    %125 = vector.load %arg10[%c144, %c0_102] : memref<216x640xf32, #tpu.memory_space<vmem>>, vector<8x640xf32>
    tpu.vector_store %arg10[%c144, %c0_102], %124 {strides = array<i32>} : memref<216x640xf32, #tpu.memory_space<vmem>>, vector<8x640xf32>,
    %c0_103 = arith.constant 0 : index
    %c248 = arith.constant 248 : index
    %126 = vector.load %arg8[%c0_103, %c248] : memref<8x1024xf32, #tpu.memory_space<vmem>>, vector<8x640xf32>
    %c1_104 = arith.constant 1 : index
    %c0_105 = arith.constant 0 : index
    %c0_106 = arith.constant 0 : index
    %127 = vector.load %arg3[%c1_104, %c0_105, %c0_106] : memref<9x1x640xf32, #tpu.memory_space<vmem>>, vector<1x1x640xf32>
    %128 = vector.shape_cast %127 : vector<1x1x640xf32> to vector<1x640xf32>
    %129 = vector.broadcast %128 : vector<1x640xf32> to vector<8x640xf32>
    %130 = arith.mulf %126, %129 : vector<8x640xf32>
    %c152 = arith.constant 152 : index
    %c0_107 = arith.constant 0 : index
    %131 = vector.load %arg10[%c152, %c0_107] : memref<216x640xf32, #tpu.memory_space<vmem>>, vector<8x640xf32>
    tpu.vector_store %arg10[%c152, %c0_107], %130 {strides = array<i32>} : memref<216x640xf32, #tpu.memory_space<vmem>>, vector<8x640xf32>,
    %c0_108 = arith.constant 0 : index
    %c249 = arith.constant 249 : index
    %132 = vector.load %arg8[%c0_108, %c249] : memref<8x1024xf32, #tpu.memory_space<vmem>>, vector<8x640xf32>
    %c2_109 = arith.constant 2 : index
    %c0_110 = arith.constant 0 : index
    %c0_111 = arith.constant 0 : index
    %133 = vector.load %arg3[%c2_109, %c0_110, %c0_111] : memref<9x1x640xf32, #tpu.memory_space<vmem>>, vector<1x1x640xf32>
    %134 = vector.shape_cast %133 : vector<1x1x640xf32> to vector<1x640xf32>
    %135 = vector.broadcast %134 : vector<1x640xf32> to vector<8x640xf32>
    %136 = arith.mulf %132, %135 : vector<8x640xf32>
    %c160 = arith.constant 160 : index
    %c0_112 = arith.constant 0 : index
    %137 = vector.load %arg10[%c160, %c0_112] : memref<216x640xf32, #tpu.memory_space<vmem>>, vector<8x640xf32>
    tpu.vector_store %arg10[%c160, %c0_112], %136 {strides = array<i32>} : memref<216x640xf32, #tpu.memory_space<vmem>>, vector<8x640xf32>,
    %c0_113 = arith.constant 0 : index
    %c255 = arith.constant 255 : index
    %138 = vector.load %arg8[%c0_113, %c255] : memref<8x1024xf32, #tpu.memory_space<vmem>>, vector<8x640xf32>
    %c3_114 = arith.constant 3 : index
    %c0_115 = arith.constant 0 : index
    %c0_116 = arith.constant 0 : index
    %139 = vector.load %arg3[%c3_114, %c0_115, %c0_116] : memref<9x1x640xf32, #tpu.memory_space<vmem>>, vector<1x1x640xf32>
    %140 = vector.shape_cast %139 : vector<1x1x640xf32> to vector<1x640xf32>
    %141 = vector.broadcast %140 : vector<1x640xf32> to vector<8x640xf32>
    %142 = arith.mulf %138, %141 : vector<8x640xf32>
    %c168 = arith.constant 168 : index
    %c0_117 = arith.constant 0 : index
    %143 = vector.load %arg10[%c168, %c0_117] : memref<216x640xf32, #tpu.memory_space<vmem>>, vector<8x640xf32>
    tpu.vector_store %arg10[%c168, %c0_117], %142 {strides = array<i32>} : memref<216x640xf32, #tpu.memory_space<vmem>>, vector<8x640xf32>,
    %c0_118 = arith.constant 0 : index
    %c256 = arith.constant 256 : index
    %144 = vector.load %arg8[%c0_118, %c256] : memref<8x1024xf32, #tpu.memory_space<vmem>>, vector<8x640xf32>
    %c4_119 = arith.constant 4 : index
    %c0_120 = arith.constant 0 : index
    %c0_121 = arith.constant 0 : index
    %145 = vector.load %arg3[%c4_119, %c0_120, %c0_121] : memref<9x1x640xf32, #tpu.memory_space<vmem>>, vector<1x1x640xf32>
    %146 = vector.shape_cast %145 : vector<1x1x640xf32> to vector<1x640xf32>
    %147 = vector.broadcast %146 : vector<1x640xf32> to vector<8x640xf32>
    %148 = arith.mulf %144, %147 : vector<8x640xf32>
    %c176 = arith.constant 176 : index
    %c0_122 = arith.constant 0 : index
    %149 = vector.load %arg10[%c176, %c0_122] : memref<216x640xf32, #tpu.memory_space<vmem>>, vector<8x640xf32>
    tpu.vector_store %arg10[%c176, %c0_122], %148 {strides = array<i32>} : memref<216x640xf32, #tpu.memory_space<vmem>>, vector<8x640xf32>,
    %c0_123 = arith.constant 0 : index
    %c257 = arith.constant 257 : index
    %150 = vector.load %arg8[%c0_123, %c257] : memref<8x1024xf32, #tpu.memory_space<vmem>>, vector<8x640xf32>
    %c5_124 = arith.constant 5 : index
    %c0_125 = arith.constant 0 : index
    %c0_126 = arith.constant 0 : index
    %151 = vector.load %arg3[%c5_124, %c0_125, %c0_126] : memref<9x1x640xf32, #tpu.memory_space<vmem>>, vector<1x1x640xf32>
    %152 = vector.shape_cast %151 : vector<1x1x640xf32> to vector<1x640xf32>
    %153 = vector.broadcast %152 : vector<1x640xf32> to vector<8x640xf32>
    %154 = arith.mulf %150, %153 : vector<8x640xf32>
    %c184_127 = arith.constant 184 : index
    %c0_128 = arith.constant 0 : index
    %155 = vector.load %arg10[%c184_127, %c0_128] : memref<216x640xf32, #tpu.memory_space<vmem>>, vector<8x640xf32>
    tpu.vector_store %arg10[%c184_127, %c0_128], %154 {strides = array<i32>} : memref<216x640xf32, #tpu.memory_space<vmem>>, vector<8x640xf32>,
    %c0_129 = arith.constant 0 : index
    %c263 = arith.constant 263 : index
    %156 = vector.load %arg8[%c0_129, %c263] : memref<8x1024xf32, #tpu.memory_space<vmem>>, vector<8x640xf32>
    %c6_130 = arith.constant 6 : index
    %c0_131 = arith.constant 0 : index
    %c0_132 = arith.constant 0 : index
    %157 = vector.load %arg3[%c6_130, %c0_131, %c0_132] : memref<9x1x640xf32, #tpu.memory_space<vmem>>, vector<1x1x640xf32>
    %158 = vector.shape_cast %157 : vector<1x1x640xf32> to vector<1x640xf32>
    %159 = vector.broadcast %158 : vector<1x640xf32> to vector<8x640xf32>
    %160 = arith.mulf %156, %159 : vector<8x640xf32>
    %c192_133 = arith.constant 192 : index
    %c0_134 = arith.constant 0 : index
    %161 = vector.load %arg10[%c192_133, %c0_134] : memref<216x640xf32, #tpu.memory_space<vmem>>, vector<8x640xf32>
    tpu.vector_store %arg10[%c192_133, %c0_134], %160 {strides = array<i32>} : memref<216x640xf32, #tpu.memory_space<vmem>>, vector<8x640xf32>,
    %c0_135 = arith.constant 0 : index
    %c264 = arith.constant 264 : index
    %162 = vector.load %arg8[%c0_135, %c264] : memref<8x1024xf32, #tpu.memory_space<vmem>>, vector<8x640xf32>
    %c7_136 = arith.constant 7 : index
    %c0_137 = arith.constant 0 : index
    %c0_138 = arith.constant 0 : index
    %163 = vector.load %arg3[%c7_136, %c0_137, %c0_138] : memref<9x1x640xf32, #tpu.memory_space<vmem>>, vector<1x1x640xf32>
    %164 = vector.shape_cast %163 : vector<1x1x640xf32> to vector<1x640xf32>
    %165 = vector.broadcast %164 : vector<1x640xf32> to vector<8x640xf32>
    %166 = arith.mulf %162, %165 : vector<8x640xf32>
    %c200_139 = arith.constant 200 : index
    %c0_140 = arith.constant 0 : index
    %167 = vector.load %arg10[%c200_139, %c0_140] : memref<216x640xf32, #tpu.memory_space<vmem>>, vector<8x640xf32>
    tpu.vector_store %arg10[%c200_139, %c0_140], %166 {strides = array<i32>} : memref<216x640xf32, #tpu.memory_space<vmem>>, vector<8x640xf32>,
    %c0_141 = arith.constant 0 : index
    %c265 = arith.constant 265 : index
    %168 = vector.load %arg8[%c0_141, %c265] : memref<8x1024xf32, #tpu.memory_space<vmem>>, vector<8x640xf32>
    %c8_142 = arith.constant 8 : index
    %c0_143 = arith.constant 0 : index
    %c0_144 = arith.constant 0 : index
    %169 = vector.load %arg3[%c8_142, %c0_143, %c0_144] : memref<9x1x640xf32, #tpu.memory_space<vmem>>, vector<1x1x640xf32>
    %170 = vector.shape_cast %169 : vector<1x1x640xf32> to vector<1x640xf32>
    %171 = vector.broadcast %170 : vector<1x640xf32> to vector<8x640xf32>
    %172 = arith.mulf %168, %171 : vector<8x640xf32>
    %c208 = arith.constant 208 : index
    %c0_145 = arith.constant 0 : index
    %173 = vector.load %arg10[%c208, %c0_145] : memref<216x640xf32, #tpu.memory_space<vmem>>, vector<8x640xf32>
    tpu.vector_store %arg10[%c208, %c0_145], %172 {strides = array<i32>} : memref<216x640xf32, #tpu.memory_space<vmem>>, vector<8x640xf32>,
    %c0_146 = arith.constant 0 : index
    %c0_147 = arith.constant 0 : index
    %174 = vector.load %arg5[%c0_146, %c0_147] : memref<8x216xbf16, #tpu.memory_space<vmem>>, vector<8x216xbf16>
    %c0_148 = arith.constant 0 : index
    %c0_149 = arith.constant 0 : index
    %175 = vector.load %arg10[%c0_148, %c0_149] : memref<216x640xf32, #tpu.memory_space<vmem>>, vector<216x640xf32>
    %176 = arith.truncf %175 : vector<216x640xf32> to vector<216x640xbf16>
    %cst_150 = arith.constant dense<0.000000e+00> : vector<8x640xf32>
    %177 = tpu.matmul %174, %176, %cst_150 {dimension_numbers = #tpu.dot_dimension_numbers<[1], [0], [0], [1], [0, 0, 1, 1], [], []>} : vector<8x216xbf16>, vector<216x640xbf16>, vector<8x640xf32> -> vector<8x640xf32>
    %cst_151 = arith.constant 0.000000e+00 : f32
    %178 = vector.broadcast %cst_151 : f32 to vector<8x640xf32>
    %179 = arith.cmpf oge, %177, %178 : vector<8x640xf32>
    %cst_152 = arith.constant 2.000000e-01 : f32
    %180 = vector.broadcast %cst_152 : f32 to vector<8x640xf32>
    %181 = arith.mulf %180, %177 : vector<8x640xf32>
    %182 = arith.select %179, %177, %181 : vector<8x640xi1>, vector<8x640xf32>
    %c0_153 = arith.constant 0 : index
    %c0_154 = arith.constant 0 : index
    %c0_155 = arith.constant 0 : index
    %183 = vector.load %arg4[%c0_153, %c0_154, %c0_155] : memref<1x1x640xf32, #tpu.memory_space<vmem>>, vector<1x1x640xf32>
    %184 = vector.shape_cast %183 : vector<1x1x640xf32> to vector<1x640xf32>
    %185 = vector.broadcast %184 : vector<1x640xf32> to vector<8x640xf32>
    %186 = arith.mulf %182, %185 : vector<8x640xf32>
    %cst_156 = arith.constant 0.000000e+00 : f32
    %187 = vector.broadcast %cst_156 : f32 to vector<8x128xf32>
    %c0_157 = arith.constant 0 : index
    %c0_158 = arith.constant 0 : index
    %188 = vector.load %arg9[%c0_157, %c0_158] : memref<8x896xf32, #tpu.memory_space<vmem>>, vector<8x128xf32>
    tpu.vector_store %arg9[%c0_157, %c0_158], %187 {strides = array<i32>} : memref<8x896xf32, #tpu.memory_space<vmem>>, vector<8x128xf32>,
    %cst_159 = arith.constant 0.000000e+00 : f32
    %189 = vector.broadcast %cst_159 : f32 to vector<8x128xf32>
    %c0_160 = arith.constant 0 : index
    %c768 = arith.constant 768 : index
    %190 = vector.load %arg9[%c0_160, %c768] : memref<8x896xf32, #tpu.memory_space<vmem>>, vector<8x128xf32>
    tpu.vector_store %arg9[%c0_160, %c768], %189 {strides = array<i32>} : memref<8x896xf32, #tpu.memory_space<vmem>>, vector<8x128xf32>,
    %c0_161 = arith.constant 0 : index
    %c128_162 = arith.constant 128 : index
    %191 = vector.load %arg9[%c0_161, %c128_162] : memref<8x896xf32, #tpu.memory_space<vmem>>, vector<8x640xf32>
    tpu.vector_store %arg9[%c0_161, %c128_162], %186 {strides = array<i32>} : memref<8x896xf32, #tpu.memory_space<vmem>>, vector<8x640xf32>,
    %c0_163 = arith.constant 0 : index
    %c119_164 = arith.constant 119 : index
    %192 = vector.load %arg9[%c0_163, %c119_164] : memref<8x896xf32, #tpu.memory_space<vmem>>, vector<8x512xf32>
    %c0_165 = arith.constant 0 : index
    %c0_166 = arith.constant 0 : index
    %c0_167 = arith.constant 0 : index
    %193 = vector.load %arg3[%c0_165, %c0_166, %c0_167] : memref<9x1x640xf32, #tpu.memory_space<vmem>>, vector<1x1x512xf32>
    %194 = vector.shape_cast %193 : vector<1x1x512xf32> to vector<1x512xf32>
    %195 = vector.broadcast %194 : vector<1x512xf32> to vector<8x512xf32>
    %196 = arith.mulf %192, %195 : vector<8x512xf32>
    %c0_168 = arith.constant 0 : index
    %c0_169 = arith.constant 0 : index
    %197 = vector.load %arg11[%c0_168, %c0_169] : memref<216x512xf32, #tpu.memory_space<vmem>>, vector<8x512xf32>
    tpu.vector_store %arg11[%c0_168, %c0_169], %196 {strides = array<i32>} : memref<216x512xf32, #tpu.memory_space<vmem>>, vector<8x512xf32>,
    %c0_170 = arith.constant 0 : index
    %c120_171 = arith.constant 120 : index
    %198 = vector.load %arg9[%c0_170, %c120_171] : memref<8x896xf32, #tpu.memory_space<vmem>>, vector<8x512xf32>
    %c1_172 = arith.constant 1 : index
    %c0_173 = arith.constant 0 : index
    %c0_174 = arith.constant 0 : index
    %199 = vector.load %arg3[%c1_172, %c0_173, %c0_174] : memref<9x1x640xf32, #tpu.memory_space<vmem>>, vector<1x1x512xf32>
    %200 = vector.shape_cast %199 : vector<1x1x512xf32> to vector<1x512xf32>
    %201 = vector.broadcast %200 : vector<1x512xf32> to vector<8x512xf32>
    %202 = arith.mulf %198, %201 : vector<8x512xf32>
    %c8_175 = arith.constant 8 : index
    %c0_176 = arith.constant 0 : index
    %203 = vector.load %arg11[%c8_175, %c0_176] : memref<216x512xf32, #tpu.memory_space<vmem>>, vector<8x512xf32>
    tpu.vector_store %arg11[%c8_175, %c0_176], %202 {strides = array<i32>} : memref<216x512xf32, #tpu.memory_space<vmem>>, vector<8x512xf32>,
    %c0_177 = arith.constant 0 : index
    %c121_178 = arith.constant 121 : index
    %204 = vector.load %arg9[%c0_177, %c121_178] : memref<8x896xf32, #tpu.memory_space<vmem>>, vector<8x512xf32>
    %c2_179 = arith.constant 2 : index
    %c0_180 = arith.constant 0 : index
    %c0_181 = arith.constant 0 : index
    %205 = vector.load %arg3[%c2_179, %c0_180, %c0_181] : memref<9x1x640xf32, #tpu.memory_space<vmem>>, vector<1x1x512xf32>
    %206 = vector.shape_cast %205 : vector<1x1x512xf32> to vector<1x512xf32>
    %207 = vector.broadcast %206 : vector<1x512xf32> to vector<8x512xf32>
    %208 = arith.mulf %204, %207 : vector<8x512xf32>
    %c16_182 = arith.constant 16 : index
    %c0_183 = arith.constant 0 : index
    %209 = vector.load %arg11[%c16_182, %c0_183] : memref<216x512xf32, #tpu.memory_space<vmem>>, vector<8x512xf32>
    tpu.vector_store %arg11[%c16_182, %c0_183], %208 {strides = array<i32>} : memref<216x512xf32, #tpu.memory_space<vmem>>, vector<8x512xf32>,
    %c0_184 = arith.constant 0 : index
    %c127_185 = arith.constant 127 : index
    %210 = vector.load %arg9[%c0_184, %c127_185] : memref<8x896xf32, #tpu.memory_space<vmem>>, vector<8x512xf32>
    %c3_186 = arith.constant 3 : index
    %c0_187 = arith.constant 0 : index
    %c0_188 = arith.constant 0 : index
    %211 = vector.load %arg3[%c3_186, %c0_187, %c0_188] : memref<9x1x640xf32, #tpu.memory_space<vmem>>, vector<1x1x512xf32>
    %212 = vector.shape_cast %211 : vector<1x1x512xf32> to vector<1x512xf32>
    %213 = vector.broadcast %212 : vector<1x512xf32> to vector<8x512xf32>
    %214 = arith.mulf %210, %213 : vector<8x512xf32>
    %c24_189 = arith.constant 24 : index
    %c0_190 = arith.constant 0 : index
    %215 = vector.load %arg11[%c24_189, %c0_190] : memref<216x512xf32, #tpu.memory_space<vmem>>, vector<8x512xf32>
    tpu.vector_store %arg11[%c24_189, %c0_190], %214 {strides = array<i32>} : memref<216x512xf32, #tpu.memory_space<vmem>>, vector<8x512xf32>,
    %c0_191 = arith.constant 0 : index
    %c128_192 = arith.constant 128 : index
    %216 = vector.load %arg9[%c0_191, %c128_192] : memref<8x896xf32, #tpu.memory_space<vmem>>, vector<8x512xf32>
    %c4_193 = arith.constant 4 : index
    %c0_194 = arith.constant 0 : index
    %c0_195 = arith.constant 0 : index
    %217 = vector.load %arg3[%c4_193, %c0_194, %c0_195] : memref<9x1x640xf32, #tpu.memory_space<vmem>>, vector<1x1x512xf32>
    %218 = vector.shape_cast %217 : vector<1x1x512xf32> to vector<1x512xf32>
    %219 = vector.broadcast %218 : vector<1x512xf32> to vector<8x512xf32>
    %220 = arith.mulf %216, %219 : vector<8x512xf32>
    %c32_196 = arith.constant 32 : index
    %c0_197 = arith.constant 0 : index
    %221 = vector.load %arg11[%c32_196, %c0_197] : memref<216x512xf32, #tpu.memory_space<vmem>>, vector<8x512xf32>
    tpu.vector_store %arg11[%c32_196, %c0_197], %220 {strides = array<i32>} : memref<216x512xf32, #tpu.memory_space<vmem>>, vector<8x512xf32>,
    %c0_198 = arith.constant 0 : index
    %c129_199 = arith.constant 129 : index
    %222 = vector.load %arg9[%c0_198, %c129_199] : memref<8x896xf32, #tpu.memory_space<vmem>>, vector<8x512xf32>
    %c5_200 = arith.constant 5 : index
    %c0_201 = arith.constant 0 : index
    %c0_202 = arith.constant 0 : index
    %223 = vector.load %arg3[%c5_200, %c0_201, %c0_202] : memref<9x1x640xf32, #tpu.memory_space<vmem>>, vector<1x1x512xf32>
    %224 = vector.shape_cast %223 : vector<1x1x512xf32> to vector<1x512xf32>
    %225 = vector.broadcast %224 : vector<1x512xf32> to vector<8x512xf32>
    %226 = arith.mulf %222, %225 : vector<8x512xf32>
    %c40_203 = arith.constant 40 : index
    %c0_204 = arith.constant 0 : index
    %227 = vector.load %arg11[%c40_203, %c0_204] : memref<216x512xf32, #tpu.memory_space<vmem>>, vector<8x512xf32>
    tpu.vector_store %arg11[%c40_203, %c0_204], %226 {strides = array<i32>} : memref<216x512xf32, #tpu.memory_space<vmem>>, vector<8x512xf32>,
    %c0_205 = arith.constant 0 : index
    %c135_206 = arith.constant 135 : index
    %228 = vector.load %arg9[%c0_205, %c135_206] : memref<8x896xf32, #tpu.memory_space<vmem>>, vector<8x512xf32>
    %c6_207 = arith.constant 6 : index
    %c0_208 = arith.constant 0 : index
    %c0_209 = arith.constant 0 : index
    %229 = vector.load %arg3[%c6_207, %c0_208, %c0_209] : memref<9x1x640xf32, #tpu.memory_space<vmem>>, vector<1x1x512xf32>
    %230 = vector.shape_cast %229 : vector<1x1x512xf32> to vector<1x512xf32>
    %231 = vector.broadcast %230 : vector<1x512xf32> to vector<8x512xf32>
    %232 = arith.mulf %228, %231 : vector<8x512xf32>
    %c48_210 = arith.constant 48 : index
    %c0_211 = arith.constant 0 : index
    %233 = vector.load %arg11[%c48_210, %c0_211] : memref<216x512xf32, #tpu.memory_space<vmem>>, vector<8x512xf32>
    tpu.vector_store %arg11[%c48_210, %c0_211], %232 {strides = array<i32>} : memref<216x512xf32, #tpu.memory_space<vmem>>, vector<8x512xf32>,
    %c0_212 = arith.constant 0 : index
    %c136_213 = arith.constant 136 : index
    %234 = vector.load %arg9[%c0_212, %c136_213] : memref<8x896xf32, #tpu.memory_space<vmem>>, vector<8x512xf32>
    %c7_214 = arith.constant 7 : index
    %c0_215 = arith.constant 0 : index
    %c0_216 = arith.constant 0 : index
    %235 = vector.load %arg3[%c7_214, %c0_215, %c0_216] : memref<9x1x640xf32, #tpu.memory_space<vmem>>, vector<1x1x512xf32>
    %236 = vector.shape_cast %235 : vector<1x1x512xf32> to vector<1x512xf32>
    %237 = vector.broadcast %236 : vector<1x512xf32> to vector<8x512xf32>
    %238 = arith.mulf %234, %237 : vector<8x512xf32>
    %c56_217 = arith.constant 56 : index
    %c0_218 = arith.constant 0 : index
    %239 = vector.load %arg11[%c56_217, %c0_218] : memref<216x512xf32, #tpu.memory_space<vmem>>, vector<8x512xf32>
    tpu.vector_store %arg11[%c56_217, %c0_218], %238 {strides = array<i32>} : memref<216x512xf32, #tpu.memory_space<vmem>>, vector<8x512xf32>,
    %c0_219 = arith.constant 0 : index
    %c137_220 = arith.constant 137 : index
    %240 = vector.load %arg9[%c0_219, %c137_220] : memref<8x896xf32, #tpu.memory_space<vmem>>, vector<8x512xf32>
    %c8_221 = arith.constant 8 : index
    %c0_222 = arith.constant 0 : index
    %c0_223 = arith.constant 0 : index
    %241 = vector.load %arg3[%c8_221, %c0_222, %c0_223] : memref<9x1x640xf32, #tpu.memory_space<vmem>>, vector<1x1x512xf32>
    %242 = vector.shape_cast %241 : vector<1x1x512xf32> to vector<1x512xf32>
    %243 = vector.broadcast %242 : vector<1x512xf32> to vector<8x512xf32>
    %244 = arith.mulf %240, %243 : vector<8x512xf32>
    %c64_224 = arith.constant 64 : index
    %c0_225 = arith.constant 0 : index
    %245 = vector.load %arg11[%c64_224, %c0_225] : memref<216x512xf32, #tpu.memory_space<vmem>>, vector<8x512xf32>
    tpu.vector_store %arg11[%c64_224, %c0_225], %244 {strides = array<i32>} : memref<216x512xf32, #tpu.memory_space<vmem>>, vector<8x512xf32>,
    %c0_226 = arith.constant 0 : index
    %c183_227 = arith.constant 183 : index
    %246 = vector.load %arg9[%c0_226, %c183_227] : memref<8x896xf32, #tpu.memory_space<vmem>>, vector<8x512xf32>
    %c0_228 = arith.constant 0 : index
    %c0_229 = arith.constant 0 : index
    %c0_230 = arith.constant 0 : index
    %247 = vector.load %arg3[%c0_228, %c0_229, %c0_230] : memref<9x1x640xf32, #tpu.memory_space<vmem>>, vector<1x1x512xf32>
    %248 = vector.shape_cast %247 : vector<1x1x512xf32> to vector<1x512xf32>
    %249 = vector.broadcast %248 : vector<1x512xf32> to vector<8x512xf32>
    %250 = arith.mulf %246, %249 : vector<8x512xf32>
    %c72_231 = arith.constant 72 : index
    %c0_232 = arith.constant 0 : index
    %251 = vector.load %arg11[%c72_231, %c0_232] : memref<216x512xf32, #tpu.memory_space<vmem>>, vector<8x512xf32>
    tpu.vector_store %arg11[%c72_231, %c0_232], %250 {strides = array<i32>} : memref<216x512xf32, #tpu.memory_space<vmem>>, vector<8x512xf32>,
    %c0_233 = arith.constant 0 : index
    %c184_234 = arith.constant 184 : index
    %252 = vector.load %arg9[%c0_233, %c184_234] : memref<8x896xf32, #tpu.memory_space<vmem>>, vector<8x512xf32>
    %c1_235 = arith.constant 1 : index
    %c0_236 = arith.constant 0 : index
    %c0_237 = arith.constant 0 : index
    %253 = vector.load %arg3[%c1_235, %c0_236, %c0_237] : memref<9x1x640xf32, #tpu.memory_space<vmem>>, vector<1x1x512xf32>
    %254 = vector.shape_cast %253 : vector<1x1x512xf32> to vector<1x512xf32>
    %255 = vector.broadcast %254 : vector<1x512xf32> to vector<8x512xf32>
    %256 = arith.mulf %252, %255 : vector<8x512xf32>
    %c80_238 = arith.constant 80 : index
    %c0_239 = arith.constant 0 : index
    %257 = vector.load %arg11[%c80_238, %c0_239] : memref<216x512xf32, #tpu.memory_space<vmem>>, vector<8x512xf32>
    tpu.vector_store %arg11[%c80_238, %c0_239], %256 {strides = array<i32>} : memref<216x512xf32, #tpu.memory_space<vmem>>, vector<8x512xf32>,
    %c0_240 = arith.constant 0 : index
    %c185_241 = arith.constant 185 : index
    %258 = vector.load %arg9[%c0_240, %c185_241] : memref<8x896xf32, #tpu.memory_space<vmem>>, vector<8x512xf32>
    %c2_242 = arith.constant 2 : index
    %c0_243 = arith.constant 0 : index
    %c0_244 = arith.constant 0 : index
    %259 = vector.load %arg3[%c2_242, %c0_243, %c0_244] : memref<9x1x640xf32, #tpu.memory_space<vmem>>, vector<1x1x512xf32>
    %260 = vector.shape_cast %259 : vector<1x1x512xf32> to vector<1x512xf32>
    %261 = vector.broadcast %260 : vector<1x512xf32> to vector<8x512xf32>
    %262 = arith.mulf %258, %261 : vector<8x512xf32>
    %c88_245 = arith.constant 88 : index
    %c0_246 = arith.constant 0 : index
    %263 = vector.load %arg11[%c88_245, %c0_246] : memref<216x512xf32, #tpu.memory_space<vmem>>, vector<8x512xf32>
    tpu.vector_store %arg11[%c88_245, %c0_246], %262 {strides = array<i32>} : memref<216x512xf32, #tpu.memory_space<vmem>>, vector<8x512xf32>,
    %c0_247 = arith.constant 0 : index
    %c191_248 = arith.constant 191 : index
    %264 = vector.load %arg9[%c0_247, %c191_248] : memref<8x896xf32, #tpu.memory_space<vmem>>, vector<8x512xf32>
    %c3_249 = arith.constant 3 : index
    %c0_250 = arith.constant 0 : index
    %c0_251 = arith.constant 0 : index
    %265 = vector.load %arg3[%c3_249, %c0_250, %c0_251] : memref<9x1x640xf32, #tpu.memory_space<vmem>>, vector<1x1x512xf32>
    %266 = vector.shape_cast %265 : vector<1x1x512xf32> to vector<1x512xf32>
    %267 = vector.broadcast %266 : vector<1x512xf32> to vector<8x512xf32>
    %268 = arith.mulf %264, %267 : vector<8x512xf32>
    %c96_252 = arith.constant 96 : index
    %c0_253 = arith.constant 0 : index
    %269 = vector.load %arg11[%c96_252, %c0_253] : memref<216x512xf32, #tpu.memory_space<vmem>>, vector<8x512xf32>
    tpu.vector_store %arg11[%c96_252, %c0_253], %268 {strides = array<i32>} : memref<216x512xf32, #tpu.memory_space<vmem>>, vector<8x512xf32>,
    %c0_254 = arith.constant 0 : index
    %c192_255 = arith.constant 192 : index
    %270 = vector.load %arg9[%c0_254, %c192_255] : memref<8x896xf32, #tpu.memory_space<vmem>>, vector<8x512xf32>
    %c4_256 = arith.constant 4 : index
    %c0_257 = arith.constant 0 : index
    %c0_258 = arith.constant 0 : index
    %271 = vector.load %arg3[%c4_256, %c0_257, %c0_258] : memref<9x1x640xf32, #tpu.memory_space<vmem>>, vector<1x1x512xf32>
    %272 = vector.shape_cast %271 : vector<1x1x512xf32> to vector<1x512xf32>
    %273 = vector.broadcast %272 : vector<1x512xf32> to vector<8x512xf32>
    %274 = arith.mulf %270, %273 : vector<8x512xf32>
    %c104_259 = arith.constant 104 : index
    %c0_260 = arith.constant 0 : index
    %275 = vector.load %arg11[%c104_259, %c0_260] : memref<216x512xf32, #tpu.memory_space<vmem>>, vector<8x512xf32>
    tpu.vector_store %arg11[%c104_259, %c0_260], %274 {strides = array<i32>} : memref<216x512xf32, #tpu.memory_space<vmem>>, vector<8x512xf32>,
    %c0_261 = arith.constant 0 : index
    %c193_262 = arith.constant 193 : index
    %276 = vector.load %arg9[%c0_261, %c193_262] : memref<8x896xf32, #tpu.memory_space<vmem>>, vector<8x512xf32>
    %c5_263 = arith.constant 5 : index
    %c0_264 = arith.constant 0 : index
    %c0_265 = arith.constant 0 : index
    %277 = vector.load %arg3[%c5_263, %c0_264, %c0_265] : memref<9x1x640xf32, #tpu.memory_space<vmem>>, vector<1x1x512xf32>
    %278 = vector.shape_cast %277 : vector<1x1x512xf32> to vector<1x512xf32>
    %279 = vector.broadcast %278 : vector<1x512xf32> to vector<8x512xf32>
    %280 = arith.mulf %276, %279 : vector<8x512xf32>
    %c112_266 = arith.constant 112 : index
    %c0_267 = arith.constant 0 : index
    %281 = vector.load %arg11[%c112_266, %c0_267] : memref<216x512xf32, #tpu.memory_space<vmem>>, vector<8x512xf32>
    tpu.vector_store %arg11[%c112_266, %c0_267], %280 {strides = array<i32>} : memref<216x512xf32, #tpu.memory_space<vmem>>, vector<8x512xf32>,
    %c0_268 = arith.constant 0 : index
    %c199_269 = arith.constant 199 : index
    %282 = vector.load %arg9[%c0_268, %c199_269] : memref<8x896xf32, #tpu.memory_space<vmem>>, vector<8x512xf32>
    %c6_270 = arith.constant 6 : index
    %c0_271 = arith.constant 0 : index
    %c0_272 = arith.constant 0 : index
    %283 = vector.load %arg3[%c6_270, %c0_271, %c0_272] : memref<9x1x640xf32, #tpu.memory_space<vmem>>, vector<1x1x512xf32>
    %284 = vector.shape_cast %283 : vector<1x1x512xf32> to vector<1x512xf32>
    %285 = vector.broadcast %284 : vector<1x512xf32> to vector<8x512xf32>
    %286 = arith.mulf %282, %285 : vector<8x512xf32>
    %c120_273 = arith.constant 120 : index
    %c0_274 = arith.constant 0 : index
    %287 = vector.load %arg11[%c120_273, %c0_274] : memref<216x512xf32, #tpu.memory_space<vmem>>, vector<8x512xf32>
    tpu.vector_store %arg11[%c120_273, %c0_274], %286 {strides = array<i32>} : memref<216x512xf32, #tpu.memory_space<vmem>>, vector<8x512xf32>,
    %c0_275 = arith.constant 0 : index
    %c200_276 = arith.constant 200 : index
    %288 = vector.load %arg9[%c0_275, %c200_276] : memref<8x896xf32, #tpu.memory_space<vmem>>, vector<8x512xf32>
    %c7_277 = arith.constant 7 : index
    %c0_278 = arith.constant 0 : index
    %c0_279 = arith.constant 0 : index
    %289 = vector.load %arg3[%c7_277, %c0_278, %c0_279] : memref<9x1x640xf32, #tpu.memory_space<vmem>>, vector<1x1x512xf32>
    %290 = vector.shape_cast %289 : vector<1x1x512xf32> to vector<1x512xf32>
    %291 = vector.broadcast %290 : vector<1x512xf32> to vector<8x512xf32>
    %292 = arith.mulf %288, %291 : vector<8x512xf32>
    %c128_280 = arith.constant 128 : index
    %c0_281 = arith.constant 0 : index
    %293 = vector.load %arg11[%c128_280, %c0_281] : memref<216x512xf32, #tpu.memory_space<vmem>>, vector<8x512xf32>
    tpu.vector_store %arg11[%c128_280, %c0_281], %292 {strides = array<i32>} : memref<216x512xf32, #tpu.memory_space<vmem>>, vector<8x512xf32>,
    %c0_282 = arith.constant 0 : index
    %c201_283 = arith.constant 201 : index
    %294 = vector.load %arg9[%c0_282, %c201_283] : memref<8x896xf32, #tpu.memory_space<vmem>>, vector<8x512xf32>
    %c8_284 = arith.constant 8 : index
    %c0_285 = arith.constant 0 : index
    %c0_286 = arith.constant 0 : index
    %295 = vector.load %arg3[%c8_284, %c0_285, %c0_286] : memref<9x1x640xf32, #tpu.memory_space<vmem>>, vector<1x1x512xf32>
    %296 = vector.shape_cast %295 : vector<1x1x512xf32> to vector<1x512xf32>
    %297 = vector.broadcast %296 : vector<1x512xf32> to vector<8x512xf32>
    %298 = arith.mulf %294, %297 : vector<8x512xf32>
    %c136_287 = arith.constant 136 : index
    %c0_288 = arith.constant 0 : index
    %299 = vector.load %arg11[%c136_287, %c0_288] : memref<216x512xf32, #tpu.memory_space<vmem>>, vector<8x512xf32>
    tpu.vector_store %arg11[%c136_287, %c0_288], %298 {strides = array<i32>} : memref<216x512xf32, #tpu.memory_space<vmem>>, vector<8x512xf32>,
    %c0_289 = arith.constant 0 : index
    %c247_290 = arith.constant 247 : index
    %300 = vector.load %arg9[%c0_289, %c247_290] : memref<8x896xf32, #tpu.memory_space<vmem>>, vector<8x512xf32>
    %c0_291 = arith.constant 0 : index
    %c0_292 = arith.constant 0 : index
    %c0_293 = arith.constant 0 : index
    %301 = vector.load %arg3[%c0_291, %c0_292, %c0_293] : memref<9x1x640xf32, #tpu.memory_space<vmem>>, vector<1x1x512xf32>
    %302 = vector.shape_cast %301 : vector<1x1x512xf32> to vector<1x512xf32>
    %303 = vector.broadcast %302 : vector<1x512xf32> to vector<8x512xf32>
    %304 = arith.mulf %300, %303 : vector<8x512xf32>
    %c144_294 = arith.constant 144 : index
    %c0_295 = arith.constant 0 : index
    %305 = vector.load %arg11[%c144_294, %c0_295] : memref<216x512xf32, #tpu.memory_space<vmem>>, vector<8x512xf32>
    tpu.vector_store %arg11[%c144_294, %c0_295], %304 {strides = array<i32>} : memref<216x512xf32, #tpu.memory_space<vmem>>, vector<8x512xf32>,
    %c0_296 = arith.constant 0 : index
    %c248_297 = arith.constant 248 : index
    %306 = vector.load %arg9[%c0_296, %c248_297] : memref<8x896xf32, #tpu.memory_space<vmem>>, vector<8x512xf32>
    %c1_298 = arith.constant 1 : index
    %c0_299 = arith.constant 0 : index
    %c0_300 = arith.constant 0 : index
    %307 = vector.load %arg3[%c1_298, %c0_299, %c0_300] : memref<9x1x640xf32, #tpu.memory_space<vmem>>, vector<1x1x512xf32>
    %308 = vector.shape_cast %307 : vector<1x1x512xf32> to vector<1x512xf32>
    %309 = vector.broadcast %308 : vector<1x512xf32> to vector<8x512xf32>
    %310 = arith.mulf %306, %309 : vector<8x512xf32>
    %c152_301 = arith.constant 152 : index
    %c0_302 = arith.constant 0 : index
    %311 = vector.load %arg11[%c152_301, %c0_302] : memref<216x512xf32, #tpu.memory_space<vmem>>, vector<8x512xf32>
    tpu.vector_store %arg11[%c152_301, %c0_302], %310 {strides = array<i32>} : memref<216x512xf32, #tpu.memory_space<vmem>>, vector<8x512xf32>,
    %c0_303 = arith.constant 0 : index
    %c249_304 = arith.constant 249 : index
    %312 = vector.load %arg9[%c0_303, %c249_304] : memref<8x896xf32, #tpu.memory_space<vmem>>, vector<8x512xf32>
    %c2_305 = arith.constant 2 : index
    %c0_306 = arith.constant 0 : index
    %c0_307 = arith.constant 0 : index
    %313 = vector.load %arg3[%c2_305, %c0_306, %c0_307] : memref<9x1x640xf32, #tpu.memory_space<vmem>>, vector<1x1x512xf32>
    %314 = vector.shape_cast %313 : vector<1x1x512xf32> to vector<1x512xf32>
    %315 = vector.broadcast %314 : vector<1x512xf32> to vector<8x512xf32>
    %316 = arith.mulf %312, %315 : vector<8x512xf32>
    %c160_308 = arith.constant 160 : index
    %c0_309 = arith.constant 0 : index
    %317 = vector.load %arg11[%c160_308, %c0_309] : memref<216x512xf32, #tpu.memory_space<vmem>>, vector<8x512xf32>
    tpu.vector_store %arg11[%c160_308, %c0_309], %316 {strides = array<i32>} : memref<216x512xf32, #tpu.memory_space<vmem>>, vector<8x512xf32>,
    %c0_310 = arith.constant 0 : index
    %c255_311 = arith.constant 255 : index
    %318 = vector.load %arg9[%c0_310, %c255_311] : memref<8x896xf32, #tpu.memory_space<vmem>>, vector<8x512xf32>
    %c3_312 = arith.constant 3 : index
    %c0_313 = arith.constant 0 : index
    %c0_314 = arith.constant 0 : index
    %319 = vector.load %arg3[%c3_312, %c0_313, %c0_314] : memref<9x1x640xf32, #tpu.memory_space<vmem>>, vector<1x1x512xf32>
    %320 = vector.shape_cast %319 : vector<1x1x512xf32> to vector<1x512xf32>
    %321 = vector.broadcast %320 : vector<1x512xf32> to vector<8x512xf32>
    %322 = arith.mulf %318, %321 : vector<8x512xf32>
    %c168_315 = arith.constant 168 : index
    %c0_316 = arith.constant 0 : index
    %323 = vector.load %arg11[%c168_315, %c0_316] : memref<216x512xf32, #tpu.memory_space<vmem>>, vector<8x512xf32>
    tpu.vector_store %arg11[%c168_315, %c0_316], %322 {strides = array<i32>} : memref<216x512xf32, #tpu.memory_space<vmem>>, vector<8x512xf32>,
    %c0_317 = arith.constant 0 : index
    %c256_318 = arith.constant 256 : index
    %324 = vector.load %arg9[%c0_317, %c256_318] : memref<8x896xf32, #tpu.memory_space<vmem>>, vector<8x512xf32>
    %c4_319 = arith.constant 4 : index
    %c0_320 = arith.constant 0 : index
    %c0_321 = arith.constant 0 : index
    %325 = vector.load %arg3[%c4_319, %c0_320, %c0_321] : memref<9x1x640xf32, #tpu.memory_space<vmem>>, vector<1x1x512xf32>
    %326 = vector.shape_cast %325 : vector<1x1x512xf32> to vector<1x512xf32>
    %327 = vector.broadcast %326 : vector<1x512xf32> to vector<8x512xf32>
    %328 = arith.mulf %324, %327 : vector<8x512xf32>
    %c176_322 = arith.constant 176 : index
    %c0_323 = arith.constant 0 : index
    %329 = vector.load %arg11[%c176_322, %c0_323] : memref<216x512xf32, #tpu.memory_space<vmem>>, vector<8x512xf32>
    tpu.vector_store %arg11[%c176_322, %c0_323], %328 {strides = array<i32>} : memref<216x512xf32, #tpu.memory_space<vmem>>, vector<8x512xf32>,
    %c0_324 = arith.constant 0 : index
    %c257_325 = arith.constant 257 : index
    %330 = vector.load %arg9[%c0_324, %c257_325] : memref<8x896xf32, #tpu.memory_space<vmem>>, vector<8x512xf32>
    %c5_326 = arith.constant 5 : index
    %c0_327 = arith.constant 0 : index
    %c0_328 = arith.constant 0 : index
    %331 = vector.load %arg3[%c5_326, %c0_327, %c0_328] : memref<9x1x640xf32, #tpu.memory_space<vmem>>, vector<1x1x512xf32>
    %332 = vector.shape_cast %331 : vector<1x1x512xf32> to vector<1x512xf32>
    %333 = vector.broadcast %332 : vector<1x512xf32> to vector<8x512xf32>
    %334 = arith.mulf %330, %333 : vector<8x512xf32>
    %c184_329 = arith.constant 184 : index
    %c0_330 = arith.constant 0 : index
    %335 = vector.load %arg11[%c184_329, %c0_330] : memref<216x512xf32, #tpu.memory_space<vmem>>, vector<8x512xf32>
    tpu.vector_store %arg11[%c184_329, %c0_330], %334 {strides = array<i32>} : memref<216x512xf32, #tpu.memory_space<vmem>>, vector<8x512xf32>,
    %c0_331 = arith.constant 0 : index
    %c263_332 = arith.constant 263 : index
    %336 = vector.load %arg9[%c0_331, %c263_332] : memref<8x896xf32, #tpu.memory_space<vmem>>, vector<8x512xf32>
    %c6_333 = arith.constant 6 : index
    %c0_334 = arith.constant 0 : index
    %c0_335 = arith.constant 0 : index
    %337 = vector.load %arg3[%c6_333, %c0_334, %c0_335] : memref<9x1x640xf32, #tpu.memory_space<vmem>>, vector<1x1x512xf32>
    %338 = vector.shape_cast %337 : vector<1x1x512xf32> to vector<1x512xf32>
    %339 = vector.broadcast %338 : vector<1x512xf32> to vector<8x512xf32>
    %340 = arith.mulf %336, %339 : vector<8x512xf32>
    %c192_336 = arith.constant 192 : index
    %c0_337 = arith.constant 0 : index
    %341 = vector.load %arg11[%c192_336, %c0_337] : memref<216x512xf32, #tpu.memory_space<vmem>>, vector<8x512xf32>
    tpu.vector_store %arg11[%c192_336, %c0_337], %340 {strides = array<i32>} : memref<216x512xf32, #tpu.memory_space<vmem>>, vector<8x512xf32>,
    %c0_338 = arith.constant 0 : index
    %c264_339 = arith.constant 264 : index
    %342 = vector.load %arg9[%c0_338, %c264_339] : memref<8x896xf32, #tpu.memory_space<vmem>>, vector<8x512xf32>
    %c7_340 = arith.constant 7 : index
    %c0_341 = arith.constant 0 : index
    %c0_342 = arith.constant 0 : index
    %343 = vector.load %arg3[%c7_340, %c0_341, %c0_342] : memref<9x1x640xf32, #tpu.memory_space<vmem>>, vector<1x1x512xf32>
    %344 = vector.shape_cast %343 : vector<1x1x512xf32> to vector<1x512xf32>
    %345 = vector.broadcast %344 : vector<1x512xf32> to vector<8x512xf32>
    %346 = arith.mulf %342, %345 : vector<8x512xf32>
    %c200_343 = arith.constant 200 : index
    %c0_344 = arith.constant 0 : index
    %347 = vector.load %arg11[%c200_343, %c0_344] : memref<216x512xf32, #tpu.memory_space<vmem>>, vector<8x512xf32>
    tpu.vector_store %arg11[%c200_343, %c0_344], %346 {strides = array<i32>} : memref<216x512xf32, #tpu.memory_space<vmem>>, vector<8x512xf32>,
    %c0_345 = arith.constant 0 : index
    %c265_346 = arith.constant 265 : index
    %348 = vector.load %arg9[%c0_345, %c265_346] : memref<8x896xf32, #tpu.memory_space<vmem>>, vector<8x512xf32>
    %c8_347 = arith.constant 8 : index
    %c0_348 = arith.constant 0 : index
    %c0_349 = arith.constant 0 : index
    %349 = vector.load %arg3[%c8_347, %c0_348, %c0_349] : memref<9x1x640xf32, #tpu.memory_space<vmem>>, vector<1x1x512xf32>
    %350 = vector.shape_cast %349 : vector<1x1x512xf32> to vector<1x512xf32>
    %351 = vector.broadcast %350 : vector<1x512xf32> to vector<8x512xf32>
    %352 = arith.mulf %348, %351 : vector<8x512xf32>
    %c208_350 = arith.constant 208 : index
    %c0_351 = arith.constant 0 : index
    %353 = vector.load %arg11[%c208_350, %c0_351] : memref<216x512xf32, #tpu.memory_space<vmem>>, vector<8x512xf32>
    tpu.vector_store %arg11[%c208_350, %c0_351], %352 {strides = array<i32>} : memref<216x512xf32, #tpu.memory_space<vmem>>, vector<8x512xf32>,
    %c0_352 = arith.constant 0 : index
    %c0_353 = arith.constant 0 : index
    %354 = vector.load %arg6[%c0_352, %c0_353] : memref<8x216xbf16, #tpu.memory_space<vmem>>, vector<8x216xbf16>
    %c0_354 = arith.constant 0 : index
    %c0_355 = arith.constant 0 : index
    %355 = vector.load %arg11[%c0_354, %c0_355] : memref<216x512xf32, #tpu.memory_space<vmem>>, vector<216x512xf32>
    %356 = arith.truncf %355 : vector<216x512xf32> to vector<216x512xbf16>
    %cst_356 = arith.constant dense<0.000000e+00> : vector<8x512xf32>
    %357 = tpu.matmul %354, %356, %cst_356 {dimension_numbers = #tpu.dot_dimension_numbers<[1], [0], [0], [1], [0, 0, 1, 1], [], []>} : vector<8x216xbf16>, vector<216x512xbf16>, vector<8x512xf32> -> vector<8x512xf32>
    %358 = vector.extract_strided_slice %1 {offsets = [0, 128], sizes = [8, 512], strides = [1, 1]} : vector<8x768xf32> to vector<8x512xf32>
    %359 = arith.addf %357, %358 : vector<8x512xf32>
    %c0_357 = arith.constant 0 : index
    %c0_358 = arith.constant 0 : index
    %c0_359 = arith.constant 0 : index
    %c0_360 = arith.constant 0 : index
    %360 = vector.load %arg7[%c0_357, %c0_358, %c0_359, %c0_360] : memref<1x1x8x512xf32, #tpu.memory_space<vmem>>, vector<1x1x8x512xf32>
    %361 = vector.shape_cast %360 : vector<1x1x8x512xf32> to vector<8x512xf32>
    %362 = vector.shape_cast %359 : vector<8x512xf32> to vector<1x1x8x512xf32>
    tpu.vector_store %arg7[%c0_357, %c0_358, %c0_359, %c0_360], %362 {strides = array<i32>} : memref<1x1x8x512xf32, #tpu.memory_space<vmem>>, vector<1x1x8x512xf32>,
    return
  }
  func.func @transform_0(%arg0: i32, %arg1: i32) -> (i32, i32, i32, i32) {
    %c0_i32 = arith.constant 0 : i32
    %c0_i32_0 = arith.constant 0 : i32
    %c0_i32_1 = arith.constant 0 : i32
    return %arg0, %arg1, %c0_i32, %c0_i32_0 : i32, i32, i32, i32
  }
  func.func @transform_1(%arg0: i32, %arg1: i32) -> (i32, i32, i32) {
    %c0_i32 = arith.constant 0 : i32
    %c0_i32_0 = arith.constant 0 : i32
    %c0_i32_1 = arith.constant 0 : i32
    %c0_i32_2 = arith.constant 0 : i32
    return %c0_i32, %c0_i32_0, %c0_i32_1 : i32, i32, i32
  }
  func.func @transform_2(%arg0: i32, %arg1: i32) -> (i32, i32, i32) {
    %c0_i32 = arith.constant 0 : i32
    %c0_i32_0 = arith.constant 0 : i32
    %c0_i32_1 = arith.constant 0 : i32
    return %arg1, %c0_i32, %c0_i32_0 : i32, i32, i32
  }
  func.func @transform_3(%arg0: i32, %arg1: i32) -> (i32, i32) {
    %c0_i32 = arith.constant 0 : i32
    %c0_i32_0 = arith.constant 0 : i32
    %c0_i32_1 = arith.constant 0 : i32
    return %c0_i32, %c0_i32_0 : i32, i32
  }
  func.func @transform_4(%arg0: i32, %arg1: i32) -> (i32, i32) {
    %c0_i32 = arith.constant 0 : i32
    %c0_i32_0 = arith.constant 0 : i32
    %c0_i32_1 = arith.constant 0 : i32
    return %c0_i32, %c0_i32_0 : i32, i32
  }
  func.func @transform_5(%arg0: i32, %arg1: i32) -> (i32, i32, i32, i32) {
    %c0_i32 = arith.constant 0 : i32
    %c0_i32_0 = arith.constant 0 : i32
    %c0_i32_1 = arith.constant 0 : i32
    return %arg0, %arg1, %c0_i32, %c0_i32_0 : i32, i32, i32, i32
  }
}

</mosaic_0001>

<llo_original>
// kernel: tpu_custom_call.1
$region0: #{tpu_custom_call.1}
  #allocation0 [shape = 'u32[]', space=smem, size = 0x4, offset = 0x4, fixed_abs, tag = 'smem constant byte address 0x4 - core index']
  #allocation1 [shape = 'u32[144,128]{1,0:T(1,128)}', space=vmem, size = 0x12000, scoped, tag = 'internal scratch']
  #allocation2 [shape = 'f32[8,1024]{1,0:T(8,128)}', space=vmem, size = 0x8000, scoped, tag = 'scratch operand']
  #allocation3 [shape = 'f32[8,896]{1,0:T(8,128)}', space=vmem, size = 0x7000, scoped, tag = 'scratch operand']
  #allocation4 [shape = 'f32[216,640]{1,0:T(8,128)}', space=vmem, size = 0x87000, scoped, tag = 'scratch operand']
  #allocation5 [shape = 'f32[216,512]{1,0:T(8,128)}', space=vmem, size = 0x6c000, scoped, tag = 'scratch operand']
  %s0 = inlined_call_operand.hbm [shape: f32[2,1,8,768], index: 0, kind: input, shape index: {}]
  %s1 = inlined_call_operand.hbm [shape: f32[9,1,640], index: 1, kind: input, shape index: {}]
  %s2 = inlined_call_operand.hbm [shape: f32[1,1,640], index: 2, kind: input, shape index: {}]
  %s3 = inlined_call_operand.hbm [shape: bf16[8,216], index: 3, kind: input, shape index: {}]
  %s4 = inlined_call_operand.hbm [shape: bf16[8,216], index: 4, kind: input, shape index: {}]
  %s5 = inlined_call_operand.hbm [shape: f32[2,1,8,512], index: 5, kind: output, shape index: {}]
  %s6 = sld [smem:[#allocation0]]
  $region73: #{tpu_custom_call.1} parent=0
    _
  %s8 = ssub.s32 1, %s6
  %s9 = scalar_select 0, %s8, %s6
  $region1: #{tpu_custom_call.1} parent=0
    #allocation6 [shape = 'u8[49152]{0}', space=vmem, size = 0xc000, scoped, tag = 'input window, operand 0']
    #allocation7 [shape = 's32[2]{0}', space=sflag, size = 0x8, scoped, tag = 'scoped memory for tpu_custom_call.1']
    #allocation8 [shape = 's32[2]{0}', space=sflag, size = 0x8, scoped, tag = 'scoped memory for tpu_custom_call.1']
    #allocation9 [shape = 'u8[23040]{0}', space=vmem, size = 0x5c00, scoped, tag = 'input window, operand 1, single buffered']
    #allocation10 [shape = 's32[1]{0}', space=sflag, size = 0x4, scoped, tag = 'scoped memory for tpu_custom_call.1']
    #allocation11 [shape = 'u8[2560]{0}', space=vmem, size = 0xc00, scoped, tag = 'input window, operand 2, single buffered']
    #allocation12 [shape = 'u8[4096]{0}', space=vmem, size = 0x1000, scoped, tag = 'input window, operand 3, single buffered']
    #allocation13 [shape = 's32[1]{0}', space=sflag, size = 0x4, scoped, tag = 'scoped memory for tpu_custom_call.1']
    #allocation14 [shape = 'u8[4096]{0}', space=vmem, size = 0x1000, scoped, tag = 'input window, operand 4, single buffered']
    #allocation15 [shape = 'u8[32768]{0}', space=vmem, size = 0x8000, scoped, tag = 'output window, operand 0']
    %10 = vsyncpa [#allocation7], 0
    %s11 = scalar_lea.sflag [#allocation7], 1
    %12 = vsyncpa %s11, 0
    %13 = vsyncpa [#allocation10], 0
    %14 = vsyncpa [#allocation13], 0
    %15 = vsyncpa [#allocation8], 0
    %s16 = scalar_lea.sflag [#allocation8], 1
    %17 = vsyncpa %s16, 0
    loop: start=0, step=1, limit=4
    $region2: #{tpu_custom_call.1} parent=1 // loop_pre_header
      _
    $region3: #{tpu_custom_call.1} parent=1 // loop_header
      %s19 = sphi 0, %s23
      %p20 = scmp.ge.s32.totalorder %s19, 4
      %s26 = sphi 0, %s38
      %s27 = sphi 0, %s34
      %s28 = sphi 0, %s26
      %s29 = sphi 0, %s27
      %s30 = sphi 0, %s28
      %s31 = sphi 0, %s29
      %s43 = sphi 0, %s45
      %s46 = sphi 0, %s43
      %s47 = sphi 0, %s46
      %s63 = sphi 0, %s47
      %s67 = sphi 0, %s67
      %s69 = sphi 0, %s67
      %s70 = sphi 0, %s69
      %s84 = sphi 0, %s70
      %s90 = sphi 0, %s92
      %s93 = sphi 0, %s90
      %s94 = sphi 0, %s93
      %s110 = sphi 0, %s94
      %s114 = sphi 0, %s114
      %s116 = sphi 0, %s114
      %s117 = sphi 0, %s116
      %s131 = sphi 0, %s117
      %s135 = sphi 0, %s135
      %s137 = sphi 0, %s135
      %s138 = sphi 0, %s137
      %s152 = sphi 0, %s138
      %s160 = sphi 0, %s162
      %s163 = sphi 0, %s160
      %s164 = sphi 0, %s163
      %s180 = sphi 0, %s164
    $region4: #{tpu_custom_call.1} parent=1 // loop_header_branch
      %22 = sbr.rel (%p20) target = $region8
    $region5: #{tpu_custom_call.1} parent=1 // loop_body
      %s24 = ssub.s32 %s19, 1
      %s25 = ssub.s32 %s19, 2
      %s32 = sadd.s32 1, %s27
      %p33 = scmp.ge.s32.totalorder %s32, 1
      %s34 = scalar_select %p33, 0, %s32
      %s35 = sadd.s32 1, %s26
      %s36 = scalar_select %p33, %s35, %s26
      %p37 = scmp.ge.s32.totalorder %s36, 2
      %s38 = scalar_select %p37, 0, %s36
      %s39 = ssub.s32 %s26, %s38
      %s40 = ssub.s32 %s27, %s34
      %s41 = sor.u32 %s39, %s40
      %p42 = scmp.eq.s32.totalorder %s41, 0
      %s44 = sadd.s32 %s43, 1
      %s45 = scalar_select %p42, %s43, %s44
      %p48 = pneg %p42
      %p49 = scmp.eq.s32.totalorder %s19, 1
      %p50 = por %p48, %p49
      %p51 = scmp.ne.s32.totalorder %s43, %s46
      %p52 = scmp.eq.s32.totalorder %s19, 0
      %p53 = por %p51, %p52
      %p54 = scmp.ne.s32.totalorder %s43, %s46
      %p55 = scmp.eq.s32.totalorder %s24, 1
      %p56 = por %p54, %p55
      %p57 = scmp.ne.s32.totalorder %s46, %s47
      %p58 = scmp.eq.s32.totalorder %s24, 0
      %p59 = por %p57, %p58
      %p60 = scmp.ne.s32.totalorder %s46, %s47
      %p61 = scmp.eq.s32.totalorder %s25, 1
      %p62 = por %p60, %p61
      %p64 = scmp.ne.s32.totalorder %s47, %s63
      %p65 = scmp.eq.s32.totalorder %s25, 0
      %p66 = por %p64, %p65
      %s68 = sadd.s32 %s67, 1
      %p71 = scmp.eq.s32.totalorder %s19, 1
      %p72 = scmp.ne.s32.totalorder %s67, %s69
      %p73 = scmp.eq.s32.totalorder %s19, 0
      %p74 = por %p72, %p73
      %p75 = scmp.ne.s32.totalorder %s67, %s69
      %p76 = scmp.eq.s32.totalorder %s24, 1
      %p77 = por %p75, %p76
      %p78 = scmp.ne.s32.totalorder %s69, %s70
      %p79 = scmp.eq.s32.totalorder %s24, 0
      %p80 = por %p78, %p79
      %p81 = scmp.ne.s32.totalorder %s69, %s70
      %p82 = scmp.eq.s32.totalorder %s25, 1
      %p83 = por %p81, %p82
      %p85 = scmp.ne.s32.totalorder %s70, %s84
      %p86 = scmp.eq.s32.totalorder %s25, 0
      %p87 = por %p85, %p86
      %s88 = ssub.s32 %s27, %s34
      %p89 = scmp.eq.s32.totalorder %s88, 0
      %s91 = sadd.s32 %s90, 1
      %s92 = scalar_select %p89, %s90, %s91
      %p95 = pneg %p89
      %p96 = scmp.eq.s32.totalorder %s19, 1
      %p97 = por %p95, %p96
      %p98 = scmp.ne.s32.totalorder %s90, %s93
      %p99 = scmp.eq.s32.totalorder %s19, 0
      %p100 = por %p98, %p99
      %p101 = scmp.ne.s32.totalorder %s90, %s93
      %p102 = scmp.eq.s32.totalorder %s24, 1
      %p103 = por %p101, %p102
      %p104 = scmp.ne.s32.totalorder %s93, %s94
      %p105 = scmp.eq.s32.totalorder %s24, 0
      %p106 = por %p104, %p105
      %p107 = scmp.ne.s32.totalorder %s93, %s94
      %p108 = scmp.eq.s32.totalorder %s25, 1
      %p109 = por %p107, %p108
      %p111 = scmp.ne.s32.totalorder %s94, %s110
      %p112 = scmp.eq.s32.totalorder %s25, 0
      %p113 = por %p111, %p112
      %s115 = sadd.s32 %s114, 1
      %p118 = scmp.eq.s32.totalorder %s19, 1
      %p119 = scmp.ne.s32.totalorder %s114, %s116
      %p120 = scmp.eq.s32.totalorder %s19, 0
      %p121 = por %p119, %p120
      %p122 = scmp.ne.s32.totalorder %s114, %s116
      %p123 = scmp.eq.s32.totalorder %s24, 1
      %p124 = por %p122, %p123
      %p125 = scmp.ne.s32.totalorder %s116, %s117
      %p126 = scmp.eq.s32.totalorder %s24, 0
      %p127 = por %p125, %p126
      %p128 = scmp.ne.s32.totalorder %s116, %s117
      %p129 = scmp.eq.s32.totalorder %s25, 1
      %p130 = por %p128, %p129
      %p132 = scmp.ne.s32.totalorder %s117, %s131
      %p133 = scmp.eq.s32.totalorder %s25, 0
      %p134 = por %p132, %p133
      %s136 = sadd.s32 %s135, 1
      %p139 = scmp.eq.s32.totalorder %s19, 1
      %p140 = scmp.ne.s32.totalorder %s135, %s137
      %p141 = scmp.eq.s32.totalorder %s19, 0
      %p142 = por %p140, %p141
      %p143 = scmp.ne.s32.totalorder %s135, %s137
      %p144 = scmp.eq.s32.totalorder %s24, 1
      %p145 = por %p143, %p144
      %p146 = scmp.ne.s32.totalorder %s137, %s138
      %p147 = scmp.eq.s32.totalorder %s24, 0
      %p148 = por %p146, %p147
      %p149 = scmp.ne.s32.totalorder %s137, %s138
      %p150 = scmp.eq.s32.totalorder %s25, 1
      %p151 = por %p149, %p150
      %p153 = scmp.ne.s32.totalorder %s138, %s152
      %p154 = scmp.eq.s32.totalorder %s25, 0
      %p155 = por %p153, %p154
      %s156 = ssub.s32 %s26, %s38
      %s157 = ssub.s32 %s27, %s34
      %s158 = sor.u32 %s156, %s157
      %p159 = scmp.eq.s32.totalorder %s158, 0
      %s161 = sadd.s32 %s160, 1
      %s162 = scalar_select %p159, %s160, %s161
      %p165 = pneg %p159
      %p166 = scmp.eq.s32.totalorder %s19, 1
      %p167 = por %p165, %p166
      %p168 = scmp.ne.s32.totalorder %s160, %s163
      %p169 = scmp.eq.s32.totalorder %s19, 0
      %p170 = por %p168, %p169
      %p171 = scmp.ne.s32.totalorder %s160, %s163
      %p172 = scmp.eq.s32.totalorder %s24, 1
      %p173 = por %p171, %p172
      %p174 = scmp.ne.s32.totalorder %s163, %s164
      %p175 = scmp.eq.s32.totalorder %s24, 0
      %p176 = por %p174, %p175
      %p177 = scmp.ne.s32.totalorder %s163, %s164
      %p178 = scmp.eq.s32.totalorder %s25, 1
      %p179 = por %p177, %p178
      %p181 = scmp.ne.s32.totalorder %s164, %s180
      %p182 = scmp.eq.s32.totalorder %s25, 0
      %p183 = por %p181, %p182
      %p184 = scmp.le.s32.totalorder 1, %s19
      %p185 = scmp.lt.s32.totalorder %s19, 3
      %p186 = pnand %p184, %p185
      %p187 = pneg %p186
      // Predicated region
      $region9: #{tpu_custom_call.1} parent=5 // pred_check
        _
      $region10: #{tpu_custom_call.1} parent=5 // pred_check_branch
        %189 = sbr.rel (%p186) target = $region12
      $region11: #{tpu_custom_call.1} parent=5 // pred_region
        %s190 = ssub.s32 %s19, 1
        // Predicated region
        $region13: #{tpu_custom_call.1} parent=11 // pred_check
          %p191 = pneg %p80
        $region14: #{tpu_custom_call.1} parent=11 // pred_check_branch
          %193 = sbr.rel (%p191) target = $region16
        $region15: #{tpu_custom_call.1} parent=11 // pred_region
          %s195 = ssub.s32 720, 720
          %196 = vsyncadd [#allocation10], %s195
          %s197 = sshll.u32 [#allocation9], 4
          %s198 = int_to_ptr.vmem [resolvable:$true] %s197
          %203 = dma.hbm_to_vmem [thread:$0]  %s1, 720, %s198, [#allocation10], 80, 80, 5
        $region16: #{tpu_custom_call.1} parent=11 // pred_fallthru
          _
        // Predicated region
        $region17: #{tpu_custom_call.1} parent=11 // pred_check
          %p204 = pneg %p106
        $region18: #{tpu_custom_call.1} parent=11 // pred_check_branch
          %206 = sbr.rel (%p204) target = $region20
        $region19: #{tpu_custom_call.1} parent=11 // pred_region
          %s208 = ssub.s32 80, 80
          %209 = vsyncadd [#allocation10], %s208
          %s210 = smul.addr %s29, 5
          %s211 = smul.addr %s210, 16
          %s212 = scalar_lea.hbm %s2, %s211
          %s214 = sshll.u32 [#allocation11], 4
          %s215 = int_to_ptr.vmem [resolvable:$true] %s214
          %217 = dma.hbm_to_vmem [thread:$0]  %s212, 80, %s215, [#allocation10]
        $region20: #{tpu_custom_call.1} parent=11 // pred_fallthru
          _
        // Predicated region
        $region21: #{tpu_custom_call.1} parent=11 // pred_check
          %p218 = pneg %p127
        $region22: #{tpu_custom_call.1} parent=11 // pred_check_branch
          %220 = sbr.rel (%p218) target = $region24
        $region23: #{tpu_custom_call.1} parent=11 // pred_region
          %s222 = ssub.s32 128, 128
          %223 = vsyncadd [#allocation13], %s222
          %s225 = sshll.u32 [#allocation12], 4
          %s226 = int_to_ptr.vmem [resolvable:$true] %s225
          %228 = dma.hbm_to_vmem [thread:$0]  %s3, 128, %s226, [#allocation13]
        $region24: #{tpu_custom_call.1} parent=11 // pred_fallthru
          _
        // Predicated region
        $region25: #{tpu_custom_call.1} parent=11 // pred_check
          %p229 = pneg %p148
        $region26: #{tpu_custom_call.1} parent=11 // pred_check_branch
          %231 = sbr.rel (%p229) target = $region28
        $region27: #{tpu_custom_call.1} parent=11 // pred_region
          %s233 = ssub.s32 128, 128
          %234 = vsyncadd [#allocation13], %s233
          %s236 = sshll.u32 [#allocation14], 4
          %s237 = int_to_ptr.vmem [resolvable:$true] %s236
          %239 = dma.hbm_to_vmem [thread:$0]  %s4, 128, %s237, [#allocation13]
        $region28: #{tpu_custom_call.1} parent=11 // pred_fallthru
          _
      $region12: #{tpu_custom_call.1} parent=5 // pred_fallthru
        _
      %p240 = scmp.lt.s32.totalorder %s19, 2
      // Predicated region
      $region29: #{tpu_custom_call.1} parent=5 // pred_check
        %p241 = pneg %p240
      $region30: #{tpu_custom_call.1} parent=5 // pred_check_branch
        %243 = sbr.rel (%p241) target = $region32
      $region31: #{tpu_custom_call.1} parent=5 // pred_region
        // Predicated region
        $region33: #{tpu_custom_call.1} parent=31 // pred_check
          %p244 = pneg %p53
        $region34: #{tpu_custom_call.1} parent=31 // pred_check_branch
          %246 = sbr.rel (%p244) target = $region36
        $region35: #{tpu_custom_call.1} parent=31 // pred_region
          %s247 = sand.u32 %s43, 1
          %s248 = scalar_lea.sflag [#allocation7], %s247
          %s249 = sand.u32 %s43, 1
          %s250 = smul.addr %s249, 48
          %s251 = scalar_lea.vmem [#allocation6], %s250
          %s253 = ssub.s32 768, 768
          %254 = vsyncadd %s248, %s253
          %s255 = smul.addr %s27, 6
          %s256 = smul.addr %s26, 6
          %s257 = sadd.s32 %s255, %s256
          %s258 = smul.addr %s257, 128
          %s259 = scalar_lea.hbm %s0, %s258
          %s261 = sshll.u32 %s251, 4
          %s262 = int_to_ptr.vmem [resolvable:$true] %s261
          %264 = dma.hbm_to_vmem [thread:$0]  %s259, 768, %s262, %s248
        $region36: #{tpu_custom_call.1} parent=31 // pred_fallthru
          _
      $region32: #{tpu_custom_call.1} parent=5 // pred_fallthru
        _
      %p265 = scmp.le.s32.totalorder 1, %s19
      %p266 = scmp.lt.s32.totalorder %s19, 3
      %p267 = pnand %p265, %p266
      %p268 = pneg %p267
      // Predicated region
      $region37: #{tpu_custom_call.1} parent=5 // pred_check
        _
      $region38: #{tpu_custom_call.1} parent=5 // pred_check_branch
        %270 = sbr.rel (%p267) target = $region40
      $region39: #{tpu_custom_call.1} parent=5 // pred_region
        %s271 = ssub.s32 %s19, 1
        %s272 = sand.u32 %s46, 1
        %s273 = scalar_lea.sflag [#allocation7], %s272
        %s274 = sand.u32 %s46, 1
        %s275 = smul.addr %s274, 48
        %s276 = scalar_lea.vmem [#allocation6], %s275
        // Predicated region
        $region41: #{tpu_custom_call.1} parent=39 // pred_check
          %p277 = pneg %p59
        $region42: #{tpu_custom_call.1} parent=39 // pred_check_branch
          %279 = sbr.rel (%p277) target = $region44
        $region43: #{tpu_custom_call.1} parent=39 // pred_region
          %280 = dma.done %s273, 768
        $region44: #{tpu_custom_call.1} parent=39 // pred_fallthru
          _
        // Predicated region
        $region45: #{tpu_custom_call.1} parent=39 // pred_check
          %p281 = pneg %p80
        $region46: #{tpu_custom_call.1} parent=39 // pred_check_branch
          %283 = sbr.rel (%p281) target = $region48
        $region47: #{tpu_custom_call.1} parent=39 // pred_region
          %284 = dma.done [#allocation10], 720
        $region48: #{tpu_custom_call.1} parent=39 // pred_fallthru
          _
        // Predicated region
        $region49: #{tpu_custom_call.1} parent=39 // pred_check
          %p285 = pneg %p106
        $region50: #{tpu_custom_call.1} parent=39 // pred_check_branch
          %287 = sbr.rel (%p285) target = $region52
        $region51: #{tpu_custom_call.1} parent=39 // pred_region
          %288 = dma.done [#allocation10], 80
        $region52: #{tpu_custom_call.1} parent=39 // pred_fallthru
          _
        // Predicated region
        $region53: #{tpu_custom_call.1} parent=39 // pred_check
          %p289 = pneg %p127
        $region54: #{tpu_custom_call.1} parent=39 // pred_check_branch
          %291 = sbr.rel (%p289) target = $region56
        $region55: #{tpu_custom_call.1} parent=39 // pred_region
          %292 = dma.done [#allocation13], 128
        $region56: #{tpu_custom_call.1} parent=39 // pred_fallthru
          _
        // Predicated region
        $region57: #{tpu_custom_call.1} parent=39 // pred_check
          %p293 = pneg %p148
        $region58: #{tpu_custom_call.1} parent=39 // pred_check_branch
          %295 = sbr.rel (%p293) target = $region60
        $region59: #{tpu_custom_call.1} parent=39 // pred_region
          %296 = dma.done [#allocation13], 128
        $region60: #{tpu_custom_call.1} parent=39 // pred_fallthru
          _
        %s297 = sand.u32 %s46, 1
        %s298 = scalar_lea.sflag [#allocation7], %s297
        %s299 = sand.u32 %s46, 1
        %s300 = smul.addr %s299, 48
        %s301 = scalar_lea.vmem [#allocation6], %s300
        %p302 = pneg %p59
        %p303 = pneg %p56
        %p304 = pneg %p80
        %p305 = pneg %p77
        %p306 = pneg %p106
        %p307 = pneg %p103
        %p308 = pneg %p127
        %p309 = pneg %p124
        %p310 = pneg %p148
        %p311 = pneg %p145
        %p312 = pneg %p176
        %p313 = pneg %p173
        %s314 = sand.u32 %s163, 1
        %s315 = scalar_lea.sflag [#allocation8], %s314
        %s316 = sand.u32 %s163, 1
        %s317 = smul.addr %s316, 32
        %s318 = scalar_lea.vmem [#allocation15], %s317
        %v320 = vld [vmem:[%s276] sm:$0xff]
        %v321 = vld [vmem:[%s276 + $0x8] sm:$0xff]
        %v322 = vld [vmem:[%s276 + $0x10] sm:$0xff]
        %v323 = vld [vmem:[%s276 + $0x18] sm:$0xff]
        %v324 = vld [vmem:[%s276 + $0x20] sm:$0xff]
        %v325 = vld [vmem:[%s276 + $0x28] sm:$0xff]
        %vm326 = vcmp.ge.f32.partialorder %v320, 0.0
        %vm327 = vcmp.ge.f32.partialorder %v321, 0.0
        %vm328 = vcmp.ge.f32.partialorder %v322, 0.0
        %vm329 = vcmp.ge.f32.partialorder %v323, 0.0
        %vm330 = vcmp.ge.f32.partialorder %v324, 0.0
        %vm331 = vcmp.ge.f32.partialorder %v325, 0.0
        %v332 = vmul.f32 %v320, 0.2
        %v333 = vmul.f32 %v321, 0.2
        %v334 = vmul.f32 %v322, 0.2
        %v335 = vmul.f32 %v323, 0.2
        %v336 = vmul.f32 %v324, 0.2
        %v337 = vmul.f32 %v325, 0.2
        %v338 = vsel %vm326, %v320, %v332
        %v339 = vsel %vm327, %v321, %v333
        %v340 = vsel %vm328, %v322, %v334
        %v341 = vsel %vm329, %v323, %v335
        %v342 = vsel %vm330, %v324, %v336
        %v343 = vsel %vm331, %v325, %v337
        %344 = vst [vmem:[#allocation2] sm:$0xff] 0.0
        %345 = vst [vmem:[#allocation2 + $0x38] sm:$0xff] 0.0
        %346 = vst [vmem:[#allocation2 + $0x8] sm:$0xff] %v338
        %347 = vst [vmem:[#allocation2 + $0x10] sm:$0xff] %v339
        %348 = vst [vmem:[#allocation2 + $0x18] sm:$0xff] %v340
        %349 = vst [vmem:[#allocation2 + $0x20] sm:$0xff] %v341
        %350 = vst [vmem:[#allocation2 + $0x28] sm:$0xff] %v342
        %351 = vst [vmem:[#allocation2 + $0x30] sm:$0xff] %v343
        %v352 = vld [vmem:[#allocation2] sm:$0xff]
        %v353 = vld [vmem:[#allocation2 + $0x8] sm:$0xff]
        %v354 = vld [vmem:[#allocation2 + $0x10] sm:$0xff]
        %v355 = vld [vmem:[#allocation2 + $0x18] sm:$0xff]
        %v356 = vld [vmem:[#allocation2 + $0x20] sm:$0xff]
        %v357 = vld [vmem:[#allocation2 + $0x28] sm:$0xff]
        %v358 = vld [vmem:[#allocation9] sm:$0x1f]
        %v360 = vlaneseq
        %v361 = vshrl.u32 %v360, 7
        %v362 = vsub.s32 0, %v361
        %v363 = vrot.slane %v358, %v362
        %v364 = vlaneseq
        %v365 = vshrl.u32 %v364, 7
        %v366 = vsub.s32 1, %v365
        %v367 = vrot.slane %v358, %v366
        %v368 = vlaneseq
        %v369 = vshrl.u32 %v368, 7
        %v370 = vsub.s32 2, %v369
        %v371 = vrot.slane %v358, %v370
        %v372 = vlaneseq
        %v373 = vshrl.u32 %v372, 7
        %v374 = vsub.s32 3, %v373
        %v375 = vrot.slane %v358, %v374
        %v376 = vlaneseq
        %v377 = vshrl.u32 %v376, 7
        %v378 = vsub.s32 4, %v377
        %v379 = vrot.slane %v358, %v378
        %380 = vrot.lane.b32.xlu0 %v363, 119
        %v381 = vpop.permute.xlu0 %380
        %382 = vrot.lane.b32.xlu0 %v367, 119
        %v383 = vpop.permute.xlu0 %382
        %384 = vrot.lane.b32.xlu0 %v371, 119
        %v385 = vpop.permute.xlu0 %384
        %386 = vrot.lane.b32.xlu0 %v375, 119
        %v387 = vpop.permute.xlu0 %386
        %388 = vrot.lane.b32.xlu0 %v379, 119
        %v389 = vpop.permute.xlu0 %388
        %vm390 = vcmask 973824
        %v391 = vsel %vm390, %v381, %v383
        %v392 = vsel %vm390, %v383, %v385
        %v393 = vsel %vm390, %v385, %v387
        %v394 = vsel %vm390, %v387, %v389
        %v401 = vmul.f32 %v352, %v381
        %v402 = vmul.f32 %v353, %v391
        %v403 = vmul.f32 %v354, %v392
        %v404 = vmul.f32 %v355, %v393
        %v405 = vmul.f32 %v356, %v394
        %v406 = vmul.f32 %v357, %v389
        %413 = vrot.lane.b32.xlu0 %v401, 9
        %v414 = vpop.permute.xlu0 %413
        %415 = vrot.lane.b32.xlu0 %v402, 9
        %v416 = vpop.permute.xlu0 %415
        %417 = vrot.lane.b32.xlu0 %v403, 9
        %v418 = vpop.permute.xlu0 %417
        %419 = vrot.lane.b32.xlu0 %v404, 9
        %v420 = vpop.permute.xlu0 %419
        %421 = vrot.lane.b32.xlu0 %v405, 9
        %v422 = vpop.permute.xlu0 %421
        %423 = vrot.lane.b32.xlu0 %v406, 9
        %v424 = vpop.permute.xlu0 %423
        %vm425 = vcmask 72704
        %v426 = vsel %vm425, %v414, %v416
        %v427 = vsel %vm425, %v416, %v418
        %v428 = vsel %vm425, %v418, %v420
        %v429 = vsel %vm425, %v420, %v422
        %v430 = vsel %vm425, %v422, %v424
        %436 = vst [vmem:[#allocation4] sm:$0xff] %v426
        %437 = vst [vmem:[#allocation4 + $0x8] sm:$0xff] %v427
        %438 = vst [vmem:[#allocation4 + $0x10] sm:$0xff] %v428
        %439 = vst [vmem:[#allocation4 + $0x18] sm:$0xff] %v429
        %440 = vst [vmem:[#allocation4 + $0x20] sm:$0xff] %v430
        %v441 = vld [vmem:[#allocation2] sm:$0xff]
        %v442 = vld [vmem:[#allocation2 + $0x8] sm:$0xff]
        %v443 = vld [vmem:[#allocation2 + $0x10] sm:$0xff]
        %v444 = vld [vmem:[#allocation2 + $0x18] sm:$0xff]
        %v445 = vld [vmem:[#allocation2 + $0x20] sm:$0xff]
        %v446 = vld [vmem:[#allocation2 + $0x28] sm:$0xff]
        %s447 = scalar_lea.vmem [#allocation9], 5
        %v448 = vld [vmem:[%s447] sm:$0x1f]
        %v450 = vlaneseq
        %v451 = vshrl.u32 %v450, 7
        %v452 = vsub.s32 0, %v451
        %v453 = vrot.slane %v448, %v452
        %v454 = vlaneseq
        %v455 = vshrl.u32 %v454, 7
        %v456 = vsub.s32 1, %v455
        %v457 = vrot.slane %v448, %v456
        %v458 = vlaneseq
        %v459 = vshrl.u32 %v458, 7
        %v460 = vsub.s32 2, %v459
        %v461 = vrot.slane %v448, %v460
        %v462 = vlaneseq
        %v463 = vshrl.u32 %v462, 7
        %v464 = vsub.s32 3, %v463
        %v465 = vrot.slane %v448, %v464
        %v466 = vlaneseq
        %v467 = vshrl.u32 %v466, 7
        %v468 = vsub.s32 4, %v467
        %v469 = vrot.slane %v448, %v468
        %470 = vrot.lane.b32.xlu0 %v453, 120
        %v471 = vpop.permute.xlu0 %470
        %472 = vrot.lane.b32.xlu0 %v457, 120
        %v473 = vpop.permute.xlu0 %472
        %474 = vrot.lane.b32.xlu0 %v461, 120
        %v475 = vpop.permute.xlu0 %474
        %476 = vrot.lane.b32.xlu0 %v465, 120
        %v477 = vpop.permute.xlu0 %476
        %478 = vrot.lane.b32.xlu0 %v469, 120
        %v479 = vpop.permute.xlu0 %478
        %vm480 = vcmask 982016
        %v481 = vsel %vm480, %v471, %v473
        %v482 = vsel %vm480, %v473, %v475
        %v483 = vsel %vm480, %v475, %v477
        %v484 = vsel %vm480, %v477, %v479
        %v491 = vmul.f32 %v441, %v471
        %v492 = vmul.f32 %v442, %v481
        %v493 = vmul.f32 %v443, %v482
        %v494 = vmul.f32 %v444, %v483
        %v495 = vmul.f32 %v445, %v484
        %v496 = vmul.f32 %v446, %v479
        %503 = vrot.lane.b32.xlu0 %v491, 8
        %v504 = vpop.permute.xlu0 %503
        %505 = vrot.lane.b32.xlu0 %v492, 8
        %v506 = vpop.permute.xlu0 %505
        %507 = vrot.lane.b32.xlu0 %v493, 8
        %v508 = vpop.permute.xlu0 %507
        %509 = vrot.lane.b32.xlu0 %v494, 8
        %v510 = vpop.permute.xlu0 %509
        %511 = vrot.lane.b32.xlu0 %v495, 8
        %v512 = vpop.permute.xlu0 %511
        %513 = vrot.lane.b32.xlu0 %v496, 8
        %v514 = vpop.permute.xlu0 %513
        %vm515 = vcmask 64512
        %v516 = vsel %vm515, %v504, %v506
        %v517 = vsel %vm515, %v506, %v508
        %v518 = vsel %vm515, %v508, %v510
        %v519 = vsel %vm515, %v510, %v512
        %v520 = vsel %vm515, %v512, %v514
        %526 = vst [vmem:[#allocation4 + $0x28] sm:$0xff] %v516
        %527 = vst [vmem:[#allocation4 + $0x30] sm:$0xff] %v517
        %528 = vst [vmem:[#allocation4 + $0x38] sm:$0xff] %v518
        %529 = vst [vmem:[#allocation4 + $0x40] sm:$0xff] %v519
        %530 = vst [vmem:[#allocation4 + $0x48] sm:$0xff] %v520
        %v531 = vld [vmem:[#allocation2] sm:$0xff]
        %v532 = vld [vmem:[#allocation2 + $0x8] sm:$0xff]
        %v533 = vld [vmem:[#allocation2 + $0x10] sm:$0xff]
        %v534 = vld [vmem:[#allocation2 + $0x18] sm:$0xff]
        %v535 = vld [vmem:[#allocation2 + $0x20] sm:$0xff]
        %v536 = vld [vmem:[#allocation2 + $0x28] sm:$0xff]
        %s537 = scalar_lea.vmem [#allocation9], 10
        %v538 = vld [vmem:[%s537] sm:$0x1f]
        %v540 = vlaneseq
        %v541 = vshrl.u32 %v540, 7
        %v542 = vsub.s32 0, %v541
        %v543 = vrot.slane %v538, %v542
        %v544 = vlaneseq
        %v545 = vshrl.u32 %v544, 7
        %v546 = vsub.s32 1, %v545
        %v547 = vrot.slane %v538, %v546
        %v548 = vlaneseq
        %v549 = vshrl.u32 %v548, 7
        %v550 = vsub.s32 2, %v549
        %v551 = vrot.slane %v538, %v550
        %v552 = vlaneseq
        %v553 = vshrl.u32 %v552, 7
        %v554 = vsub.s32 3, %v553
        %v555 = vrot.slane %v538, %v554
        %v556 = vlaneseq
        %v557 = vshrl.u32 %v556, 7
        %v558 = vsub.s32 4, %v557
        %v559 = vrot.slane %v538, %v558
        %560 = vrot.lane.b32.xlu0 %v543, 121
        %v561 = vpop.permute.xlu0 %560
        %562 = vrot.lane.b32.xlu0 %v547, 121
        %v563 = vpop.permute.xlu0 %562
        %564 = vrot.lane.b32.xlu0 %v551, 121
        %v565 = vpop.permute.xlu0 %564
        %566 = vrot.lane.b32.xlu0 %v555, 121
        %v567 = vpop.permute.xlu0 %566
        %568 = vrot.lane.b32.xlu0 %v559, 121
        %v569 = vpop.permute.xlu0 %568
        %vm570 = vcmask 990208
        %v571 = vsel %vm570, %v561, %v563
        %v572 = vsel %vm570, %v563, %v565
        %v573 = vsel %vm570, %v565, %v567
        %v574 = vsel %vm570, %v567, %v569
        %v581 = vmul.f32 %v531, %v561
        %v582 = vmul.f32 %v532, %v571
        %v583 = vmul.f32 %v533, %v572
        %v584 = vmul.f32 %v534, %v573
        %v585 = vmul.f32 %v535, %v574
        %v586 = vmul.f32 %v536, %v569
        %593 = vrot.lane.b32.xlu0 %v581, 7
        %v594 = vpop.permute.xlu0 %593
        %595 = vrot.lane.b32.xlu0 %v582, 7
        %v596 = vpop.permute.xlu0 %595
        %597 = vrot.lane.b32.xlu0 %v583, 7
        %v598 = vpop.permute.xlu0 %597
        %599 = vrot.lane.b32.xlu0 %v584, 7
        %v600 = vpop.permute.xlu0 %599
        %601 = vrot.lane.b32.xlu0 %v585, 7
        %v602 = vpop.permute.xlu0 %601
        %603 = vrot.lane.b32.xlu0 %v586, 7
        %v604 = vpop.permute.xlu0 %603
        %vm605 = vcmask 56320
        %v606 = vsel %vm605, %v594, %v596
        %v607 = vsel %vm605, %v596, %v598
        %v608 = vsel %vm605, %v598, %v600
        %v609 = vsel %vm605, %v600, %v602
        %v610 = vsel %vm605, %v602, %v604
        %616 = vst [vmem:[#allocation4 + $0x50] sm:$0xff] %v606
        %617 = vst [vmem:[#allocation4 + $0x58] sm:$0xff] %v607
        %618 = vst [vmem:[#allocation4 + $0x60] sm:$0xff] %v608
        %619 = vst [vmem:[#allocation4 + $0x68] sm:$0xff] %v609
        %620 = vst [vmem:[#allocation4 + $0x70] sm:$0xff] %v610
        %v621 = vld [vmem:[#allocation2] sm:$0xff]
        %v622 = vld [vmem:[#allocation2 + $0x8] sm:$0xff]
        %v623 = vld [vmem:[#allocation2 + $0x10] sm:$0xff]
        %v624 = vld [vmem:[#allocation2 + $0x18] sm:$0xff]
        %v625 = vld [vmem:[#allocation2 + $0x20] sm:$0xff]
        %v626 = vld [vmem:[#allocation2 + $0x28] sm:$0xff]
        %s627 = scalar_lea.vmem [#allocation9], 15
        %v628 = vld [vmem:[%s627] sm:$0x1f]
        %v630 = vlaneseq
        %v631 = vshrl.u32 %v630, 7
        %v632 = vsub.s32 0, %v631
        %v633 = vrot.slane %v628, %v632
        %v634 = vlaneseq
        %v635 = vshrl.u32 %v634, 7
        %v636 = vsub.s32 1, %v635
        %v637 = vrot.slane %v628, %v636
        %v638 = vlaneseq
        %v639 = vshrl.u32 %v638, 7
        %v640 = vsub.s32 2, %v639
        %v641 = vrot.slane %v628, %v640
        %v642 = vlaneseq
        %v643 = vshrl.u32 %v642, 7
        %v644 = vsub.s32 3, %v643
        %v645 = vrot.slane %v628, %v644
        %v646 = vlaneseq
        %v647 = vshrl.u32 %v646, 7
        %v648 = vsub.s32 4, %v647
        %v649 = vrot.slane %v628, %v648
        %650 = vrot.lane.b32.xlu0 %v633, 127
        %v651 = vpop.permute.xlu0 %650
        %652 = vrot.lane.b32.xlu0 %v637, 127
        %v653 = vpop.permute.xlu0 %652
        %654 = vrot.lane.b32.xlu0 %v641, 127
        %v655 = vpop.permute.xlu0 %654
        %656 = vrot.lane.b32.xlu0 %v645, 127
        %v657 = vpop.permute.xlu0 %656
        %658 = vrot.lane.b32.xlu0 %v649, 127
        %v659 = vpop.permute.xlu0 %658
        %vm660 = vcmask 1039360
        %v661 = vsel %vm660, %v651, %v653
        %v662 = vsel %vm660, %v653, %v655
        %v663 = vsel %vm660, %v655, %v657
        %v664 = vsel %vm660, %v657, %v659
        %v671 = vmul.f32 %v621, %v651
        %v672 = vmul.f32 %v622, %v661
        %v673 = vmul.f32 %v623, %v662
        %v674 = vmul.f32 %v624, %v663
        %v675 = vmul.f32 %v625, %v664
        %v676 = vmul.f32 %v626, %v659
        %683 = vrot.lane.b32.xlu0 %v671, 1
        %v684 = vpop.permute.xlu0 %683
        %685 = vrot.lane.b32.xlu0 %v672, 1
        %v686 = vpop.permute.xlu0 %685
        %687 = vrot.lane.b32.xlu0 %v673, 1
        %v688 = vpop.permute.xlu0 %687
        %689 = vrot.lane.b32.xlu0 %v674, 1
        %v690 = vpop.permute.xlu0 %689
        %691 = vrot.lane.b32.xlu0 %v675, 1
        %v692 = vpop.permute.xlu0 %691
        %693 = vrot.lane.b32.xlu0 %v676, 1
        %v694 = vpop.permute.xlu0 %693
        %vm695 = vcmask 7168
        %v696 = vsel %vm695, %v684, %v686
        %v697 = vsel %vm695, %v686, %v688
        %v698 = vsel %vm695, %v688, %v690
        %v699 = vsel %vm695, %v690, %v692
        %v700 = vsel %vm695, %v692, %v694
        %706 = vst [vmem:[#allocation4 + $0x78] sm:$0xff] %v696
        %707 = vst [vmem:[#allocation4 + $0x80] sm:$0xff] %v697
        %708 = vst [vmem:[#allocation4 + $0x88] sm:$0xff] %v698
        %709 = vst [vmem:[#allocation4 + $0x90] sm:$0xff] %v699
        %710 = vst [vmem:[#allocation4 + $0x98] sm:$0xff] %v700
        %v711 = vld [vmem:[#allocation2 + $0x8] sm:$0xff]
        %v712 = vld [vmem:[#allocation2 + $0x10] sm:$0xff]
        %v713 = vld [vmem:[#allocation2 + $0x18] sm:$0xff]
        %v714 = vld [vmem:[#allocation2 + $0x20] sm:$0xff]
        %v715 = vld [vmem:[#allocation2 + $0x28] sm:$0xff]
        %s716 = scalar_lea.vmem [#allocation9], 20
        %v717 = vld [vmem:[%s716] sm:$0x1f]
        %v719 = vlaneseq
        %v720 = vshrl.u32 %v719, 7
        %v721 = vsub.s32 0, %v720
        %v722 = vrot.slane %v717, %v721
        %v723 = vlaneseq
        %v724 = vshrl.u32 %v723, 7
        %v725 = vsub.s32 1, %v724
        %v726 = vrot.slane %v717, %v725
        %v727 = vlaneseq
        %v728 = vshrl.u32 %v727, 7
        %v729 = vsub.s32 2, %v728
        %v730 = vrot.slane %v717, %v729
        %v731 = vlaneseq
        %v732 = vshrl.u32 %v731, 7
        %v733 = vsub.s32 3, %v732
        %v734 = vrot.slane %v717, %v733
        %v735 = vlaneseq
        %v736 = vshrl.u32 %v735, 7
        %v737 = vsub.s32 4, %v736
        %v738 = vrot.slane %v717, %v737
        %v744 = vmul.f32 %v711, %v722
        %v745 = vmul.f32 %v712, %v726
        %v746 = vmul.f32 %v713, %v730
        %v747 = vmul.f32 %v714, %v734
        %v748 = vmul.f32 %v715, %v738
        %749 = vst [vmem:[#allocation4 + $0xa0] sm:$0xff] %v744
        %750 = vst [vmem:[#allocation4 + $0xa8] sm:$0xff] %v745
        %751 = vst [vmem:[#allocation4 + $0xb0] sm:$0xff] %v746
        %752 = vst [vmem:[#allocation4 + $0xb8] sm:$0xff] %v747
        %753 = vst [vmem:[#allocation4 + $0xc0] sm:$0xff] %v748
        %v754 = vld [vmem:[#allocation2 + $0x8] sm:$0xff]
        %v755 = vld [vmem:[#allocation2 + $0x10] sm:$0xff]
        %v756 = vld [vmem:[#allocation2 + $0x18] sm:$0xff]
        %v757 = vld [vmem:[#allocation2 + $0x20] sm:$0xff]
        %v758 = vld [vmem:[#allocation2 + $0x28] sm:$0xff]
        %v759 = vld [vmem:[#allocation2 + $0x30] sm:$0xff]
        %s760 = scalar_lea.vmem [#allocation9], 25
        %v761 = vld [vmem:[%s760] sm:$0x1f]
        %v763 = vlaneseq
        %v764 = vshrl.u32 %v763, 7
        %v765 = vsub.s32 0, %v764
        %v766 = vrot.slane %v761, %v765
        %v767 = vlaneseq
        %v768 = vshrl.u32 %v767, 7
        %v769 = vsub.s32 1, %v768
        %v770 = vrot.slane %v761, %v769
        %v771 = vlaneseq
        %v772 = vshrl.u32 %v771, 7
        %v773 = vsub.s32 2, %v772
        %v774 = vrot.slane %v761, %v773
        %v775 = vlaneseq
        %v776 = vshrl.u32 %v775, 7
        %v777 = vsub.s32 3, %v776
        %v778 = vrot.slane %v761, %v777
        %v779 = vlaneseq
        %v780 = vshrl.u32 %v779, 7
        %v781 = vsub.s32 4, %v780
        %v782 = vrot.slane %v761, %v781
        %783 = vrot.lane.b32.xlu0 %v766, 1
        %v784 = vpop.permute.xlu0 %783
        %785 = vrot.lane.b32.xlu0 %v770, 1
        %v786 = vpop.permute.xlu0 %785
        %787 = vrot.lane.b32.xlu0 %v774, 1
        %v788 = vpop.permute.xlu0 %787
        %789 = vrot.lane.b32.xlu0 %v778, 1
        %v790 = vpop.permute.xlu0 %789
        %791 = vrot.lane.b32.xlu0 %v782, 1
        %v792 = vpop.permute.xlu0 %791
        %v793 = vsel %vm695, %v784, %v786
        %v794 = vsel %vm695, %v786, %v788
        %v795 = vsel %vm695, %v788, %v790
        %v796 = vsel %vm695, %v790, %v792
        %v803 = vmul.f32 %v754, %v784
        %v804 = vmul.f32 %v755, %v793
        %v805 = vmul.f32 %v756, %v794
        %v806 = vmul.f32 %v757, %v795
        %v807 = vmul.f32 %v758, %v796
        %v808 = vmul.f32 %v759, %v792
        %815 = vrot.lane.b32.xlu0 %v803, 127
        %v816 = vpop.permute.xlu0 %815
        %817 = vrot.lane.b32.xlu0 %v804, 127
        %v818 = vpop.permute.xlu0 %817
        %819 = vrot.lane.b32.xlu0 %v805, 127
        %v820 = vpop.permute.xlu0 %819
        %821 = vrot.lane.b32.xlu0 %v806, 127
        %v822 = vpop.permute.xlu0 %821
        %823 = vrot.lane.b32.xlu0 %v807, 127
        %v824 = vpop.permute.xlu0 %823
        %825 = vrot.lane.b32.xlu0 %v808, 127
        %v826 = vpop.permute.xlu0 %825
        %v827 = vsel %vm660, %v816, %v818
        %v828 = vsel %vm660, %v818, %v820
        %v829 = vsel %vm660, %v820, %v822
        %v830 = vsel %vm660, %v822, %v824
        %v831 = vsel %vm660, %v824, %v826
        %837 = vst [vmem:[#allocation4 + $0xc8] sm:$0xff] %v827
        %838 = vst [vmem:[#allocation4 + $0xd0] sm:$0xff] %v828
        %839 = vst [vmem:[#allocation4 + $0xd8] sm:$0xff] %v829
        %840 = vst [vmem:[#allocation4 + $0xe0] sm:$0xff] %v830
        %841 = vst [vmem:[#allocation4 + $0xe8] sm:$0xff] %v831
        %v842 = vld [vmem:[#allocation2 + $0x8] sm:$0xff]
        %v843 = vld [vmem:[#allocation2 + $0x10] sm:$0xff]
        %v844 = vld [vmem:[#allocation2 + $0x18] sm:$0xff]
        %v845 = vld [vmem:[#allocation2 + $0x20] sm:$0xff]
        %v846 = vld [vmem:[#allocation2 + $0x28] sm:$0xff]
        %v847 = vld [vmem:[#allocation2 + $0x30] sm:$0xff]
        %s848 = scalar_lea.vmem [#allocation9], 30
        %v849 = vld [vmem:[%s848] sm:$0x1f]
        %v851 = vlaneseq
        %v852 = vshrl.u32 %v851, 7
        %v853 = vsub.s32 0, %v852
        %v854 = vrot.slane %v849, %v853
        %v855 = vlaneseq
        %v856 = vshrl.u32 %v855, 7
        %v857 = vsub.s32 1, %v856
        %v858 = vrot.slane %v849, %v857
        %v859 = vlaneseq
        %v860 = vshrl.u32 %v859, 7
        %v861 = vsub.s32 2, %v860
        %v862 = vrot.slane %v849, %v861
        %v863 = vlaneseq
        %v864 = vshrl.u32 %v863, 7
        %v865 = vsub.s32 3, %v864
        %v866 = vrot.slane %v849, %v865
        %v867 = vlaneseq
        %v868 = vshrl.u32 %v867, 7
        %v869 = vsub.s32 4, %v868
        %v870 = vrot.slane %v849, %v869
        %871 = vrot.lane.b32.xlu0 %v854, 7
        %v872 = vpop.permute.xlu0 %871
        %873 = vrot.lane.b32.xlu0 %v858, 7
        %v874 = vpop.permute.xlu0 %873
        %875 = vrot.lane.b32.xlu0 %v862, 7
        %v876 = vpop.permute.xlu0 %875
        %877 = vrot.lane.b32.xlu0 %v866, 7
        %v878 = vpop.permute.xlu0 %877
        %879 = vrot.lane.b32.xlu0 %v870, 7
        %v880 = vpop.permute.xlu0 %879
        %v881 = vsel %vm605, %v872, %v874
        %v882 = vsel %vm605, %v874, %v876
        %v883 = vsel %vm605, %v876, %v878
        %v884 = vsel %vm605, %v878, %v880
        %v891 = vmul.f32 %v842, %v872
        %v892 = vmul.f32 %v843, %v881
        %v893 = vmul.f32 %v844, %v882
        %v894 = vmul.f32 %v845, %v883
        %v895 = vmul.f32 %v846, %v884
        %v896 = vmul.f32 %v847, %v880
        %903 = vrot.lane.b32.xlu0 %v891, 121
        %v904 = vpop.permute.xlu0 %903
        %905 = vrot.lane.b32.xlu0 %v892, 121
        %v906 = vpop.permute.xlu0 %905
        %907 = vrot.lane.b32.xlu0 %v893, 121
        %v908 = vpop.permute.xlu0 %907
        %909 = vrot.lane.b32.xlu0 %v894, 121
        %v910 = vpop.permute.xlu0 %909
        %911 = vrot.lane.b32.xlu0 %v895, 121
        %v912 = vpop.permute.xlu0 %911
        %913 = vrot.lane.b32.xlu0 %v896, 121
        %v914 = vpop.permute.xlu0 %913
        %v915 = vsel %vm570, %v904, %v906
        %v916 = vsel %vm570, %v906, %v908
        %v917 = vsel %vm570, %v908, %v910
        %v918 = vsel %vm570, %v910, %v912
        %v919 = vsel %vm570, %v912, %v914
        %925 = vst [vmem:[#allocation4 + $0xf0] sm:$0xff] %v915
        %926 = vst [vmem:[#allocation4 + $0xf8] sm:$0xff] %v916
        %927 = vst [vmem:[#allocation4 + $0x100] sm:$0xff] %v917
        %928 = vst [vmem:[#allocation4 + $0x108] sm:$0xff] %v918
        %929 = vst [vmem:[#allocation4 + $0x110] sm:$0xff] %v919
        %v930 = vld [vmem:[#allocation2 + $0x8] sm:$0xff]
        %v931 = vld [vmem:[#allocation2 + $0x10] sm:$0xff]
        %v932 = vld [vmem:[#allocation2 + $0x18] sm:$0xff]
        %v933 = vld [vmem:[#allocation2 + $0x20] sm:$0xff]
        %v934 = vld [vmem:[#allocation2 + $0x28] sm:$0xff]
        %v935 = vld [vmem:[#allocation2 + $0x30] sm:$0xff]
        %s936 = scalar_lea.vmem [#allocation9], 35
        %v937 = vld [vmem:[%s936] sm:$0x1f]
        %v939 = vlaneseq
        %v940 = vshrl.u32 %v939, 7
        %v941 = vsub.s32 0, %v940
        %v942 = vrot.slane %v937, %v941
        %v943 = vlaneseq
        %v944 = vshrl.u32 %v943, 7
        %v945 = vsub.s32 1, %v944
        %v946 = vrot.slane %v937, %v945
        %v947 = vlaneseq
        %v948 = vshrl.u32 %v947, 7
        %v949 = vsub.s32 2, %v948
        %v950 = vrot.slane %v937, %v949
        %v951 = vlaneseq
        %v952 = vshrl.u32 %v951, 7
        %v953 = vsub.s32 3, %v952
        %v954 = vrot.slane %v937, %v953
        %v955 = vlaneseq
        %v956 = vshrl.u32 %v955, 7
        %v957 = vsub.s32 4, %v956
        %v958 = vrot.slane %v937, %v957
        %959 = vrot.lane.b32.xlu0 %v942, 8
        %v960 = vpop.permute.xlu0 %959
        %961 = vrot.lane.b32.xlu0 %v946, 8
        %v962 = vpop.permute.xlu0 %961
        %963 = vrot.lane.b32.xlu0 %v950, 8
        %v964 = vpop.permute.xlu0 %963
        %965 = vrot.lane.b32.xlu0 %v954, 8
        %v966 = vpop.permute.xlu0 %965
        %967 = vrot.lane.b32.xlu0 %v958, 8
        %v968 = vpop.permute.xlu0 %967
        %v969 = vsel %vm515, %v960, %v962
        %v970 = vsel %vm515, %v962, %v964
        %v971 = vsel %vm515, %v964, %v966
        %v972 = vsel %vm515, %v966, %v968
        %v979 = vmul.f32 %v930, %v960
        %v980 = vmul.f32 %v931, %v969
        %v981 = vmul.f32 %v932, %v970
        %v982 = vmul.f32 %v933, %v971
        %v983 = vmul.f32 %v934, %v972
        %v984 = vmul.f32 %v935, %v968
        %991 = vrot.lane.b32.xlu0 %v979, 120
        %v992 = vpop.permute.xlu0 %991
        %993 = vrot.lane.b32.xlu0 %v980, 120
        %v994 = vpop.permute.xlu0 %993
        %995 = vrot.lane.b32.xlu0 %v981, 120
        %v996 = vpop.permute.xlu0 %995
        %997 = vrot.lane.b32.xlu0 %v982, 120
        %v998 = vpop.permute.xlu0 %997
        %999 = vrot.lane.b32.xlu0 %v983, 120
        %v1000 = vpop.permute.xlu0 %999
        %1001 = vrot.lane.b32.xlu0 %v984, 120
        %v1002 = vpop.permute.xlu0 %1001
        %v1003 = vsel %vm480, %v992, %v994
        %v1004 = vsel %vm480, %v994, %v996
        %v1005 = vsel %vm480, %v996, %v998
        %v1006 = vsel %vm480, %v998, %v1000
        %v1007 = vsel %vm480, %v1000, %v1002
        %1013 = vst [vmem:[#allocation4 + $0x118] sm:$0xff] %v1003
        %1014 = vst [vmem:[#allocation4 + $0x120] sm:$0xff] %v1004
        %1015 = vst [vmem:[#allocation4 + $0x128] sm:$0xff] %v1005
        %1016 = vst [vmem:[#allocation4 + $0x130] sm:$0xff] %v1006
        %1017 = vst [vmem:[#allocation4 + $0x138] sm:$0xff] %v1007
        %v1018 = vld [vmem:[#allocation2 + $0x8] sm:$0xff]
        %v1019 = vld [vmem:[#allocation2 + $0x10] sm:$0xff]
        %v1020 = vld [vmem:[#allocation2 + $0x18] sm:$0xff]
        %v1021 = vld [vmem:[#allocation2 + $0x20] sm:$0xff]
        %v1022 = vld [vmem:[#allocation2 + $0x28] sm:$0xff]
        %v1023 = vld [vmem:[#allocation2 + $0x30] sm:$0xff]
        %s1024 = scalar_lea.vmem [#allocation9], 40
        %v1025 = vld [vmem:[%s1024] sm:$0x1f]
        %v1027 = vlaneseq
        %v1028 = vshrl.u32 %v1027, 7
        %v1029 = vsub.s32 0, %v1028
        %v1030 = vrot.slane %v1025, %v1029
        %v1031 = vlaneseq
        %v1032 = vshrl.u32 %v1031, 7
        %v1033 = vsub.s32 1, %v1032
        %v1034 = vrot.slane %v1025, %v1033
        %v1035 = vlaneseq
        %v1036 = vshrl.u32 %v1035, 7
        %v1037 = vsub.s32 2, %v1036
        %v1038 = vrot.slane %v1025, %v1037
        %v1039 = vlaneseq
        %v1040 = vshrl.u32 %v1039, 7
        %v1041 = vsub.s32 3, %v1040
        %v1042 = vrot.slane %v1025, %v1041
        %v1043 = vlaneseq
        %v1044 = vshrl.u32 %v1043, 7
        %v1045 = vsub.s32 4, %v1044
        %v1046 = vrot.slane %v1025, %v1045
        %1047 = vrot.lane.b32.xlu0 %v1030, 9
        %v1048 = vpop.permute.xlu0 %1047
        %1049 = vrot.lane.b32.xlu0 %v1034, 9
        %v1050 = vpop.permute.xlu0 %1049
        %1051 = vrot.lane.b32.xlu0 %v1038, 9
        %v1052 = vpop.permute.xlu0 %1051
        %1053 = vrot.lane.b32.xlu0 %v1042, 9
        %v1054 = vpop.permute.xlu0 %1053
        %1055 = vrot.lane.b32.xlu0 %v1046, 9
        %v1056 = vpop.permute.xlu0 %1055
        %v1057 = vsel %vm425, %v1048, %v1050
        %v1058 = vsel %vm425, %v1050, %v1052
        %v1059 = vsel %vm425, %v1052, %v1054
        %v1060 = vsel %vm425, %v1054, %v1056
        %v1067 = vmul.f32 %v1018, %v1048
        %v1068 = vmul.f32 %v1019, %v1057
        %v1069 = vmul.f32 %v1020, %v1058
        %v1070 = vmul.f32 %v1021, %v1059
        %v1071 = vmul.f32 %v1022, %v1060
        %v1072 = vmul.f32 %v1023, %v1056
        %1079 = vrot.lane.b32.xlu0 %v1067, 119
        %v1080 = vpop.permute.xlu0 %1079
        %1081 = vrot.lane.b32.xlu0 %v1068, 119
        %v1082 = vpop.permute.xlu0 %1081
        %1083 = vrot.lane.b32.xlu0 %v1069, 119
        %v1084 = vpop.permute.xlu0 %1083
        %1085 = vrot.lane.b32.xlu0 %v1070, 119
        %v1086 = vpop.permute.xlu0 %1085
        %1087 = vrot.lane.b32.xlu0 %v1071, 119
        %v1088 = vpop.permute.xlu0 %1087
        %1089 = vrot.lane.b32.xlu0 %v1072, 119
        %v1090 = vpop.permute.xlu0 %1089
        %v1091 = vsel %vm390, %v1080, %v1082
        %v1092 = vsel %vm390, %v1082, %v1084
        %v1093 = vsel %vm390, %v1084, %v1086
        %v1094 = vsel %vm390, %v1086, %v1088
        %v1095 = vsel %vm390, %v1088, %v1090
        %1101 = vst [vmem:[#allocation4 + $0x140] sm:$0xff] %v1091
        %1102 = vst [vmem:[#allocation4 + $0x148] sm:$0xff] %v1092
        %1103 = vst [vmem:[#allocation4 + $0x150] sm:$0xff] %v1093
        %1104 = vst [vmem:[#allocation4 + $0x158] sm:$0xff] %v1094
        %1105 = vst [vmem:[#allocation4 + $0x160] sm:$0xff] %v1095
        %v1106 = vld [vmem:[#allocation2 + $0x8] sm:$0xff]
        %v1107 = vld [vmem:[#allocation2 + $0x10] sm:$0xff]
        %v1108 = vld [vmem:[#allocation2 + $0x18] sm:$0xff]
        %v1109 = vld [vmem:[#allocation2 + $0x20] sm:$0xff]
        %v1110 = vld [vmem:[#allocation2 + $0x28] sm:$0xff]
        %v1111 = vld [vmem:[#allocation2 + $0x30] sm:$0xff]
        %v1112 = vld [vmem:[#allocation9] sm:$0x1f]
        %v1114 = vlaneseq
        %v1115 = vshrl.u32 %v1114, 7
        %v1116 = vsub.s32 0, %v1115
        %v1117 = vrot.slane %v1112, %v1116
        %v1118 = vlaneseq
        %v1119 = vshrl.u32 %v1118, 7
        %v1120 = vsub.s32 1, %v1119
        %v1121 = vrot.slane %v1112, %v1120
        %v1122 = vlaneseq
        %v1123 = vshrl.u32 %v1122, 7
        %v1124 = vsub.s32 2, %v1123
        %v1125 = vrot.slane %v1112, %v1124
        %v1126 = vlaneseq
        %v1127 = vshrl.u32 %v1126, 7
        %v1128 = vsub.s32 3, %v1127
        %v1129 = vrot.slane %v1112, %v1128
        %v1130 = vlaneseq
        %v1131 = vshrl.u32 %v1130, 7
        %v1132 = vsub.s32 4, %v1131
        %v1133 = vrot.slane %v1112, %v1132
        %1134 = vrot.lane.b32.xlu0 %v1117, 55
        %v1135 = vpop.permute.xlu0 %1134
        %1136 = vrot.lane.b32.xlu0 %v1121, 55
        %v1137 = vpop.permute.xlu0 %1136
        %1138 = vrot.lane.b32.xlu0 %v1125, 55
        %v1139 = vpop.permute.xlu0 %1138
        %1140 = vrot.lane.b32.xlu0 %v1129, 55
        %v1141 = vpop.permute.xlu0 %1140
        %1142 = vrot.lane.b32.xlu0 %v1133, 55
        %v1143 = vpop.permute.xlu0 %1142
        %vm1144 = vcmask 449536
        %v1145 = vsel %vm1144, %v1135, %v1137
        %v1146 = vsel %vm1144, %v1137, %v1139
        %v1147 = vsel %vm1144, %v1139, %v1141
        %v1148 = vsel %vm1144, %v1141, %v1143
        %v1155 = vmul.f32 %v1106, %v1135
        %v1156 = vmul.f32 %v1107, %v1145
        %v1157 = vmul.f32 %v1108, %v1146
        %v1158 = vmul.f32 %v1109, %v1147
        %v1159 = vmul.f32 %v1110, %v1148
        %v1160 = vmul.f32 %v1111, %v1143
        %1167 = vrot.lane.b32.xlu0 %v1155, 73
        %v1168 = vpop.permute.xlu0 %1167
        %1169 = vrot.lane.b32.xlu0 %v1156, 73
        %v1170 = vpop.permute.xlu0 %1169
        %1171 = vrot.lane.b32.xlu0 %v1157, 73
        %v1172 = vpop.permute.xlu0 %1171
        %1173 = vrot.lane.b32.xlu0 %v1158, 73
        %v1174 = vpop.permute.xlu0 %1173
        %1175 = vrot.lane.b32.xlu0 %v1159, 73
        %v1176 = vpop.permute.xlu0 %1175
        %1177 = vrot.lane.b32.xlu0 %v1160, 73
        %v1178 = vpop.permute.xlu0 %1177
        %vm1179 = vcmask 596992
        %v1180 = vsel %vm1179, %v1168, %v1170
        %v1181 = vsel %vm1179, %v1170, %v1172
        %v1182 = vsel %vm1179, %v1172, %v1174
        %v1183 = vsel %vm1179, %v1174, %v1176
        %v1184 = vsel %vm1179, %v1176, %v1178
        %1190 = vst [vmem:[#allocation4 + $0x168] sm:$0xff] %v1180
        %1191 = vst [vmem:[#allocation4 + $0x170] sm:$0xff] %v1181
        %1192 = vst [vmem:[#allocation4 + $0x178] sm:$0xff] %v1182
        %1193 = vst [vmem:[#allocation4 + $0x180] sm:$0xff] %v1183
        %1194 = vst [vmem:[#allocation4 + $0x188] sm:$0xff] %v1184
        %v1195 = vld [vmem:[#allocation2 + $0x8] sm:$0xff]
        %v1196 = vld [vmem:[#allocation2 + $0x10] sm:$0xff]
        %v1197 = vld [vmem:[#allocation2 + $0x18] sm:$0xff]
        %v1198 = vld [vmem:[#allocation2 + $0x20] sm:$0xff]
        %v1199 = vld [vmem:[#allocation2 + $0x28] sm:$0xff]
        %v1200 = vld [vmem:[#allocation2 + $0x30] sm:$0xff]
        %v1201 = vld [vmem:[%s447] sm:$0x1f]
        %v1203 = vlaneseq
        %v1204 = vshrl.u32 %v1203, 7
        %v1205 = vsub.s32 0, %v1204
        %v1206 = vrot.slane %v1201, %v1205
        %v1207 = vlaneseq
        %v1208 = vshrl.u32 %v1207, 7
        %v1209 = vsub.s32 1, %v1208
        %v1210 = vrot.slane %v1201, %v1209
        %v1211 = vlaneseq
        %v1212 = vshrl.u32 %v1211, 7
        %v1213 = vsub.s32 2, %v1212
        %v1214 = vrot.slane %v1201, %v1213
        %v1215 = vlaneseq
        %v1216 = vshrl.u32 %v1215, 7
        %v1217 = vsub.s32 3, %v1216
        %v1218 = vrot.slane %v1201, %v1217
        %v1219 = vlaneseq
        %v1220 = vshrl.u32 %v1219, 7
        %v1221 = vsub.s32 4, %v1220
        %v1222 = vrot.slane %v1201, %v1221
        %1223 = vrot.lane.b32.xlu0 %v1206, 56
        %v1224 = vpop.permute.xlu0 %1223
        %1225 = vrot.lane.b32.xlu0 %v1210, 56
        %v1226 = vpop.permute.xlu0 %1225
        %1227 = vrot.lane.b32.xlu0 %v1214, 56
        %v1228 = vpop.permute.xlu0 %1227
        %1229 = vrot.lane.b32.xlu0 %v1218, 56
        %v1230 = vpop.permute.xlu0 %1229
        %1231 = vrot.lane.b32.xlu0 %v1222, 56
        %v1232 = vpop.permute.xlu0 %1231
        %vm1233 = vcmask 457728
        %v1234 = vsel %vm1233, %v1224, %v1226
        %v1235 = vsel %vm1233, %v1226, %v1228
        %v1236 = vsel %vm1233, %v1228, %v1230
        %v1237 = vsel %vm1233, %v1230, %v1232
        %v1244 = vmul.f32 %v1195, %v1224
        %v1245 = vmul.f32 %v1196, %v1234
        %v1246 = vmul.f32 %v1197, %v1235
        %v1247 = vmul.f32 %v1198, %v1236
        %v1248 = vmul.f32 %v1199, %v1237
        %v1249 = vmul.f32 %v1200, %v1232
        %1256 = vrot.lane.b32.xlu0 %v1244, 72
        %v1257 = vpop.permute.xlu0 %1256
        %1258 = vrot.lane.b32.xlu0 %v1245, 72
        %v1259 = vpop.permute.xlu0 %1258
        %1260 = vrot.lane.b32.xlu0 %v1246, 72
        %v1261 = vpop.permute.xlu0 %1260
        %1262 = vrot.lane.b32.xlu0 %v1247, 72
        %v1263 = vpop.permute.xlu0 %1262
        %1264 = vrot.lane.b32.xlu0 %v1248, 72
        %v1265 = vpop.permute.xlu0 %1264
        %1266 = vrot.lane.b32.xlu0 %v1249, 72
        %v1267 = vpop.permute.xlu0 %1266
        %vm1268 = vcmask 588800
        %v1269 = vsel %vm1268, %v1257, %v1259
        %v1270 = vsel %vm1268, %v1259, %v1261
        %v1271 = vsel %vm1268, %v1261, %v1263
        %v1272 = vsel %vm1268, %v1263, %v1265
        %v1273 = vsel %vm1268, %v1265, %v1267
        %1279 = vst [vmem:[#allocation4 + $0x190] sm:$0xff] %v1269
        %1280 = vst [vmem:[#allocation4 + $0x198] sm:$0xff] %v1270
        %1281 = vst [vmem:[#allocation4 + $0x1a0] sm:$0xff] %v1271
        %1282 = vst [vmem:[#allocation4 + $0x1a8] sm:$0xff] %v1272
        %1283 = vst [vmem:[#allocation4 + $0x1b0] sm:$0xff] %v1273
        %v1284 = vld [vmem:[#allocation2 + $0x8] sm:$0xff]
        %v1285 = vld [vmem:[#allocation2 + $0x10] sm:$0xff]
        %v1286 = vld [vmem:[#allocation2 + $0x18] sm:$0xff]
        %v1287 = vld [vmem:[#allocation2 + $0x20] sm:$0xff]
        %v1288 = vld [vmem:[#allocation2 + $0x28] sm:$0xff]
        %v1289 = vld [vmem:[#allocation2 + $0x30] sm:$0xff]
        %v1290 = vld [vmem:[%s537] sm:$0x1f]
        %v1292 = vlaneseq
        %v1293 = vshrl.u32 %v1292, 7
        %v1294 = vsub.s32 0, %v1293
        %v1295 = vrot.slane %v1290, %v1294
        %v1296 = vlaneseq
        %v1297 = vshrl.u32 %v1296, 7
        %v1298 = vsub.s32 1, %v1297
        %v1299 = vrot.slane %v1290, %v1298
        %v1300 = vlaneseq
        %v1301 = vshrl.u32 %v1300, 7
        %v1302 = vsub.s32 2, %v1301
        %v1303 = vrot.slane %v1290, %v1302
        %v1304 = vlaneseq
        %v1305 = vshrl.u32 %v1304, 7
        %v1306 = vsub.s32 3, %v1305
        %v1307 = vrot.slane %v1290, %v1306
        %v1308 = vlaneseq
        %v1309 = vshrl.u32 %v1308, 7
        %v1310 = vsub.s32 4, %v1309
        %v1311 = vrot.slane %v1290, %v1310
        %1312 = vrot.lane.b32.xlu0 %v1295, 57
        %v1313 = vpop.permute.xlu0 %1312
        %1314 = vrot.lane.b32.xlu0 %v1299, 57
        %v1315 = vpop.permute.xlu0 %1314
        %1316 = vrot.lane.b32.xlu0 %v1303, 57
        %v1317 = vpop.permute.xlu0 %1316
        %1318 = vrot.lane.b32.xlu0 %v1307, 57
        %v1319 = vpop.permute.xlu0 %1318
        %1320 = vrot.lane.b32.xlu0 %v1311, 57
        %v1321 = vpop.permute.xlu0 %1320
        %vm1322 = vcmask 465920
        %v1323 = vsel %vm1322, %v1313, %v1315
        %v1324 = vsel %vm1322, %v1315, %v1317
        %v1325 = vsel %vm1322, %v1317, %v1319
        %v1326 = vsel %vm1322, %v1319, %v1321
        %v1333 = vmul.f32 %v1284, %v1313
        %v1334 = vmul.f32 %v1285, %v1323
        %v1335 = vmul.f32 %v1286, %v1324
        %v1336 = vmul.f32 %v1287, %v1325
        %v1337 = vmul.f32 %v1288, %v1326
        %v1338 = vmul.f32 %v1289, %v1321
        %1345 = vrot.lane.b32.xlu0 %v1333, 71
        %v1346 = vpop.permute.xlu0 %1345
        %1347 = vrot.lane.b32.xlu0 %v1334, 71
        %v1348 = vpop.permute.xlu0 %1347
        %1349 = vrot.lane.b32.xlu0 %v1335, 71
        %v1350 = vpop.permute.xlu0 %1349
        %1351 = vrot.lane.b32.xlu0 %v1336, 71
        %v1352 = vpop.permute.xlu0 %1351
        %1353 = vrot.lane.b32.xlu0 %v1337, 71
        %v1354 = vpop.permute.xlu0 %1353
        %1355 = vrot.lane.b32.xlu0 %v1338, 71
        %v1356 = vpop.permute.xlu0 %1355
        %vm1357 = vcmask 580608
        %v1358 = vsel %vm1357, %v1346, %v1348
        %v1359 = vsel %vm1357, %v1348, %v1350
        %v1360 = vsel %vm1357, %v1350, %v1352
        %v1361 = vsel %vm1357, %v1352, %v1354
        %v1362 = vsel %vm1357, %v1354, %v1356
        %1368 = vst [vmem:[#allocation4 + $0x1b8] sm:$0xff] %v1358
        %1369 = vst [vmem:[#allocation4 + $0x1c0] sm:$0xff] %v1359
        %1370 = vst [vmem:[#allocation4 + $0x1c8] sm:$0xff] %v1360
        %1371 = vst [vmem:[#allocation4 + $0x1d0] sm:$0xff] %v1361
        %1372 = vst [vmem:[#allocation4 + $0x1d8] sm:$0xff] %v1362
        %v1373 = vld [vmem:[#allocation2 + $0x8] sm:$0xff]
        %v1374 = vld [vmem:[#allocation2 + $0x10] sm:$0xff]
        %v1375 = vld [vmem:[#allocation2 + $0x18] sm:$0xff]
        %v1376 = vld [vmem:[#allocation2 + $0x20] sm:$0xff]
        %v1377 = vld [vmem:[#allocation2 + $0x28] sm:$0xff]
        %v1378 = vld [vmem:[#allocation2 + $0x30] sm:$0xff]
        %v1379 = vld [vmem:[%s627] sm:$0x1f]
        %v1381 = vlaneseq
        %v1382 = vshrl.u32 %v1381, 7
        %v1383 = vsub.s32 0, %v1382
        %v1384 = vrot.slane %v1379, %v1383
        %v1385 = vlaneseq
        %v1386 = vshrl.u32 %v1385, 7
        %v1387 = vsub.s32 1, %v1386
        %v1388 = vrot.slane %v1379, %v1387
        %v1389 = vlaneseq
        %v1390 = vshrl.u32 %v1389, 7
        %v1391 = vsub.s32 2, %v1390
        %v1392 = vrot.slane %v1379, %v1391
        %v1393 = vlaneseq
        %v1394 = vshrl.u32 %v1393, 7
        %v1395 = vsub.s32 3, %v1394
        %v1396 = vrot.slane %v1379, %v1395
        %v1397 = vlaneseq
        %v1398 = vshrl.u32 %v1397, 7
        %v1399 = vsub.s32 4, %v1398
        %v1400 = vrot.slane %v1379, %v1399
        %1401 = vrot.lane.b32.xlu0 %v1384, 63
        %v1402 = vpop.permute.xlu0 %1401
        %1403 = vrot.lane.b32.xlu0 %v1388, 63
        %v1404 = vpop.permute.xlu0 %1403
        %1405 = vrot.lane.b32.xlu0 %v1392, 63
        %v1406 = vpop.permute.xlu0 %1405
        %1407 = vrot.lane.b32.xlu0 %v1396, 63
        %v1408 = vpop.permute.xlu0 %1407
        %1409 = vrot.lane.b32.xlu0 %v1400, 63
        %v1410 = vpop.permute.xlu0 %1409
        %vm1411 = vcmask 515072
        %v1412 = vsel %vm1411, %v1402, %v1404
        %v1413 = vsel %vm1411, %v1404, %v1406
        %v1414 = vsel %vm1411, %v1406, %v1408
        %v1415 = vsel %vm1411, %v1408, %v1410
        %v1422 = vmul.f32 %v1373, %v1402
        %v1423 = vmul.f32 %v1374, %v1412
        %v1424 = vmul.f32 %v1375, %v1413
        %v1425 = vmul.f32 %v1376, %v1414
        %v1426 = vmul.f32 %v1377, %v1415
        %v1427 = vmul.f32 %v1378, %v1410
        %1434 = vrot.lane.b32.xlu0 %v1422, 65
        %v1435 = vpop.permute.xlu0 %1434
        %1436 = vrot.lane.b32.xlu0 %v1423, 65
        %v1437 = vpop.permute.xlu0 %1436
        %1438 = vrot.lane.b32.xlu0 %v1424, 65
        %v1439 = vpop.permute.xlu0 %1438
        %1440 = vrot.lane.b32.xlu0 %v1425, 65
        %v1441 = vpop.permute.xlu0 %1440
        %1442 = vrot.lane.b32.xlu0 %v1426, 65
        %v1443 = vpop.permute.xlu0 %1442
        %1444 = vrot.lane.b32.xlu0 %v1427, 65
        %v1445 = vpop.permute.xlu0 %1444
        %vm1446 = vcmask 531456
        %v1447 = vsel %vm1446, %v1435, %v1437
        %v1448 = vsel %vm1446, %v1437, %v1439
        %v1449 = vsel %vm1446, %v1439, %v1441
        %v1450 = vsel %vm1446, %v1441, %v1443
        %v1451 = vsel %vm1446, %v1443, %v1445
        %1457 = vst [vmem:[#allocation4 + $0x1e0] sm:$0xff] %v1447
        %1458 = vst [vmem:[#allocation4 + $0x1e8] sm:$0xff] %v1448
        %1459 = vst [vmem:[#allocation4 + $0x1f0] sm:$0xff] %v1449
        %1460 = vst [vmem:[#allocation4 + $0x1f8] sm:$0xff] %v1450
        %1461 = vst [vmem:[#allocation4 + $0x200] sm:$0xff] %v1451
        %v1462 = vld [vmem:[#allocation2 + $0x8] sm:$0xff]
        %v1463 = vld [vmem:[#allocation2 + $0x10] sm:$0xff]
        %v1464 = vld [vmem:[#allocation2 + $0x18] sm:$0xff]
        %v1465 = vld [vmem:[#allocation2 + $0x20] sm:$0xff]
        %v1466 = vld [vmem:[#allocation2 + $0x28] sm:$0xff]
        %v1467 = vld [vmem:[#allocation2 + $0x30] sm:$0xff]
        %v1468 = vld [vmem:[%s716] sm:$0x1f]
        %v1470 = vlaneseq
        %v1471 = vshrl.u32 %v1470, 7
        %v1472 = vsub.s32 0, %v1471
        %v1473 = vrot.slane %v1468, %v1472
        %v1474 = vlaneseq
        %v1475 = vshrl.u32 %v1474, 7
        %v1476 = vsub.s32 1, %v1475
        %v1477 = vrot.slane %v1468, %v1476
        %v1478 = vlaneseq
        %v1479 = vshrl.u32 %v1478, 7
        %v1480 = vsub.s32 2, %v1479
        %v1481 = vrot.slane %v1468, %v1480
        %v1482 = vlaneseq
        %v1483 = vshrl.u32 %v1482, 7
        %v1484 = vsub.s32 3, %v1483
        %v1485 = vrot.slane %v1468, %v1484
        %v1486 = vlaneseq
        %v1487 = vshrl.u32 %v1486, 7
        %v1488 = vsub.s32 4, %v1487
        %v1489 = vrot.slane %v1468, %v1488
        %1490 = vrot.lane.b32.xlu0 %v1473, 64
        %v1491 = vpop.permute.xlu0 %1490
        %1492 = vrot.lane.b32.xlu0 %v1477, 64
        %v1493 = vpop.permute.xlu0 %1492
        %1494 = vrot.lane.b32.xlu0 %v1481, 64
        %v1495 = vpop.permute.xlu0 %1494
        %1496 = vrot.lane.b32.xlu0 %v1485, 64
        %v1497 = vpop.permute.xlu0 %1496
        %1498 = vrot.lane.b32.xlu0 %v1489, 64
        %v1499 = vpop.permute.xlu0 %1498
        %vm1500 = vcmask 523264
        %v1501 = vsel %vm1500, %v1491, %v1493
        %v1502 = vsel %vm1500, %v1493, %v1495
        %v1503 = vsel %vm1500, %v1495, %v1497
        %v1504 = vsel %vm1500, %v1497, %v1499
        %v1511 = vmul.f32 %v1462, %v1491
        %v1512 = vmul.f32 %v1463, %v1501
        %v1513 = vmul.f32 %v1464, %v1502
        %v1514 = vmul.f32 %v1465, %v1503
        %v1515 = vmul.f32 %v1466, %v1504
        %v1516 = vmul.f32 %v1467, %v1499
        %1523 = vrot.lane.b32.xlu0 %v1511, 64
        %v1524 = vpop.permute.xlu0 %1523
        %1525 = vrot.lane.b32.xlu0 %v1512, 64
        %v1526 = vpop.permute.xlu0 %1525
        %1527 = vrot.lane.b32.xlu0 %v1513, 64
        %v1528 = vpop.permute.xlu0 %1527
        %1529 = vrot.lane.b32.xlu0 %v1514, 64
        %v1530 = vpop.permute.xlu0 %1529
        %1531 = vrot.lane.b32.xlu0 %v1515, 64
        %v1532 = vpop.permute.xlu0 %1531
        %1533 = vrot.lane.b32.xlu0 %v1516, 64
        %v1534 = vpop.permute.xlu0 %1533
        %v1535 = vsel %vm1500, %v1524, %v1526
        %v1536 = vsel %vm1500, %v1526, %v1528
        %v1537 = vsel %vm1500, %v1528, %v1530
        %v1538 = vsel %vm1500, %v1530, %v1532
        %v1539 = vsel %vm1500, %v1532, %v1534
        %1545 = vst [vmem:[#allocation4 + $0x208] sm:$0xff] %v1535
        %1546 = vst [vmem:[#allocation4 + $0x210] sm:$0xff] %v1536
        %1547 = vst [vmem:[#allocation4 + $0x218] sm:$0xff] %v1537
        %1548 = vst [vmem:[#allocation4 + $0x220] sm:$0xff] %v1538
        %1549 = vst [vmem:[#allocation4 + $0x228] sm:$0xff] %v1539
        %v1550 = vld [vmem:[#allocation2 + $0x8] sm:$0xff]
        %v1551 = vld [vmem:[#allocation2 + $0x10] sm:$0xff]
        %v1552 = vld [vmem:[#allocation2 + $0x18] sm:$0xff]
        %v1553 = vld [vmem:[#allocation2 + $0x20] sm:$0xff]
        %v1554 = vld [vmem:[#allocation2 + $0x28] sm:$0xff]
        %v1555 = vld [vmem:[#allocation2 + $0x30] sm:$0xff]
        %v1556 = vld [vmem:[%s760] sm:$0x1f]
        %v1558 = vlaneseq
        %v1559 = vshrl.u32 %v1558, 7
        %v1560 = vsub.s32 0, %v1559
        %v1561 = vrot.slane %v1556, %v1560
        %v1562 = vlaneseq
        %v1563 = vshrl.u32 %v1562, 7
        %v1564 = vsub.s32 1, %v1563
        %v1565 = vrot.slane %v1556, %v1564
        %v1566 = vlaneseq
        %v1567 = vshrl.u32 %v1566, 7
        %v1568 = vsub.s32 2, %v1567
        %v1569 = vrot.slane %v1556, %v1568
        %v1570 = vlaneseq
        %v1571 = vshrl.u32 %v1570, 7
        %v1572 = vsub.s32 3, %v1571
        %v1573 = vrot.slane %v1556, %v1572
        %v1574 = vlaneseq
        %v1575 = vshrl.u32 %v1574, 7
        %v1576 = vsub.s32 4, %v1575
        %v1577 = vrot.slane %v1556, %v1576
        %1578 = vrot.lane.b32.xlu0 %v1561, 65
        %v1579 = vpop.permute.xlu0 %1578
        %1580 = vrot.lane.b32.xlu0 %v1565, 65
        %v1581 = vpop.permute.xlu0 %1580
        %1582 = vrot.lane.b32.xlu0 %v1569, 65
        %v1583 = vpop.permute.xlu0 %1582
        %1584 = vrot.lane.b32.xlu0 %v1573, 65
        %v1585 = vpop.permute.xlu0 %1584
        %1586 = vrot.lane.b32.xlu0 %v1577, 65
        %v1587 = vpop.permute.xlu0 %1586
        %v1588 = vsel %vm1446, %v1579, %v1581
        %v1589 = vsel %vm1446, %v1581, %v1583
        %v1590 = vsel %vm1446, %v1583, %v1585
        %v1591 = vsel %vm1446, %v1585, %v1587
        %v1598 = vmul.f32 %v1550, %v1579
        %v1599 = vmul.f32 %v1551, %v1588
        %v1600 = vmul.f32 %v1552, %v1589
        %v1601 = vmul.f32 %v1553, %v1590
        %v1602 = vmul.f32 %v1554, %v1591
        %v1603 = vmul.f32 %v1555, %v1587
        %1610 = vrot.lane.b32.xlu0 %v1598, 63
        %v1611 = vpop.permute.xlu0 %1610
        %1612 = vrot.lane.b32.xlu0 %v1599, 63
        %v1613 = vpop.permute.xlu0 %1612
        %1614 = vrot.lane.b32.xlu0 %v1600, 63
        %v1615 = vpop.permute.xlu0 %1614
        %1616 = vrot.lane.b32.xlu0 %v1601, 63
        %v1617 = vpop.permute.xlu0 %1616
        %1618 = vrot.lane.b32.xlu0 %v1602, 63
        %v1619 = vpop.permute.xlu0 %1618
        %1620 = vrot.lane.b32.xlu0 %v1603, 63
        %v1621 = vpop.permute.xlu0 %1620
        %v1622 = vsel %vm1411, %v1611, %v1613
        %v1623 = vsel %vm1411, %v1613, %v1615
        %v1624 = vsel %vm1411, %v1615, %v1617
        %v1625 = vsel %vm1411, %v1617, %v1619
        %v1626 = vsel %vm1411, %v1619, %v1621
        %1632 = vst [vmem:[#allocation4 + $0x230] sm:$0xff] %v1622
        %1633 = vst [vmem:[#allocation4 + $0x238] sm:$0xff] %v1623
        %1634 = vst [vmem:[#allocation4 + $0x240] sm:$0xff] %v1624
        %1635 = vst [vmem:[#allocation4 + $0x248] sm:$0xff] %v1625
        %1636 = vst [vmem:[#allocation4 + $0x250] sm:$0xff] %v1626
        %v1637 = vld [vmem:[#allocation2 + $0x8] sm:$0xff]
        %v1638 = vld [vmem:[#allocation2 + $0x10] sm:$0xff]
        %v1639 = vld [vmem:[#allocation2 + $0x18] sm:$0xff]
        %v1640 = vld [vmem:[#allocation2 + $0x20] sm:$0xff]
        %v1641 = vld [vmem:[#allocation2 + $0x28] sm:$0xff]
        %v1642 = vld [vmem:[#allocation2 + $0x30] sm:$0xff]
        %v1643 = vld [vmem:[%s848] sm:$0x1f]
        %v1645 = vlaneseq
        %v1646 = vshrl.u32 %v1645, 7
        %v1647 = vsub.s32 0, %v1646
        %v1648 = vrot.slane %v1643, %v1647
        %v1649 = vlaneseq
        %v1650 = vshrl.u32 %v1649, 7
        %v1651 = vsub.s32 1, %v1650
        %v1652 = vrot.slane %v1643, %v1651
        %v1653 = vlaneseq
        %v1654 = vshrl.u32 %v1653, 7
        %v1655 = vsub.s32 2, %v1654
        %v1656 = vrot.slane %v1643, %v1655
        %v1657 = vlaneseq
        %v1658 = vshrl.u32 %v1657, 7
        %v1659 = vsub.s32 3, %v1658
        %v1660 = vrot.slane %v1643, %v1659
        %v1661 = vlaneseq
        %v1662 = vshrl.u32 %v1661, 7
        %v1663 = vsub.s32 4, %v1662
        %v1664 = vrot.slane %v1643, %v1663
        %1665 = vrot.lane.b32.xlu0 %v1648, 71
        %v1666 = vpop.permute.xlu0 %1665
        %1667 = vrot.lane.b32.xlu0 %v1652, 71
        %v1668 = vpop.permute.xlu0 %1667
        %1669 = vrot.lane.b32.xlu0 %v1656, 71
        %v1670 = vpop.permute.xlu0 %1669
        %1671 = vrot.lane.b32.xlu0 %v1660, 71
        %v1672 = vpop.permute.xlu0 %1671
        %1673 = vrot.lane.b32.xlu0 %v1664, 71
        %v1674 = vpop.permute.xlu0 %1673
        %v1675 = vsel %vm1357, %v1666, %v1668
        %v1676 = vsel %vm1357, %v1668, %v1670
        %v1677 = vsel %vm1357, %v1670, %v1672
        %v1678 = vsel %vm1357, %v1672, %v1674
        %v1685 = vmul.f32 %v1637, %v1666
        %v1686 = vmul.f32 %v1638, %v1675
        %v1687 = vmul.f32 %v1639, %v1676
        %v1688 = vmul.f32 %v1640, %v1677
        %v1689 = vmul.f32 %v1641, %v1678
        %v1690 = vmul.f32 %v1642, %v1674
        %1697 = vrot.lane.b32.xlu0 %v1685, 57
        %v1698 = vpop.permute.xlu0 %1697
        %1699 = vrot.lane.b32.xlu0 %v1686, 57
        %v1700 = vpop.permute.xlu0 %1699
        %1701 = vrot.lane.b32.xlu0 %v1687, 57
        %v1702 = vpop.permute.xlu0 %1701
        %1703 = vrot.lane.b32.xlu0 %v1688, 57
        %v1704 = vpop.permute.xlu0 %1703
        %1705 = vrot.lane.b32.xlu0 %v1689, 57
        %v1706 = vpop.permute.xlu0 %1705
        %1707 = vrot.lane.b32.xlu0 %v1690, 57
        %v1708 = vpop.permute.xlu0 %1707
        %v1709 = vsel %vm1322, %v1698, %v1700
        %v1710 = vsel %vm1322, %v1700, %v1702
        %v1711 = vsel %vm1322, %v1702, %v1704
        %v1712 = vsel %vm1322, %v1704, %v1706
        %v1713 = vsel %vm1322, %v1706, %v1708
        %1719 = vst [vmem:[#allocation4 + $0x258] sm:$0xff] %v1709
        %1720 = vst [vmem:[#allocation4 + $0x260] sm:$0xff] %v1710
        %1721 = vst [vmem:[#allocation4 + $0x268] sm:$0xff] %v1711
        %1722 = vst [vmem:[#allocation4 + $0x270] sm:$0xff] %v1712
        %1723 = vst [vmem:[#allocation4 + $0x278] sm:$0xff] %v1713
        %v1724 = vld [vmem:[#allocation2 + $0x8] sm:$0xff]
        %v1725 = vld [vmem:[#allocation2 + $0x10] sm:$0xff]
        %v1726 = vld [vmem:[#allocation2 + $0x18] sm:$0xff]
        %v1727 = vld [vmem:[#allocation2 + $0x20] sm:$0xff]
        %v1728 = vld [vmem:[#allocation2 + $0x28] sm:$0xff]
        %v1729 = vld [vmem:[#allocation2 + $0x30] sm:$0xff]
        %v1730 = vld [vmem:[%s936] sm:$0x1f]
        %v1732 = vlaneseq
        %v1733 = vshrl.u32 %v1732, 7
        %v1734 = vsub.s32 0, %v1733
        %v1735 = vrot.slane %v1730, %v1734
        %v1736 = vlaneseq
        %v1737 = vshrl.u32 %v1736, 7
        %v1738 = vsub.s32 1, %v1737
        %v1739 = vrot.slane %v1730, %v1738
        %v1740 = vlaneseq
        %v1741 = vshrl.u32 %v1740, 7
        %v1742 = vsub.s32 2, %v1741
        %v1743 = vrot.slane %v1730, %v1742
        %v1744 = vlaneseq
        %v1745 = vshrl.u32 %v1744, 7
        %v1746 = vsub.s32 3, %v1745
        %v1747 = vrot.slane %v1730, %v1746
        %v1748 = vlaneseq
        %v1749 = vshrl.u32 %v1748, 7
        %v1750 = vsub.s32 4, %v1749
        %v1751 = vrot.slane %v1730, %v1750
        %1752 = vrot.lane.b32.xlu0 %v1735, 72
        %v1753 = vpop.permute.xlu0 %1752
        %1754 = vrot.lane.b32.xlu0 %v1739, 72
        %v1755 = vpop.permute.xlu0 %1754
        %1756 = vrot.lane.b32.xlu0 %v1743, 72
        %v1757 = vpop.permute.xlu0 %1756
        %1758 = vrot.lane.b32.xlu0 %v1747, 72
        %v1759 = vpop.permute.xlu0 %1758
        %1760 = vrot.lane.b32.xlu0 %v1751, 72
        %v1761 = vpop.permute.xlu0 %1760
        %v1762 = vsel %vm1268, %v1753, %v1755
        %v1763 = vsel %vm1268, %v1755, %v1757
        %v1764 = vsel %vm1268, %v1757, %v1759
        %v1765 = vsel %vm1268, %v1759, %v1761
        %v1772 = vmul.f32 %v1724, %v1753
        %v1773 = vmul.f32 %v1725, %v1762
        %v1774 = vmul.f32 %v1726, %v1763
        %v1775 = vmul.f32 %v1727, %v1764
        %v1776 = vmul.f32 %v1728, %v1765
        %v1777 = vmul.f32 %v1729, %v1761
        %1784 = vrot.lane.b32.xlu0 %v1772, 56
        %v1785 = vpop.permute.xlu0 %1784
        %1786 = vrot.lane.b32.xlu0 %v1773, 56
        %v1787 = vpop.permute.xlu0 %1786
        %1788 = vrot.lane.b32.xlu0 %v1774, 56
        %v1789 = vpop.permute.xlu0 %1788
        %1790 = vrot.lane.b32.xlu0 %v1775, 56
        %v1791 = vpop.permute.xlu0 %1790
        %1792 = vrot.lane.b32.xlu0 %v1776, 56
        %v1793 = vpop.permute.xlu0 %1792
        %1794 = vrot.lane.b32.xlu0 %v1777, 56
        %v1795 = vpop.permute.xlu0 %1794
        %v1796 = vsel %vm1233, %v1785, %v1787
        %v1797 = vsel %vm1233, %v1787, %v1789
        %v1798 = vsel %vm1233, %v1789, %v1791
        %v1799 = vsel %vm1233, %v1791, %v1793
        %v1800 = vsel %vm1233, %v1793, %v1795
        %1806 = vst [vmem:[#allocation4 + $0x280] sm:$0xff] %v1796
        %1807 = vst [vmem:[#allocation4 + $0x288] sm:$0xff] %v1797
        %1808 = vst [vmem:[#allocation4 + $0x290] sm:$0xff] %v1798
        %1809 = vst [vmem:[#allocation4 + $0x298] sm:$0xff] %v1799
        %1810 = vst [vmem:[#allocation4 + $0x2a0] sm:$0xff] %v1800
        %v1811 = vld [vmem:[#allocation2 + $0x8] sm:$0xff]
        %v1812 = vld [vmem:[#allocation2 + $0x10] sm:$0xff]
        %v1813 = vld [vmem:[#allocation2 + $0x18] sm:$0xff]
        %v1814 = vld [vmem:[#allocation2 + $0x20] sm:$0xff]
        %v1815 = vld [vmem:[#allocation2 + $0x28] sm:$0xff]
        %v1816 = vld [vmem:[#allocation2 + $0x30] sm:$0xff]
        %v1817 = vld [vmem:[%s1024] sm:$0x1f]
        %v1819 = vlaneseq
        %v1820 = vshrl.u32 %v1819, 7
        %v1821 = vsub.s32 0, %v1820
        %v1822 = vrot.slane %v1817, %v1821
        %v1823 = vlaneseq
        %v1824 = vshrl.u32 %v1823, 7
        %v1825 = vsub.s32 1, %v1824
        %v1826 = vrot.slane %v1817, %v1825
        %v1827 = vlaneseq
        %v1828 = vshrl.u32 %v1827, 7
        %v1829 = vsub.s32 2, %v1828
        %v1830 = vrot.slane %v1817, %v1829
        %v1831 = vlaneseq
        %v1832 = vshrl.u32 %v1831, 7
        %v1833 = vsub.s32 3, %v1832
        %v1834 = vrot.slane %v1817, %v1833
        %v1835 = vlaneseq
        %v1836 = vshrl.u32 %v1835, 7
        %v1837 = vsub.s32 4, %v1836
        %v1838 = vrot.slane %v1817, %v1837
        %1839 = vrot.lane.b32.xlu0 %v1822, 73
        %v1840 = vpop.permute.xlu0 %1839
        %1841 = vrot.lane.b32.xlu0 %v1826, 73
        %v1842 = vpop.permute.xlu0 %1841
        %1843 = vrot.lane.b32.xlu0 %v1830, 73
        %v1844 = vpop.permute.xlu0 %1843
        %1845 = vrot.lane.b32.xlu0 %v1834, 73
        %v1846 = vpop.permute.xlu0 %1845
        %1847 = vrot.lane.b32.xlu0 %v1838, 73
        %v1848 = vpop.permute.xlu0 %1847
        %v1849 = vsel %vm1179, %v1840, %v1842
        %v1850 = vsel %vm1179, %v1842, %v1844
        %v1851 = vsel %vm1179, %v1844, %v1846
        %v1852 = vsel %vm1179, %v1846, %v1848
        %v1859 = vmul.f32 %v1811, %v1840
        %v1860 = vmul.f32 %v1812, %v1849
        %v1861 = vmul.f32 %v1813, %v1850
        %v1862 = vmul.f32 %v1814, %v1851
        %v1863 = vmul.f32 %v1815, %v1852
        %v1864 = vmul.f32 %v1816, %v1848
        %1871 = vrot.lane.b32.xlu0 %v1859, 55
        %v1872 = vpop.permute.xlu0 %1871
        %1873 = vrot.lane.b32.xlu0 %v1860, 55
        %v1874 = vpop.permute.xlu0 %1873
        %1875 = vrot.lane.b32.xlu0 %v1861, 55
        %v1876 = vpop.permute.xlu0 %1875
        %1877 = vrot.lane.b32.xlu0 %v1862, 55
        %v1878 = vpop.permute.xlu0 %1877
        %1879 = vrot.lane.b32.xlu0 %v1863, 55
        %v1880 = vpop.permute.xlu0 %1879
        %1881 = vrot.lane.b32.xlu0 %v1864, 55
        %v1882 = vpop.permute.xlu0 %1881
        %v1883 = vsel %vm1144, %v1872, %v1874
        %v1884 = vsel %vm1144, %v1874, %v1876
        %v1885 = vsel %vm1144, %v1876, %v1878
        %v1886 = vsel %vm1144, %v1878, %v1880
        %v1887 = vsel %vm1144, %v1880, %v1882
        %1893 = vst [vmem:[#allocation4 + $0x2a8] sm:$0xff] %v1883
        %1894 = vst [vmem:[#allocation4 + $0x2b0] sm:$0xff] %v1884
        %1895 = vst [vmem:[#allocation4 + $0x2b8] sm:$0xff] %v1885
        %1896 = vst [vmem:[#allocation4 + $0x2c0] sm:$0xff] %v1886
        %1897 = vst [vmem:[#allocation4 + $0x2c8] sm:$0xff] %v1887
        %v1898 = vld [vmem:[#allocation2 + $0x8] sm:$0xff]
        %v1899 = vld [vmem:[#allocation2 + $0x10] sm:$0xff]
        %v1900 = vld [vmem:[#allocation2 + $0x18] sm:$0xff]
        %v1901 = vld [vmem:[#allocation2 + $0x20] sm:$0xff]
        %v1902 = vld [vmem:[#allocation2 + $0x28] sm:$0xff]
        %v1903 = vld [vmem:[#allocation2 + $0x30] sm:$0xff]
        %v1904 = vld [vmem:[#allocation9] sm:$0x1f]
        %v1906 = vlaneseq
        %v1907 = vshrl.u32 %v1906, 7
        %v1908 = vsub.s32 0, %v1907
        %v1909 = vrot.slane %v1904, %v1908
        %v1910 = vlaneseq
        %v1911 = vshrl.u32 %v1910, 7
        %v1912 = vsub.s32 1, %v1911
        %v1913 = vrot.slane %v1904, %v1912
        %v1914 = vlaneseq
        %v1915 = vshrl.u32 %v1914, 7
        %v1916 = vsub.s32 2, %v1915
        %v1917 = vrot.slane %v1904, %v1916
        %v1918 = vlaneseq
        %v1919 = vshrl.u32 %v1918, 7
        %v1920 = vsub.s32 3, %v1919
        %v1921 = vrot.slane %v1904, %v1920
        %v1922 = vlaneseq
        %v1923 = vshrl.u32 %v1922, 7
        %v1924 = vsub.s32 4, %v1923
        %v1925 = vrot.slane %v1904, %v1924
        %1926 = vrot.lane.b32.xlu0 %v1909, 119
        %v1927 = vpop.permute.xlu0 %1926
        %1928 = vrot.lane.b32.xlu0 %v1913, 119
        %v1929 = vpop.permute.xlu0 %1928
        %1930 = vrot.lane.b32.xlu0 %v1917, 119
        %v1931 = vpop.permute.xlu0 %1930
        %1932 = vrot.lane.b32.xlu0 %v1921, 119
        %v1933 = vpop.permute.xlu0 %1932
        %1934 = vrot.lane.b32.xlu0 %v1925, 119
        %v1935 = vpop.permute.xlu0 %1934
        %v1936 = vsel %vm390, %v1927, %v1929
        %v1937 = vsel %vm390, %v1929, %v1931
        %v1938 = vsel %vm390, %v1931, %v1933
        %v1939 = vsel %vm390, %v1933, %v1935
        %v1946 = vmul.f32 %v1898, %v1927
        %v1947 = vmul.f32 %v1899, %v1936
        %v1948 = vmul.f32 %v1900, %v1937
        %v1949 = vmul.f32 %v1901, %v1938
        %v1950 = vmul.f32 %v1902, %v1939
        %v1951 = vmul.f32 %v1903, %v1935
        %1958 = vrot.lane.b32.xlu0 %v1946, 9
        %v1959 = vpop.permute.xlu0 %1958
        %1960 = vrot.lane.b32.xlu0 %v1947, 9
        %v1961 = vpop.permute.xlu0 %1960
        %1962 = vrot.lane.b32.xlu0 %v1948, 9
        %v1963 = vpop.permute.xlu0 %1962
        %1964 = vrot.lane.b32.xlu0 %v1949, 9
        %v1965 = vpop.permute.xlu0 %1964
        %1966 = vrot.lane.b32.xlu0 %v1950, 9
        %v1967 = vpop.permute.xlu0 %1966
        %1968 = vrot.lane.b32.xlu0 %v1951, 9
        %v1969 = vpop.permute.xlu0 %1968
        %v1970 = vsel %vm425, %v1959, %v1961
        %v1971 = vsel %vm425, %v1961, %v1963
        %v1972 = vsel %vm425, %v1963, %v1965
        %v1973 = vsel %vm425, %v1965, %v1967
        %v1974 = vsel %vm425, %v1967, %v1969
        %1980 = vst [vmem:[#allocation4 + $0x2d0] sm:$0xff] %v1970
        %1981 = vst [vmem:[#allocation4 + $0x2d8] sm:$0xff] %v1971
        %1982 = vst [vmem:[#allocation4 + $0x2e0] sm:$0xff] %v1972
        %1983 = vst [vmem:[#allocation4 + $0x2e8] sm:$0xff] %v1973
        %1984 = vst [vmem:[#allocation4 + $0x2f0] sm:$0xff] %v1974
        %v1985 = vld [vmem:[#allocation2 + $0x8] sm:$0xff]
        %v1986 = vld [vmem:[#allocation2 + $0x10] sm:$0xff]
        %v1987 = vld [vmem:[#allocation2 + $0x18] sm:$0xff]
        %v1988 = vld [vmem:[#allocation2 + $0x20] sm:$0xff]
        %v1989 = vld [vmem:[#allocation2 + $0x28] sm:$0xff]
        %v1990 = vld [vmem:[#allocation2 + $0x30] sm:$0xff]
        %v1991 = vld [vmem:[%s447] sm:$0x1f]
        %v1993 = vlaneseq
        %v1994 = vshrl.u32 %v1993, 7
        %v1995 = vsub.s32 0, %v1994
        %v1996 = vrot.slane %v1991, %v1995
        %v1997 = vlaneseq
        %v1998 = vshrl.u32 %v1997, 7
        %v1999 = vsub.s32 1, %v1998
        %v2000 = vrot.slane %v1991, %v1999
        %v2001 = vlaneseq
        %v2002 = vshrl.u32 %v2001, 7
        %v2003 = vsub.s32 2, %v2002
        %v2004 = vrot.slane %v1991, %v2003
        %v2005 = vlaneseq
        %v2006 = vshrl.u32 %v2005, 7
        %v2007 = vsub.s32 3, %v2006
        %v2008 = vrot.slane %v1991, %v2007
        %v2009 = vlaneseq
        %v2010 = vshrl.u32 %v2009, 7
        %v2011 = vsub.s32 4, %v2010
        %v2012 = vrot.slane %v1991, %v2011
        %2013 = vrot.lane.b32.xlu0 %v1996, 120
        %v2014 = vpop.permute.xlu0 %2013
        %2015 = vrot.lane.b32.xlu0 %v2000, 120
        %v2016 = vpop.permute.xlu0 %2015
        %2017 = vrot.lane.b32.xlu0 %v2004, 120
        %v2018 = vpop.permute.xlu0 %2017
        %2019 = vrot.lane.b32.xlu0 %v2008, 120
        %v2020 = vpop.permute.xlu0 %2019
        %2021 = vrot.lane.b32.xlu0 %v2012, 120
        %v2022 = vpop.permute.xlu0 %2021
        %v2023 = vsel %vm480, %v2014, %v2016
        %v2024 = vsel %vm480, %v2016, %v2018
        %v2025 = vsel %vm480, %v2018, %v2020
        %v2026 = vsel %vm480, %v2020, %v2022
        %v2033 = vmul.f32 %v1985, %v2014
        %v2034 = vmul.f32 %v1986, %v2023
        %v2035 = vmul.f32 %v1987, %v2024
        %v2036 = vmul.f32 %v1988, %v2025
        %v2037 = vmul.f32 %v1989, %v2026
        %v2038 = vmul.f32 %v1990, %v2022
        %2045 = vrot.lane.b32.xlu0 %v2033, 8
        %v2046 = vpop.permute.xlu0 %2045
        %2047 = vrot.lane.b32.xlu0 %v2034, 8
        %v2048 = vpop.permute.xlu0 %2047
        %2049 = vrot.lane.b32.xlu0 %v2035, 8
        %v2050 = vpop.permute.xlu0 %2049
        %2051 = vrot.lane.b32.xlu0 %v2036, 8
        %v2052 = vpop.permute.xlu0 %2051
        %2053 = vrot.lane.b32.xlu0 %v2037, 8
        %v2054 = vpop.permute.xlu0 %2053
        %2055 = vrot.lane.b32.xlu0 %v2038, 8
        %v2056 = vpop.permute.xlu0 %2055
        %v2057 = vsel %vm515, %v2046, %v2048
        %v2058 = vsel %vm515, %v2048, %v2050
        %v2059 = vsel %vm515, %v2050, %v2052
        %v2060 = vsel %vm515, %v2052, %v2054
        %v2061 = vsel %vm515, %v2054, %v2056
        %2067 = vst [vmem:[#allocation4 + $0x2f8] sm:$0xff] %v2057
        %2068 = vst [vmem:[#allocation4 + $0x300] sm:$0xff] %v2058
        %2069 = vst [vmem:[#allocation4 + $0x308] sm:$0xff] %v2059
        %2070 = vst [vmem:[#allocation4 + $0x310] sm:$0xff] %v2060
        %2071 = vst [vmem:[#allocation4 + $0x318] sm:$0xff] %v2061
        %v2072 = vld [vmem:[#allocation2 + $0x8] sm:$0xff]
        %v2073 = vld [vmem:[#allocation2 + $0x10] sm:$0xff]
        %v2074 = vld [vmem:[#allocation2 + $0x18] sm:$0xff]
        %v2075 = vld [vmem:[#allocation2 + $0x20] sm:$0xff]
        %v2076 = vld [vmem:[#allocation2 + $0x28] sm:$0xff]
        %v2077 = vld [vmem:[#allocation2 + $0x30] sm:$0xff]
        %v2078 = vld [vmem:[%s537] sm:$0x1f]
        %v2080 = vlaneseq
        %v2081 = vshrl.u32 %v2080, 7
        %v2082 = vsub.s32 0, %v2081
        %v2083 = vrot.slane %v2078, %v2082
        %v2084 = vlaneseq
        %v2085 = vshrl.u32 %v2084, 7
        %v2086 = vsub.s32 1, %v2085
        %v2087 = vrot.slane %v2078, %v2086
        %v2088 = vlaneseq
        %v2089 = vshrl.u32 %v2088, 7
        %v2090 = vsub.s32 2, %v2089
        %v2091 = vrot.slane %v2078, %v2090
        %v2092 = vlaneseq
        %v2093 = vshrl.u32 %v2092, 7
        %v2094 = vsub.s32 3, %v2093
        %v2095 = vrot.slane %v2078, %v2094
        %v2096 = vlaneseq
        %v2097 = vshrl.u32 %v2096, 7
        %v2098 = vsub.s32 4, %v2097
        %v2099 = vrot.slane %v2078, %v2098
        %2100 = vrot.lane.b32.xlu0 %v2083, 121
        %v2101 = vpop.permute.xlu0 %2100
        %2102 = vrot.lane.b32.xlu0 %v2087, 121
        %v2103 = vpop.permute.xlu0 %2102
        %2104 = vrot.lane.b32.xlu0 %v2091, 121
        %v2105 = vpop.permute.xlu0 %2104
        %2106 = vrot.lane.b32.xlu0 %v2095, 121
        %v2107 = vpop.permute.xlu0 %2106
        %2108 = vrot.lane.b32.xlu0 %v2099, 121
        %v2109 = vpop.permute.xlu0 %2108
        %v2110 = vsel %vm570, %v2101, %v2103
        %v2111 = vsel %vm570, %v2103, %v2105
        %v2112 = vsel %vm570, %v2105, %v2107
        %v2113 = vsel %vm570, %v2107, %v2109
        %v2120 = vmul.f32 %v2072, %v2101
        %v2121 = vmul.f32 %v2073, %v2110
        %v2122 = vmul.f32 %v2074, %v2111
        %v2123 = vmul.f32 %v2075, %v2112
        %v2124 = vmul.f32 %v2076, %v2113
        %v2125 = vmul.f32 %v2077, %v2109
        %2132 = vrot.lane.b32.xlu0 %v2120, 7
        %v2133 = vpop.permute.xlu0 %2132
        %2134 = vrot.lane.b32.xlu0 %v2121, 7
        %v2135 = vpop.permute.xlu0 %2134
        %2136 = vrot.lane.b32.xlu0 %v2122, 7
        %v2137 = vpop.permute.xlu0 %2136
        %2138 = vrot.lane.b32.xlu0 %v2123, 7
        %v2139 = vpop.permute.xlu0 %2138
        %2140 = vrot.lane.b32.xlu0 %v2124, 7
        %v2141 = vpop.permute.xlu0 %2140
        %2142 = vrot.lane.b32.xlu0 %v2125, 7
        %v2143 = vpop.permute.xlu0 %2142
        %v2144 = vsel %vm605, %v2133, %v2135
        %v2145 = vsel %vm605, %v2135, %v2137
        %v2146 = vsel %vm605, %v2137, %v2139
        %v2147 = vsel %vm605, %v2139, %v2141
        %v2148 = vsel %vm605, %v2141, %v2143
        %2154 = vst [vmem:[#allocation4 + $0x320] sm:$0xff] %v2144
        %2155 = vst [vmem:[#allocation4 + $0x328] sm:$0xff] %v2145
        %2156 = vst [vmem:[#allocation4 + $0x330] sm:$0xff] %v2146
        %2157 = vst [vmem:[#allocation4 + $0x338] sm:$0xff] %v2147
        %2158 = vst [vmem:[#allocation4 + $0x340] sm:$0xff] %v2148
        %v2159 = vld [vmem:[#allocation2 + $0x8] sm:$0xff]
        %v2160 = vld [vmem:[#allocation2 + $0x10] sm:$0xff]
        %v2161 = vld [vmem:[#allocation2 + $0x18] sm:$0xff]
        %v2162 = vld [vmem:[#allocation2 + $0x20] sm:$0xff]
        %v2163 = vld [vmem:[#allocation2 + $0x28] sm:$0xff]
        %v2164 = vld [vmem:[#allocation2 + $0x30] sm:$0xff]
        %v2165 = vld [vmem:[%s627] sm:$0x1f]
        %v2167 = vlaneseq
        %v2168 = vshrl.u32 %v2167, 7
        %v2169 = vsub.s32 0, %v2168
        %v2170 = vrot.slane %v2165, %v2169
        %v2171 = vlaneseq
        %v2172 = vshrl.u32 %v2171, 7
        %v2173 = vsub.s32 1, %v2172
        %v2174 = vrot.slane %v2165, %v2173
        %v2175 = vlaneseq
        %v2176 = vshrl.u32 %v2175, 7
        %v2177 = vsub.s32 2, %v2176
        %v2178 = vrot.slane %v2165, %v2177
        %v2179 = vlaneseq
        %v2180 = vshrl.u32 %v2179, 7
        %v2181 = vsub.s32 3, %v2180
        %v2182 = vrot.slane %v2165, %v2181
        %v2183 = vlaneseq
        %v2184 = vshrl.u32 %v2183, 7
        %v2185 = vsub.s32 4, %v2184
        %v2186 = vrot.slane %v2165, %v2185
        %2187 = vrot.lane.b32.xlu0 %v2170, 127
        %v2188 = vpop.permute.xlu0 %2187
        %2189 = vrot.lane.b32.xlu0 %v2174, 127
        %v2190 = vpop.permute.xlu0 %2189
        %2191 = vrot.lane.b32.xlu0 %v2178, 127
        %v2192 = vpop.permute.xlu0 %2191
        %2193 = vrot.lane.b32.xlu0 %v2182, 127
        %v2194 = vpop.permute.xlu0 %2193
        %2195 = vrot.lane.b32.xlu0 %v2186, 127
        %v2196 = vpop.permute.xlu0 %2195
        %v2197 = vsel %vm660, %v2188, %v2190
        %v2198 = vsel %vm660, %v2190, %v2192
        %v2199 = vsel %vm660, %v2192, %v2194
        %v2200 = vsel %vm660, %v2194, %v2196
        %v2207 = vmul.f32 %v2159, %v2188
        %v2208 = vmul.f32 %v2160, %v2197
        %v2209 = vmul.f32 %v2161, %v2198
        %v2210 = vmul.f32 %v2162, %v2199
        %v2211 = vmul.f32 %v2163, %v2200
        %v2212 = vmul.f32 %v2164, %v2196
        %2219 = vrot.lane.b32.xlu0 %v2207, 1
        %v2220 = vpop.permute.xlu0 %2219
        %2221 = vrot.lane.b32.xlu0 %v2208, 1
        %v2222 = vpop.permute.xlu0 %2221
        %2223 = vrot.lane.b32.xlu0 %v2209, 1
        %v2224 = vpop.permute.xlu0 %2223
        %2225 = vrot.lane.b32.xlu0 %v2210, 1
        %v2226 = vpop.permute.xlu0 %2225
        %2227 = vrot.lane.b32.xlu0 %v2211, 1
        %v2228 = vpop.permute.xlu0 %2227
        %2229 = vrot.lane.b32.xlu0 %v2212, 1
        %v2230 = vpop.permute.xlu0 %2229
        %v2231 = vsel %vm695, %v2220, %v2222
        %v2232 = vsel %vm695, %v2222, %v2224
        %v2233 = vsel %vm695, %v2224, %v2226
        %v2234 = vsel %vm695, %v2226, %v2228
        %v2235 = vsel %vm695, %v2228, %v2230
        %2241 = vst [vmem:[#allocation4 + $0x348] sm:$0xff] %v2231
        %2242 = vst [vmem:[#allocation4 + $0x350] sm:$0xff] %v2232
        %2243 = vst [vmem:[#allocation4 + $0x358] sm:$0xff] %v2233
        %2244 = vst [vmem:[#allocation4 + $0x360] sm:$0xff] %v2234
        %2245 = vst [vmem:[#allocation4 + $0x368] sm:$0xff] %v2235
        %v2246 = vld [vmem:[#allocation2 + $0x10] sm:$0xff]
        %v2247 = vld [vmem:[#allocation2 + $0x18] sm:$0xff]
        %v2248 = vld [vmem:[#allocation2 + $0x20] sm:$0xff]
        %v2249 = vld [vmem:[#allocation2 + $0x28] sm:$0xff]
        %v2250 = vld [vmem:[#allocation2 + $0x30] sm:$0xff]
        %v2251 = vld [vmem:[%s716] sm:$0x1f]
        %v2253 = vlaneseq
        %v2254 = vshrl.u32 %v2253, 7
        %v2255 = vsub.s32 0, %v2254
        %v2256 = vrot.slane %v2251, %v2255
        %v2257 = vlaneseq
        %v2258 = vshrl.u32 %v2257, 7
        %v2259 = vsub.s32 1, %v2258
        %v2260 = vrot.slane %v2251, %v2259
        %v2261 = vlaneseq
        %v2262 = vshrl.u32 %v2261, 7
        %v2263 = vsub.s32 2, %v2262
        %v2264 = vrot.slane %v2251, %v2263
        %v2265 = vlaneseq
        %v2266 = vshrl.u32 %v2265, 7
        %v2267 = vsub.s32 3, %v2266
        %v2268 = vrot.slane %v2251, %v2267
        %v2269 = vlaneseq
        %v2270 = vshrl.u32 %v2269, 7
        %v2271 = vsub.s32 4, %v2270
        %v2272 = vrot.slane %v2251, %v2271
        %v2278 = vmul.f32 %v2246, %v2256
        %v2279 = vmul.f32 %v2247, %v2260
        %v2280 = vmul.f32 %v2248, %v2264
        %v2281 = vmul.f32 %v2249, %v2268
        %v2282 = vmul.f32 %v2250, %v2272
        %2283 = vst [vmem:[#allocation4 + $0x370] sm:$0xff] %v2278
        %2284 = vst [vmem:[#allocation4 + $0x378] sm:$0xff] %v2279
        %2285 = vst [vmem:[#allocation4 + $0x380] sm:$0xff] %v2280
        %2286 = vst [vmem:[#allocation4 + $0x388] sm:$0xff] %v2281
        %2287 = vst [vmem:[#allocation4 + $0x390] sm:$0xff] %v2282
        %v2288 = vld [vmem:[#allocation2 + $0x10] sm:$0xff]
        %v2289 = vld [vmem:[#allocation2 + $0x18] sm:$0xff]
        %v2290 = vld [vmem:[#allocation2 + $0x20] sm:$0xff]
        %v2291 = vld [vmem:[#allocation2 + $0x28] sm:$0xff]
        %v2292 = vld [vmem:[#allocation2 + $0x30] sm:$0xff]
        %v2293 = vld [vmem:[#allocation2 + $0x38] sm:$0xff]
        %v2294 = vld [vmem:[%s760] sm:$0x1f]
        %v2296 = vlaneseq
        %v2297 = vshrl.u32 %v2296, 7
        %v2298 = vsub.s32 0, %v2297
        %v2299 = vrot.slane %v2294, %v2298
        %v2300 = vlaneseq
        %v2301 = vshrl.u32 %v2300, 7
        %v2302 = vsub.s32 1, %v2301
        %v2303 = vrot.slane %v2294, %v2302
        %v2304 = vlaneseq
        %v2305 = vshrl.u32 %v2304, 7
        %v2306 = vsub.s32 2, %v2305
        %v2307 = vrot.slane %v2294, %v2306
        %v2308 = vlaneseq
        %v2309 = vshrl.u32 %v2308, 7
        %v2310 = vsub.s32 3, %v2309
        %v2311 = vrot.slane %v2294, %v2310
        %v2312 = vlaneseq
        %v2313 = vshrl.u32 %v2312, 7
        %v2314 = vsub.s32 4, %v2313
        %v2315 = vrot.slane %v2294, %v2314
        %2316 = vrot.lane.b32.xlu0 %v2299, 1
        %v2317 = vpop.permute.xlu0 %2316
        %2318 = vrot.lane.b32.xlu0 %v2303, 1
        %v2319 = vpop.permute.xlu0 %2318
        %2320 = vrot.lane.b32.xlu0 %v2307, 1
        %v2321 = vpop.permute.xlu0 %2320
        %2322 = vrot.lane.b32.xlu0 %v2311, 1
        %v2323 = vpop.permute.xlu0 %2322
        %2324 = vrot.lane.b32.xlu0 %v2315, 1
        %v2325 = vpop.permute.xlu0 %2324
        %v2326 = vsel %vm695, %v2317, %v2319
        %v2327 = vsel %vm695, %v2319, %v2321
        %v2328 = vsel %vm695, %v2321, %v2323
        %v2329 = vsel %vm695, %v2323, %v2325
        %v2336 = vmul.f32 %v2288, %v2317
        %v2337 = vmul.f32 %v2289, %v2326
        %v2338 = vmul.f32 %v2290, %v2327
        %v2339 = vmul.f32 %v2291, %v2328
        %v2340 = vmul.f32 %v2292, %v2329
        %v2341 = vmul.f32 %v2293, %v2325
        %2348 = vrot.lane.b32.xlu0 %v2336, 127
        %v2349 = vpop.permute.xlu0 %2348
        %2350 = vrot.lane.b32.xlu0 %v2337, 127
        %v2351 = vpop.permute.xlu0 %2350
        %2352 = vrot.lane.b32.xlu0 %v2338, 127
        %v2353 = vpop.permute.xlu0 %2352
        %2354 = vrot.lane.b32.xlu0 %v2339, 127
        %v2355 = vpop.permute.xlu0 %2354
        %2356 = vrot.lane.b32.xlu0 %v2340, 127
        %v2357 = vpop.permute.xlu0 %2356
        %2358 = vrot.lane.b32.xlu0 %v2341, 127
        %v2359 = vpop.permute.xlu0 %2358
        %v2360 = vsel %vm660, %v2349, %v2351
        %v2361 = vsel %vm660, %v2351, %v2353
        %v2362 = vsel %vm660, %v2353, %v2355
        %v2363 = vsel %vm660, %v2355, %v2357
        %v2364 = vsel %vm660, %v2357, %v2359
        %2370 = vst [vmem:[#allocation4 + $0x398] sm:$0xff] %v2360
        %2371 = vst [vmem:[#allocation4 + $0x3a0] sm:$0xff] %v2361
        %2372 = vst [vmem:[#allocation4 + $0x3a8] sm:$0xff] %v2362
        %2373 = vst [vmem:[#allocation4 + $0x3b0] sm:$0xff] %v2363
        %2374 = vst [vmem:[#allocation4 + $0x3b8] sm:$0xff] %v2364
        %v2375 = vld [vmem:[#allocation2 + $0x10] sm:$0xff]
        %v2376 = vld [vmem:[#allocation2 + $0x18] sm:$0xff]
        %v2377 = vld [vmem:[#allocation2 + $0x20] sm:$0xff]
        %v2378 = vld [vmem:[#allocation2 + $0x28] sm:$0xff]
        %v2379 = vld [vmem:[#allocation2 + $0x30] sm:$0xff]
        %v2380 = vld [vmem:[#allocation2 + $0x38] sm:$0xff]
        %v2381 = vld [vmem:[%s848] sm:$0x1f]
        %v2383 = vlaneseq
        %v2384 = vshrl.u32 %v2383, 7
        %v2385 = vsub.s32 0, %v2384
        %v2386 = vrot.slane %v2381, %v2385
        %v2387 = vlaneseq
        %v2388 = vshrl.u32 %v2387, 7
        %v2389 = vsub.s32 1, %v2388
        %v2390 = vrot.slane %v2381, %v2389
        %v2391 = vlaneseq
        %v2392 = vshrl.u32 %v2391, 7
        %v2393 = vsub.s32 2, %v2392
        %v2394 = vrot.slane %v2381, %v2393
        %v2395 = vlaneseq
        %v2396 = vshrl.u32 %v2395, 7
        %v2397 = vsub.s32 3, %v2396
        %v2398 = vrot.slane %v2381, %v2397
        %v2399 = vlaneseq
        %v2400 = vshrl.u32 %v2399, 7
        %v2401 = vsub.s32 4, %v2400
        %v2402 = vrot.slane %v2381, %v2401
        %2403 = vrot.lane.b32.xlu0 %v2386, 7
        %v2404 = vpop.permute.xlu0 %2403
        %2405 = vrot.lane.b32.xlu0 %v2390, 7
        %v2406 = vpop.permute.xlu0 %2405
        %2407 = vrot.lane.b32.xlu0 %v2394, 7
        %v2408 = vpop.permute.xlu0 %2407
        %2409 = vrot.lane.b32.xlu0 %v2398, 7
        %v2410 = vpop.permute.xlu0 %2409
        %2411 = vrot.lane.b32.xlu0 %v2402, 7
        %v2412 = vpop.permute.xlu0 %2411
        %v2413 = vsel %vm605, %v2404, %v2406
        %v2414 = vsel %vm605, %v2406, %v2408
        %v2415 = vsel %vm605, %v2408, %v2410
        %v2416 = vsel %vm605, %v2410, %v2412
        %v2423 = vmul.f32 %v2375, %v2404
        %v2424 = vmul.f32 %v2376, %v2413
        %v2425 = vmul.f32 %v2377, %v2414
        %v2426 = vmul.f32 %v2378, %v2415
        %v2427 = vmul.f32 %v2379, %v2416
        %v2428 = vmul.f32 %v2380, %v2412
        %2435 = vrot.lane.b32.xlu0 %v2423, 121
        %v2436 = vpop.permute.xlu0 %2435
        %2437 = vrot.lane.b32.xlu0 %v2424, 121
        %v2438 = vpop.permute.xlu0 %2437
        %2439 = vrot.lane.b32.xlu0 %v2425, 121
        %v2440 = vpop.permute.xlu0 %2439
        %2441 = vrot.lane.b32.xlu0 %v2426, 121
        %v2442 = vpop.permute.xlu0 %2441
        %2443 = vrot.lane.b32.xlu0 %v2427, 121
        %v2444 = vpop.permute.xlu0 %2443
        %2445 = vrot.lane.b32.xlu0 %v2428, 121
        %v2446 = vpop.permute.xlu0 %2445
        %v2447 = vsel %vm570, %v2436, %v2438
        %v2448 = vsel %vm570, %v2438, %v2440
        %v2449 = vsel %vm570, %v2440, %v2442
        %v2450 = vsel %vm570, %v2442, %v2444
        %v2451 = vsel %vm570, %v2444, %v2446
        %2457 = vst [vmem:[#allocation4 + $0x3c0] sm:$0xff] %v2447
        %2458 = vst [vmem:[#allocation4 + $0x3c8] sm:$0xff] %v2448
        %2459 = vst [vmem:[#allocation4 + $0x3d0] sm:$0xff] %v2449
        %2460 = vst [vmem:[#allocation4 + $0x3d8] sm:$0xff] %v2450
        %2461 = vst [vmem:[#allocation4 + $0x3e0] sm:$0xff] %v2451
        %v2462 = vld [vmem:[#allocation2 + $0x10] sm:$0xff]
        %v2463 = vld [vmem:[#allocation2 + $0x18] sm:$0xff]
        %v2464 = vld [vmem:[#allocation2 + $0x20] sm:$0xff]
        %v2465 = vld [vmem:[#allocation2 + $0x28] sm:$0xff]
        %v2466 = vld [vmem:[#allocation2 + $0x30] sm:$0xff]
        %v2467 = vld [vmem:[#allocation2 + $0x38] sm:$0xff]
        %v2468 = vld [vmem:[%s936] sm:$0x1f]
        %v2470 = vlaneseq
        %v2471 = vshrl.u32 %v2470, 7
        %v2472 = vsub.s32 0, %v2471
        %v2473 = vrot.slane %v2468, %v2472
        %v2474 = vlaneseq
        %v2475 = vshrl.u32 %v2474, 7
        %v2476 = vsub.s32 1, %v2475
        %v2477 = vrot.slane %v2468, %v2476
        %v2478 = vlaneseq
        %v2479 = vshrl.u32 %v2478, 7
        %v2480 = vsub.s32 2, %v2479
        %v2481 = vrot.slane %v2468, %v2480
        %v2482 = vlaneseq
        %v2483 = vshrl.u32 %v2482, 7
        %v2484 = vsub.s32 3, %v2483
        %v2485 = vrot.slane %v2468, %v2484
        %v2486 = vlaneseq
        %v2487 = vshrl.u32 %v2486, 7
        %v2488 = vsub.s32 4, %v2487
        %v2489 = vrot.slane %v2468, %v2488
        %2490 = vrot.lane.b32.xlu0 %v2473, 8
        %v2491 = vpop.permute.xlu0 %2490
        %2492 = vrot.lane.b32.xlu0 %v2477, 8
        %v2493 = vpop.permute.xlu0 %2492
        %2494 = vrot.lane.b32.xlu0 %v2481, 8
        %v2495 = vpop.permute.xlu0 %2494
        %2496 = vrot.lane.b32.xlu0 %v2485, 8
        %v2497 = vpop.permute.xlu0 %2496
        %2498 = vrot.lane.b32.xlu0 %v2489, 8
        %v2499 = vpop.permute.xlu0 %2498
        %v2500 = vsel %vm515, %v2491, %v2493
        %v2501 = vsel %vm515, %v2493, %v2495
        %v2502 = vsel %vm515, %v2495, %v2497
        %v2503 = vsel %vm515, %v2497, %v2499
        %v2510 = vmul.f32 %v2462, %v2491
        %v2511 = vmul.f32 %v2463, %v2500
        %v2512 = vmul.f32 %v2464, %v2501
        %v2513 = vmul.f32 %v2465, %v2502
        %v2514 = vmul.f32 %v2466, %v2503
        %v2515 = vmul.f32 %v2467, %v2499
        %2522 = vrot.lane.b32.xlu0 %v2510, 120
        %v2523 = vpop.permute.xlu0 %2522
        %2524 = vrot.lane.b32.xlu0 %v2511, 120
        %v2525 = vpop.permute.xlu0 %2524
        %2526 = vrot.lane.b32.xlu0 %v2512, 120
        %v2527 = vpop.permute.xlu0 %2526
        %2528 = vrot.lane.b32.xlu0 %v2513, 120
        %v2529 = vpop.permute.xlu0 %2528
        %2530 = vrot.lane.b32.xlu0 %v2514, 120
        %v2531 = vpop.permute.xlu0 %2530
        %2532 = vrot.lane.b32.xlu0 %v2515, 120
        %v2533 = vpop.permute.xlu0 %2532
        %v2534 = vsel %vm480, %v2523, %v2525
        %v2535 = vsel %vm480, %v2525, %v2527
        %v2536 = vsel %vm480, %v2527, %v2529
        %v2537 = vsel %vm480, %v2529, %v2531
        %v2538 = vsel %vm480, %v2531, %v2533
        %2544 = vst [vmem:[#allocation4 + $0x3e8] sm:$0xff] %v2534
        %2545 = vst [vmem:[#allocation4 + $0x3f0] sm:$0xff] %v2535
        %2546 = vst [vmem:[#allocation4 + $0x3f8] sm:$0xff] %v2536
        %2547 = vst [vmem:[#allocation4 + $0x400] sm:$0xff] %v2537
        %2548 = vst [vmem:[#allocation4 + $0x408] sm:$0xff] %v2538
        %v2549 = vld [vmem:[#allocation2 + $0x10] sm:$0xff]
        %v2550 = vld [vmem:[#allocation2 + $0x18] sm:$0xff]
        %v2551 = vld [vmem:[#allocation2 + $0x20] sm:$0xff]
        %v2552 = vld [vmem:[#allocation2 + $0x28] sm:$0xff]
        %v2553 = vld [vmem:[#allocation2 + $0x30] sm:$0xff]
        %v2554 = vld [vmem:[#allocation2 + $0x38] sm:$0xff]
        %v2555 = vld [vmem:[%s1024] sm:$0x1f]
        %v2557 = vlaneseq
        %v2558 = vshrl.u32 %v2557, 7
        %v2559 = vsub.s32 0, %v2558
        %v2560 = vrot.slane %v2555, %v2559
        %v2561 = vlaneseq
        %v2562 = vshrl.u32 %v2561, 7
        %v2563 = vsub.s32 1, %v2562
        %v2564 = vrot.slane %v2555, %v2563
        %v2565 = vlaneseq
        %v2566 = vshrl.u32 %v2565, 7
        %v2567 = vsub.s32 2, %v2566
        %v2568 = vrot.slane %v2555, %v2567
        %v2569 = vlaneseq
        %v2570 = vshrl.u32 %v2569, 7
        %v2571 = vsub.s32 3, %v2570
        %v2572 = vrot.slane %v2555, %v2571
        %v2573 = vlaneseq
        %v2574 = vshrl.u32 %v2573, 7
        %v2575 = vsub.s32 4, %v2574
        %v2576 = vrot.slane %v2555, %v2575
        %2577 = vrot.lane.b32.xlu0 %v2560, 9
        %v2578 = vpop.permute.xlu0 %2577
        %2579 = vrot.lane.b32.xlu0 %v2564, 9
        %v2580 = vpop.permute.xlu0 %2579
        %2581 = vrot.lane.b32.xlu0 %v2568, 9
        %v2582 = vpop.permute.xlu0 %2581
        %2583 = vrot.lane.b32.xlu0 %v2572, 9
        %v2584 = vpop.permute.xlu0 %2583
        %2585 = vrot.lane.b32.xlu0 %v2576, 9
        %v2586 = vpop.permute.xlu0 %2585
        %v2587 = vsel %vm425, %v2578, %v2580
        %v2588 = vsel %vm425, %v2580, %v2582
        %v2589 = vsel %vm425, %v2582, %v2584
        %v2590 = vsel %vm425, %v2584, %v2586
        %v2597 = vmul.f32 %v2549, %v2578
        %v2598 = vmul.f32 %v2550, %v2587
        %v2599 = vmul.f32 %v2551, %v2588
        %v2600 = vmul.f32 %v2552, %v2589
        %v2601 = vmul.f32 %v2553, %v2590
        %v2602 = vmul.f32 %v2554, %v2586
        %2609 = vrot.lane.b32.xlu0 %v2597, 119
        %v2610 = vpop.permute.xlu0 %2609
        %2611 = vrot.lane.b32.xlu0 %v2598, 119
        %v2612 = vpop.permute.xlu0 %2611
        %2613 = vrot.lane.b32.xlu0 %v2599, 119
        %v2614 = vpop.permute.xlu0 %2613
        %2615 = vrot.lane.b32.xlu0 %v2600, 119
        %v2616 = vpop.permute.xlu0 %2615
        %2617 = vrot.lane.b32.xlu0 %v2601, 119
        %v2618 = vpop.permute.xlu0 %2617
        %2619 = vrot.lane.b32.xlu0 %v2602, 119
        %v2620 = vpop.permute.xlu0 %2619
        %v2621 = vsel %vm390, %v2610, %v2612
        %v2622 = vsel %vm390, %v2612, %v2614
        %v2623 = vsel %vm390, %v2614, %v2616
        %v2624 = vsel %vm390, %v2616, %v2618
        %v2625 = vsel %vm390, %v2618, %v2620
        %2631 = vst [vmem:[#allocation4 + $0x410] sm:$0xff] %v2621
        %2632 = vst [vmem:[#allocation4 + $0x418] sm:$0xff] %v2622
        %2633 = vst [vmem:[#allocation4 + $0x420] sm:$0xff] %v2623
        %2634 = vst [vmem:[#allocation4 + $0x428] sm:$0xff] %v2624
        %2635 = vst [vmem:[#allocation4 + $0x430] sm:$0xff] %v2625
        %v2636 = vld [vmem:[#allocation12] sm:$0xff]
        %v2637 = vld [vmem:[#allocation4] sm:$0xff]
        %v2638 = vld [vmem:[#allocation4 + $0x8] sm:$0xff]
        %v2639 = vld [vmem:[#allocation4 + $0x10] sm:$0xff]
        %v2640 = vld [vmem:[#allocation4 + $0x18] sm:$0xff]
        %v2641 = vld [vmem:[#allocation4 + $0x20] sm:$0xff]
        %v2642 = vld [vmem:[#allocation4 + $0x28] sm:$0xff]
        %v2643 = vld [vmem:[#allocation4 + $0x30] sm:$0xff]
        %v2644 = vld [vmem:[#allocation4 + $0x38] sm:$0xff]
        %v2645 = vld [vmem:[#allocation4 + $0x40] sm:$0xff]
        %v2646 = vld [vmem:[#allocation4 + $0x48] sm:$0xff]
        %v2647 = vld [vmem:[#allocation4 + $0x50] sm:$0xff]
        %v2648 = vld [vmem:[#allocation4 + $0x58] sm:$0xff]
        %v2649 = vld [vmem:[#allocation4 + $0x60] sm:$0xff]
        %v2650 = vld [vmem:[#allocation4 + $0x68] sm:$0xff]
        %v2651 = vld [vmem:[#allocation4 + $0x70] sm:$0xff]
        %v2652 = vld [vmem:[#allocation4 + $0x78] sm:$0xff]
        %v2653 = vld [vmem:[#allocation4 + $0x80] sm:$0xff]
        %v2654 = vld [vmem:[#allocation4 + $0x88] sm:$0xff]
        %v2655 = vld [vmem:[#allocation4 + $0x90] sm:$0xff]
        %v2656 = vld [vmem:[#allocation4 + $0x98] sm:$0xff]
        %v2657 = vld [vmem:[#allocation4 + $0xa0] sm:$0xff]
        %v2658 = vld [vmem:[#allocation4 + $0xa8] sm:$0xff]
        %v2659 = vld [vmem:[#allocation4 + $0xb0] sm:$0xff]
        %v2660 = vld [vmem:[#allocation4 + $0xb8] sm:$0xff]
        %v2661 = vld [vmem:[#allocation4 + $0xc0] sm:$0xff]
        %v2662 = vld [vmem:[#allocation4 + $0xc8] sm:$0xff]
        %v2663 = vld [vmem:[#allocation4 + $0xd0] sm:$0xff]
        %v2664 = vld [vmem:[#allocation4 + $0xd8] sm:$0xff]
        %v2665 = vld [vmem:[#allocation4 + $0xe0] sm:$0xff]
        %v2666 = vld [vmem:[#allocation4 + $0xe8] sm:$0xff]
        %v2667 = vld [vmem:[#allocation4 + $0xf0] sm:$0xff]
        %v2668 = vld [vmem:[#allocation4 + $0xf8] sm:$0xff]
        %v2669 = vld [vmem:[#allocation4 + $0x100] sm:$0xff]
        %v2670 = vld [vmem:[#allocation4 + $0x108] sm:$0xff]
        %v2671 = vld [vmem:[#allocation4 + $0x110] sm:$0xff]
        %v2672 = vld [vmem:[#allocation4 + $0x118] sm:$0xff]
        %v2673 = vld [vmem:[#allocation4 + $0x120] sm:$0xff]
        %v2674 = vld [vmem:[#allocation4 + $0x128] sm:$0xff]
        %v2675 = vld [vmem:[#allocation4 + $0x130] sm:$0xff]
        %v2676 = vld [vmem:[#allocation4 + $0x138] sm:$0xff]
        %v2677 = vld [vmem:[#allocation4 + $0x140] sm:$0xff]
        %v2678 = vld [vmem:[#allocation4 + $0x148] sm:$0xff]
        %v2679 = vld [vmem:[#allocation4 + $0x150] sm:$0xff]
        %v2680 = vld [vmem:[#allocation4 + $0x158] sm:$0xff]
        %v2681 = vld [vmem:[#allocation4 + $0x160] sm:$0xff]
        %v2682 = vld [vmem:[#allocation4 + $0x168] sm:$0xff]
        %v2683 = vld [vmem:[#allocation4 + $0x170] sm:$0xff]
        %v2684 = vld [vmem:[#allocation4 + $0x178] sm:$0xff]
        %v2685 = vld [vmem:[#allocation4 + $0x180] sm:$0xff]
        %v2686 = vld [vmem:[#allocation4 + $0x188] sm:$0xff]
        %v2687 = vld [vmem:[#allocation4 + $0x190] sm:$0xff]
        %v2688 = vld [vmem:[#allocation4 + $0x198] sm:$0xff]
        %v2689 = vld [vmem:[#allocation4 + $0x1a0] sm:$0xff]
        %v2690 = vld [vmem:[#allocation4 + $0x1a8] sm:$0xff]
        %v2691 = vld [vmem:[#allocation4 + $0x1b0] sm:$0xff]
        %v2692 = vld [vmem:[#allocation4 + $0x1b8] sm:$0xff]
        %v2693 = vld [vmem:[#allocation4 + $0x1c0] sm:$0xff]
        %v2694 = vld [vmem:[#allocation4 + $0x1c8] sm:$0xff]
        %v2695 = vld [vmem:[#allocation4 + $0x1d0] sm:$0xff]
        %v2696 = vld [vmem:[#allocation4 + $0x1d8] sm:$0xff]
        %v2697 = vld [vmem:[#allocation4 + $0x1e0] sm:$0xff]
        %v2698 = vld [vmem:[#allocation4 + $0x1e8] sm:$0xff]
        %v2699 = vld [vmem:[#allocation4 + $0x1f0] sm:$0xff]
        %v2700 = vld [vmem:[#allocation4 + $0x1f8] sm:$0xff]
        %v2701 = vld [vmem:[#allocation4 + $0x200] sm:$0xff]
        %v2702 = vld [vmem:[#allocation4 + $0x208] sm:$0xff]
        %v2703 = vld [vmem:[#allocation4 + $0x210] sm:$0xff]
        %v2704 = vld [vmem:[#allocation4 + $0x218] sm:$0xff]
        %v2705 = vld [vmem:[#allocation4 + $0x220] sm:$0xff]
        %v2706 = vld [vmem:[#allocation4 + $0x228] sm:$0xff]
        %v2707 = vld [vmem:[#allocation4 + $0x230] sm:$0xff]
        %v2708 = vld [vmem:[#allocation4 + $0x238] sm:$0xff]
        %v2709 = vld [vmem:[#allocation4 + $0x240] sm:$0xff]
        %v2710 = vld [vmem:[#allocation4 + $0x248] sm:$0xff]
        %v2711 = vld [vmem:[#allocation4 + $0x250] sm:$0xff]
        %v2712 = vld [vmem:[#allocation4 + $0x258] sm:$0xff]
        %v2713 = vld [vmem:[#allocation4 + $0x260] sm:$0xff]
        %v2714 = vld [vmem:[#allocation4 + $0x268] sm:$0xff]
        %v2715 = vld [vmem:[#allocation4 + $0x270] sm:$0xff]
        %v2716 = vld [vmem:[#allocation4 + $0x278] sm:$0xff]
        %v2717 = vld [vmem:[#allocation4 + $0x280] sm:$0xff]
        %v2718 = vld [vmem:[#allocation4 + $0x288] sm:$0xff]
        %v2719 = vld [vmem:[#allocation4 + $0x290] sm:$0xff]
        %v2720 = vld [vmem:[#allocation4 + $0x298] sm:$0xff]
        %v2721 = vld [vmem:[#allocation4 + $0x2a0] sm:$0xff]
        %v2722 = vld [vmem:[#allocation4 + $0x2a8] sm:$0xff]
        %v2723 = vld [vmem:[#allocation4 + $0x2b0] sm:$0xff]
        %v2724 = vld [vmem:[#allocation4 + $0x2b8] sm:$0xff]
        %v2725 = vld [vmem:[#allocation4 + $0x2c0] sm:$0xff]
        %v2726 = vld [vmem:[#allocation4 + $0x2c8] sm:$0xff]
        %v2727 = vld [vmem:[#allocation4 + $0x2d0] sm:$0xff]
        %v2728 = vld [vmem:[#allocation4 + $0x2d8] sm:$0xff]
        %v2729 = vld [vmem:[#allocation4 + $0x2e0] sm:$0xff]
        %v2730 = vld [vmem:[#allocation4 + $0x2e8] sm:$0xff]
        %v2731 = vld [vmem:[#allocation4 + $0x2f0] sm:$0xff]
        %v2732 = vld [vmem:[#allocation4 + $0x2f8] sm:$0xff]
        %v2733 = vld [vmem:[#allocation4 + $0x300] sm:$0xff]
        %v2734 = vld [vmem:[#allocation4 + $0x308] sm:$0xff]
        %v2735 = vld [vmem:[#allocation4 + $0x310] sm:$0xff]
        %v2736 = vld [vmem:[#allocation4 + $0x318] sm:$0xff]
        %v2737 = vld [vmem:[#allocation4 + $0x320] sm:$0xff]
        %v2738 = vld [vmem:[#allocation4 + $0x328] sm:$0xff]
        %v2739 = vld [vmem:[#allocation4 + $0x330] sm:$0xff]
        %v2740 = vld [vmem:[#allocation4 + $0x338] sm:$0xff]
        %v2741 = vld [vmem:[#allocation4 + $0x340] sm:$0xff]
        %v2742 = vld [vmem:[#allocation4 + $0x348] sm:$0xff]
        %v2743 = vld [vmem:[#allocation4 + $0x350] sm:$0xff]
        %v2744 = vld [vmem:[#allocation4 + $0x358] sm:$0xff]
        %v2745 = vld [vmem:[#allocation4 + $0x360] sm:$0xff]
        %v2746 = vld [vmem:[#allocation4 + $0x368] sm:$0xff]
        %v2747 = vld [vmem:[#allocation4 + $0x370] sm:$0xff]
        %v2748 = vld [vmem:[#allocation4 + $0x378] sm:$0xff]
        %v2749 = vld [vmem:[#allocation4 + $0x380] sm:$0xff]
        %v2750 = vld [vmem:[#allocation4 + $0x388] sm:$0xff]
        %v2751 = vld [vmem:[#allocation4 + $0x390] sm:$0xff]
        %v2752 = vld [vmem:[#allocation4 + $0x398] sm:$0xff]
        %v2753 = vld [vmem:[#allocation4 + $0x3a0] sm:$0xff]
        %v2754 = vld [vmem:[#allocation4 + $0x3a8] sm:$0xff]
        %v2755 = vld [vmem:[#allocation4 + $0x3b0] sm:$0xff]
        %v2756 = vld [vmem:[#allocation4 + $0x3b8] sm:$0xff]
        %v2757 = vld [vmem:[#allocation4 + $0x3c0] sm:$0xff]
        %v2758 = vld [vmem:[#allocation4 + $0x3c8] sm:$0xff]
        %v2759 = vld [vmem:[#allocation4 + $0x3d0] sm:$0xff]
        %v2760 = vld [vmem:[#allocation4 + $0x3d8] sm:$0xff]
        %v2761 = vld [vmem:[#allocation4 + $0x3e0] sm:$0xff]
        %v2762 = vld [vmem:[#allocation4 + $0x3e8] sm:$0xff]
        %v2763 = vld [vmem:[#allocation4 + $0x3f0] sm:$0xff]
        %v2764 = vld [vmem:[#allocation4 + $0x3f8] sm:$0xff]
        %v2765 = vld [vmem:[#allocation4 + $0x400] sm:$0xff]
        %v2766 = vld [vmem:[#allocation4 + $0x408] sm:$0xff]
        %v2767 = vld [vmem:[#allocation4 + $0x410] sm:$0xff]
        %v2768 = vld [vmem:[#allocation4 + $0x418] sm:$0xff]
        %v2769 = vld [vmem:[#allocation4 + $0x420] sm:$0xff]
        %v2770 = vld [vmem:[#allocation4 + $0x428] sm:$0xff]
        %v2771 = vld [vmem:[#allocation4 + $0x430] sm:$0xff]
        %v2772 = vpack.c.bf16 %v2642, %v2637
        %v2773 = vpack.c.bf16 %v2643, %v2638
        %v2774 = vpack.c.bf16 %v2644, %v2639
        %v2775 = vpack.c.bf16 %v2645, %v2640
        %v2776 = vpack.c.bf16 %v2646, %v2641
        %v2777 = vpack.c.bf16 %v2652, %v2647
        %v2778 = vpack.c.bf16 %v2653, %v2648
        %v2779 = vpack.c.bf16 %v2654, %v2649
        %v2780 = vpack.c.bf16 %v2655, %v2650
        %v2781 = vpack.c.bf16 %v2656, %v2651
        %v2782 = vpack.c.bf16 %v2662, %v2657
        %v2783 = vpack.c.bf16 %v2663, %v2658
        %v2784 = vpack.c.bf16 %v2664, %v2659
        %v2785 = vpack.c.bf16 %v2665, %v2660
        %v2786 = vpack.c.bf16 %v2666, %v2661
        %v2787 = vpack.c.bf16 %v2672, %v2667
        %v2788 = vpack.c.bf16 %v2673, %v2668
        %v2789 = vpack.c.bf16 %v2674, %v2669
        %v2790 = vpack.c.bf16 %v2675, %v2670
        %v2791 = vpack.c.bf16 %v2676, %v2671
        %v2792 = vpack.c.bf16 %v2682, %v2677
        %v2793 = vpack.c.bf16 %v2683, %v2678
        %v2794 = vpack.c.bf16 %v2684, %v2679
        %v2795 = vpack.c.bf16 %v2685, %v2680
        %v2796 = vpack.c.bf16 %v2686, %v2681
        %v2797 = vpack.c.bf16 %v2692, %v2687
        %v2798 = vpack.c.bf16 %v2693, %v2688
        %v2799 = vpack.c.bf16 %v2694, %v2689
        %v2800 = vpack.c.bf16 %v2695, %v2690
        %v2801 = vpack.c.bf16 %v2696, %v2691
        %v2802 = vpack.c.bf16 %v2702, %v2697
        %v2803 = vpack.c.bf16 %v2703, %v2698
        %v2804 = vpack.c.bf16 %v2704, %v2699
        %v2805 = vpack.c.bf16 %v2705, %v2700
        %v2806 = vpack.c.bf16 %v2706, %v2701
        %v2807 = vpack.c.bf16 %v2712, %v2707
        %v2808 = vpack.c.bf16 %v2713, %v2708
        %v2809 = vpack.c.bf16 %v2714, %v2709
        %v2810 = vpack.c.bf16 %v2715, %v2710
        %v2811 = vpack.c.bf16 %v2716, %v2711
        %v2812 = vpack.c.bf16 %v2722, %v2717
        %v2813 = vpack.c.bf16 %v2723, %v2718
        %v2814 = vpack.c.bf16 %v2724, %v2719
        %v2815 = vpack.c.bf16 %v2725, %v2720
        %v2816 = vpack.c.bf16 %v2726, %v2721
        %v2817 = vpack.c.bf16 %v2732, %v2727
        %v2818 = vpack.c.bf16 %v2733, %v2728
        %v2819 = vpack.c.bf16 %v2734, %v2729
        %v2820 = vpack.c.bf16 %v2735, %v2730
        %v2821 = vpack.c.bf16 %v2736, %v2731
        %v2822 = vpack.c.bf16 %v2742, %v2737
        %v2823 = vpack.c.bf16 %v2743, %v2738
        %v2824 = vpack.c.bf16 %v2744, %v2739
        %v2825 = vpack.c.bf16 %v2745, %v2740
        %v2826 = vpack.c.bf16 %v2746, %v2741
        %v2827 = vpack.c.bf16 %v2752, %v2747
        %v2828 = vpack.c.bf16 %v2753, %v2748
        %v2829 = vpack.c.bf16 %v2754, %v2749
        %v2830 = vpack.c.bf16 %v2755, %v2750
        %v2831 = vpack.c.bf16 %v2756, %v2751
        %v2832 = vpack.c.bf16 %v2762, %v2757
        %v2833 = vpack.c.bf16 %v2763, %v2758
        %v2834 = vpack.c.bf16 %v2764, %v2759
        %v2835 = vpack.c.bf16 %v2765, %v2760
        %v2836 = vpack.c.bf16 %v2766, %v2761
        %v2837 = vpack.c.bf16 %v2767, %v2767
        %v2838 = vpack.c.bf16 %v2768, %v2768
        %v2839 = vpack.c.bf16 %v2769, %v2769
        %v2840 = vpack.c.bf16 %v2770, %v2770
        %v2841 = vpack.c.bf16 %v2771, %v2771
        %v2843 = vunpack.c.l.b16 %v2636
        %v2844 = vunpack.c.h.b16 %v2636
        %v2845 = vpack.c.b16 %v2843, %v2843
        %v2846 = vpack.c.b16 %v2844, %v2844
        %vm2848 = vcmask 719872
        %v2850 = vsel %vm2848, %v2846, 0
        %vm2852 = vcmask 1043456
        %v2854 = vsel %vm2852, %v2837, 0
        %v2857 = vsel %vm2852, %v2838, 0
        %v2860 = vsel %vm2852, %v2839, 0
        %v2863 = vsel %vm2852, %v2840, 0
        %v2866 = vsel %vm2852, %v2841, 0
        %2868 = vmatprep.subr.bf16.mxu0 %v2808
        %2869 = vmatpush1.bf16.msra.mxu0 %v2807
        %2870 = vmatprep.subr.bf16.mxu0 %v2803
        %2871 = vmatpush1.bf16.msra.mxu0 %v2802
        %2872 = vmatprep.subr.bf16.mxu0 %v2798
        %2873 = vmatpush1.bf16.msra.mxu0 %v2797
        %2874 = vmatprep.subr.bf16.mxu0 %v2793
        %2875 = vmatpush1.bf16.msra.mxu0 %v2792
        %2876 = vmatprep.subr.bf16.mxu0 %v2788
        %2877 = vmatpush1.bf16.msra.mxu0 %v2787
        %2878 = vmatprep.subr.bf16.mxu0 %v2783
        %2879 = vmatpush1.bf16.msra.mxu0 %v2782
        %2880 = vmatprep.subr.bf16.mxu0 %v2778
        %2881 = vmatpush1.bf16.msra.mxu0 %v2777
        %2882 = vmatprep.subr.bf16.mxu0 %v2773
        %2883 = vmatpush1.bf16.msra.mxu0 %v2772
        %2884 = vmatprep.subr.bf16.mxu0 0
        %2885 = vmatpush2.bf16.msra.mxu0 0
        %2886 = vmatprep.subr.bf16.mxu0 0
        %2887 = vmatpush2.bf16.msra.mxu0 0
        %2888 = vmatprep.subr.bf16.mxu0 %v2857
        %2889 = vmatpush2.bf16.msra.mxu0 %v2854
        %2890 = vmatprep.subr.bf16.mxu0 %v2833
        %2891 = vmatpush2.bf16.msra.mxu0 %v2832
        %2892 = vmatprep.subr.bf16.mxu0 %v2828
        %2893 = vmatpush2.bf16.msra.mxu0 %v2827
        %2894 = vmatprep.subr.bf16.mxu0 %v2823
        %2895 = vmatpush2.bf16.msra.mxu0 %v2822
        %2896 = vmatprep.subr.bf16.mxu0 %v2818
        %2897 = vmatpush2.bf16.msra.mxu0 %v2817
        %2898 = vmatprep.subr.bf16.mxu0 %v2813
        %2899 = vmatpush2.bf16.msra.mxu0 %v2812
        %2900 = vmatprep.mubr.bf16.mxu0 %v2850
        %2901 = vmatmul.mubr.bf16.gmra.mxu0 %v2845
        %v2902 = vpop.f32.mrf.mxu0
        %v2903 = vadd.f32 0.0, %v2902
        %v2904 = vpop.f32.mrf.mxu0
        %v2905 = vadd.f32 0.0, %v2904
        %v2906 = vpop.f32.mrf.mxu0
        %v2907 = vpop.f32.mrf.mxu0
        %2908 = vdwg.mxu0
        %2909 = vmatprep.subr.bf16.mxu0 %v2810
        %2910 = vmatpush1.bf16.msra.mxu0 %v2809
        %2911 = vmatprep.subr.bf16.mxu0 %v2805
        %2912 = vmatpush1.bf16.msra.mxu0 %v2804
        %2913 = vmatprep.subr.bf16.mxu0 %v2800
        %2914 = vmatpush1.bf16.msra.mxu0 %v2799
        %2915 = vmatprep.subr.bf16.mxu0 %v2795
        %2916 = vmatpush1.bf16.msra.mxu0 %v2794
        %2917 = vmatprep.subr.bf16.mxu0 %v2790
        %2918 = vmatpush1.bf16.msra.mxu0 %v2789
        %2919 = vmatprep.subr.bf16.mxu0 %v2785
        %2920 = vmatpush1.bf16.msra.mxu0 %v2784
        %2921 = vmatprep.subr.bf16.mxu0 %v2780
        %2922 = vmatpush1.bf16.msra.mxu0 %v2779
        %2923 = vmatprep.subr.bf16.mxu0 %v2775
        %2924 = vmatpush1.bf16.msra.mxu0 %v2774
        %2925 = vmatprep.subr.bf16.mxu0 0
        %2926 = vmatpush2.bf16.msra.mxu0 0
        %2927 = vmatprep.subr.bf16.mxu0 0
        %2928 = vmatpush2.bf16.msra.mxu0 0
        %2929 = vmatprep.subr.bf16.mxu0 %v2863
        %2930 = vmatpush2.bf16.msra.mxu0 %v2860
        %2931 = vmatprep.subr.bf16.mxu0 %v2835
        %2932 = vmatpush2.bf16.msra.mxu0 %v2834
        %2933 = vmatprep.subr.bf16.mxu0 %v2830
        %2934 = vmatpush2.bf16.msra.mxu0 %v2829
        %2935 = vmatprep.subr.bf16.mxu0 %v2825
        %2936 = vmatpush2.bf16.msra.mxu0 %v2824
        %2937 = vmatprep.subr.bf16.mxu0 %v2820
        %2938 = vmatpush2.bf16.msra.mxu0 %v2819
        %2939 = vmatprep.subr.bf16.mxu0 %v2815
        %2940 = vmatpush2.bf16.msra.mxu0 %v2814
        %2941 = vmatprep.mubr.bf16.mxu0 %v2850
        %2942 = vmatmul.mubr.bf16.gmra.mxu0 %v2845
        %v2943 = vpop.f32.mrf.mxu0
        %v2944 = vadd.f32 0.0, %v2943
        %v2945 = vpop.f32.mrf.mxu0
        %v2946 = vadd.f32 0.0, %v2945
        %v2947 = vpop.f32.mrf.mxu0
        %v2948 = vpop.f32.mrf.mxu0
        %2949 = vdwg.mxu0
        %2950 = vmatprep.subr.bf16.mxu0 0
        %2951 = vmatpush1.bf16.msra.mxu0 %v2811
        %2952 = vmatprep.subr.bf16.mxu0 0
        %2953 = vmatpush1.bf16.msra.mxu0 %v2806
        %2954 = vmatprep.subr.bf16.mxu0 0
        %2955 = vmatpush1.bf16.msra.mxu0 %v2801
        %2956 = vmatprep.subr.bf16.mxu0 0
        %2957 = vmatpush1.bf16.msra.mxu0 %v2796
        %2958 = vmatprep.subr.bf16.mxu0 0
        %2959 = vmatpush1.bf16.msra.mxu0 %v2791
        %2960 = vmatprep.subr.bf16.mxu0 0
        %2961 = vmatpush1.bf16.msra.mxu0 %v2786
        %2962 = vmatprep.subr.bf16.mxu0 0
        %2963 = vmatpush1.bf16.msra.mxu0 %v2781
        %2964 = vmatprep.subr.bf16.mxu0 0
        %2965 = vmatpush1.bf16.msra.mxu0 %v2776
        %2966 = vmatprep.subr.bf16.mxu0 0
        %2967 = vmatpush2.bf16.msra.mxu0 0
        %2968 = vmatprep.subr.bf16.mxu0 0
        %2969 = vmatpush2.bf16.msra.mxu0 0
        %2970 = vmatprep.subr.bf16.mxu0 0
        %2971 = vmatpush2.bf16.msra.mxu0 %v2866
        %2972 = vmatprep.subr.bf16.mxu0 0
        %2973 = vmatpush2.bf16.msra.mxu0 %v2836
        %2974 = vmatprep.subr.bf16.mxu0 0
        %2975 = vmatpush2.bf16.msra.mxu0 %v2831
        %2976 = vmatprep.subr.bf16.mxu0 0
        %2977 = vmatpush2.bf16.msra.mxu0 %v2826
        %2978 = vmatprep.subr.bf16.mxu0 0
        %2979 = vmatpush2.bf16.msra.mxu0 %v2821
        %2980 = vmatprep.subr.bf16.mxu0 0
        %2981 = vmatpush2.bf16.msra.mxu0 %v2816
        %2982 = vmatprep.mubr.bf16.mxu0 %v2850
        %2983 = vmatmul.mubr.bf16.gmra.mxu0 %v2845
        %v2984 = vpop.f32.mrf.mxu0
        %v2985 = vadd.f32 0.0, %v2984
        %v2986 = vpop.f32.mrf.mxu0
        %v2987 = vpop.f32.mrf.mxu0
        %v2988 = vpop.f32.mrf.mxu0
        %2989 = vdwg.mxu0
        %vm2990 = vcmp.ge.f32.partialorder %v2903, 0.0
        %vm2991 = vcmp.ge.f32.partialorder %v2905, 0.0
        %vm2992 = vcmp.ge.f32.partialorder %v2944, 0.0
        %vm2993 = vcmp.ge.f32.partialorder %v2946, 0.0
        %vm2994 = vcmp.ge.f32.partialorder %v2985, 0.0
        %v2995 = vmul.f32 %v2903, 0.2
        %v2996 = vmul.f32 %v2905, 0.2
        %v2997 = vmul.f32 %v2944, 0.2
        %v2998 = vmul.f32 %v2946, 0.2
        %v2999 = vmul.f32 %v2985, 0.2
        %v3000 = vsel %vm2990, %v2903, %v2995
        %v3001 = vsel %vm2991, %v2905, %v2996
        %v3002 = vsel %vm2992, %v2944, %v2997
        %v3003 = vsel %vm2993, %v2946, %v2998
        %v3004 = vsel %vm2994, %v2985, %v2999
        %v3005 = vld [vmem:[#allocation11] sm:$0x1f]
        %v3007 = vlaneseq
        %v3008 = vshrl.u32 %v3007, 7
        %v3009 = vsub.s32 0, %v3008
        %v3010 = vrot.slane %v3005, %v3009
        %v3011 = vlaneseq
        %v3012 = vshrl.u32 %v3011, 7
        %v3013 = vsub.s32 1, %v3012
        %v3014 = vrot.slane %v3005, %v3013
        %v3015 = vlaneseq
        %v3016 = vshrl.u32 %v3015, 7
        %v3017 = vsub.s32 2, %v3016
        %v3018 = vrot.slane %v3005, %v3017
        %v3019 = vlaneseq
        %v3020 = vshrl.u32 %v3019, 7
        %v3021 = vsub.s32 3, %v3020
        %v3022 = vrot.slane %v3005, %v3021
        %v3023 = vlaneseq
        %v3024 = vshrl.u32 %v3023, 7
        %v3025 = vsub.s32 4, %v3024
        %v3026 = vrot.slane %v3005, %v3025
        %v3032 = vmul.f32 %v3000, %v3010
        %v3033 = vmul.f32 %v3001, %v3014
        %v3034 = vmul.f32 %v3002, %v3018
        %v3035 = vmul.f32 %v3003, %v3022
        %v3036 = vmul.f32 %v3004, %v3026
        %3037 = vst [vmem:[#allocation3] sm:$0xff] 0.0
        %3038 = vst [vmem:[#allocation3 + $0x30] sm:$0xff] 0.0
        %3039 = vst [vmem:[#allocation3 + $0x8] sm:$0xff] %v3032
        %3040 = vst [vmem:[#allocation3 + $0x10] sm:$0xff] %v3033
        %3041 = vst [vmem:[#allocation3 + $0x18] sm:$0xff] %v3034
        %3042 = vst [vmem:[#allocation3 + $0x20] sm:$0xff] %v3035
        %3043 = vst [vmem:[#allocation3 + $0x28] sm:$0xff] %v3036
        %v3044 = vld [vmem:[#allocation3] sm:$0xff]
        %v3045 = vld [vmem:[#allocation3 + $0x8] sm:$0xff]
        %v3046 = vld [vmem:[#allocation3 + $0x10] sm:$0xff]
        %v3047 = vld [vmem:[#allocation3 + $0x18] sm:$0xff]
        %v3048 = vld [vmem:[#allocation3 + $0x20] sm:$0xff]
        %v3049 = vld [vmem:[#allocation9] sm:$0xf]
        %v3051 = vlaneseq
        %v3052 = vshrl.u32 %v3051, 7
        %v3053 = vsub.s32 0, %v3052
        %v3054 = vrot.slane %v3049, %v3053
        %v3055 = vlaneseq
        %v3056 = vshrl.u32 %v3055, 7
        %v3057 = vsub.s32 1, %v3056
        %v3058 = vrot.slane %v3049, %v3057
        %v3059 = vlaneseq
        %v3060 = vshrl.u32 %v3059, 7
        %v3061 = vsub.s32 2, %v3060
        %v3062 = vrot.slane %v3049, %v3061
        %v3063 = vlaneseq
        %v3064 = vshrl.u32 %v3063, 7
        %v3065 = vsub.s32 3, %v3064
        %v3066 = vrot.slane %v3049, %v3065
        %3067 = vrot.lane.b32.xlu0 %v3054, 119
        %v3068 = vpop.permute.xlu0 %3067
        %3069 = vrot.lane.b32.xlu0 %v3058, 119
        %v3070 = vpop.permute.xlu0 %3069
        %3071 = vrot.lane.b32.xlu0 %v3062, 119
        %v3072 = vpop.permute.xlu0 %3071
        %3073 = vrot.lane.b32.xlu0 %v3066, 119
        %v3074 = vpop.permute.xlu0 %3073
        %v3075 = vsel %vm390, %v3068, %v3070
        %v3076 = vsel %vm390, %v3070, %v3072
        %v3077 = vsel %vm390, %v3072, %v3074
        %v3083 = vmul.f32 %v3044, %v3068
        %v3084 = vmul.f32 %v3045, %v3075
        %v3085 = vmul.f32 %v3046, %v3076
        %v3086 = vmul.f32 %v3047, %v3077
        %v3087 = vmul.f32 %v3048, %v3074
        %3093 = vrot.lane.b32.xlu0 %v3083, 9
        %v3094 = vpop.permute.xlu0 %3093
        %3095 = vrot.lane.b32.xlu0 %v3084, 9
        %v3096 = vpop.permute.xlu0 %3095
        %3097 = vrot.lane.b32.xlu0 %v3085, 9
        %v3098 = vpop.permute.xlu0 %3097
        %3099 = vrot.lane.b32.xlu0 %v3086, 9
        %v3100 = vpop.permute.xlu0 %3099
        %3101 = vrot.lane.b32.xlu0 %v3087, 9
        %v3102 = vpop.permute.xlu0 %3101
        %v3103 = vsel %vm425, %v3094, %v3096
        %v3104 = vsel %vm425, %v3096, %v3098
        %v3105 = vsel %vm425, %v3098, %v3100
        %v3106 = vsel %vm425, %v3100, %v3102
        %3111 = vst [vmem:[#allocation5] sm:$0xff] %v3103
        %3112 = vst [vmem:[#allocation5 + $0x8] sm:$0xff] %v3104
        %3113 = vst [vmem:[#allocation5 + $0x10] sm:$0xff] %v3105
        %3114 = vst [vmem:[#allocation5 + $0x18] sm:$0xff] %v3106
        %v3115 = vld [vmem:[#allocation3] sm:$0xff]
        %v3116 = vld [vmem:[#allocation3 + $0x8] sm:$0xff]
        %v3117 = vld [vmem:[#allocation3 + $0x10] sm:$0xff]
        %v3118 = vld [vmem:[#allocation3 + $0x18] sm:$0xff]
        %v3119 = vld [vmem:[#allocation3 + $0x20] sm:$0xff]
        %v3120 = vld [vmem:[%s447] sm:$0xf]
        %v3122 = vlaneseq
        %v3123 = vshrl.u32 %v3122, 7
        %v3124 = vsub.s32 0, %v3123
        %v3125 = vrot.slane %v3120, %v3124
        %v3126 = vlaneseq
        %v3127 = vshrl.u32 %v3126, 7
        %v3128 = vsub.s32 1, %v3127
        %v3129 = vrot.slane %v3120, %v3128
        %v3130 = vlaneseq
        %v3131 = vshrl.u32 %v3130, 7
        %v3132 = vsub.s32 2, %v3131
        %v3133 = vrot.slane %v3120, %v3132
        %v3134 = vlaneseq
        %v3135 = vshrl.u32 %v3134, 7
        %v3136 = vsub.s32 3, %v3135
        %v3137 = vrot.slane %v3120, %v3136
        %3138 = vrot.lane.b32.xlu0 %v3125, 120
        %v3139 = vpop.permute.xlu0 %3138
        %3140 = vrot.lane.b32.xlu0 %v3129, 120
        %v3141 = vpop.permute.xlu0 %3140
        %3142 = vrot.lane.b32.xlu0 %v3133, 120
        %v3143 = vpop.permute.xlu0 %3142
        %3144 = vrot.lane.b32.xlu0 %v3137, 120
        %v3145 = vpop.permute.xlu0 %3144
        %v3146 = vsel %vm480, %v3139, %v3141
        %v3147 = vsel %vm480, %v3141, %v3143
        %v3148 = vsel %vm480, %v3143, %v3145
        %v3154 = vmul.f32 %v3115, %v3139
        %v3155 = vmul.f32 %v3116, %v3146
        %v3156 = vmul.f32 %v3117, %v3147
        %v3157 = vmul.f32 %v3118, %v3148
        %v3158 = vmul.f32 %v3119, %v3145
        %3164 = vrot.lane.b32.xlu0 %v3154, 8
        %v3165 = vpop.permute.xlu0 %3164
        %3166 = vrot.lane.b32.xlu0 %v3155, 8
        %v3167 = vpop.permute.xlu0 %3166
        %3168 = vrot.lane.b32.xlu0 %v3156, 8
        %v3169 = vpop.permute.xlu0 %3168
        %3170 = vrot.lane.b32.xlu0 %v3157, 8
        %v3171 = vpop.permute.xlu0 %3170
        %3172 = vrot.lane.b32.xlu0 %v3158, 8
        %v3173 = vpop.permute.xlu0 %3172
        %v3174 = vsel %vm515, %v3165, %v3167
        %v3175 = vsel %vm515, %v3167, %v3169
        %v3176 = vsel %vm515, %v3169, %v3171
        %v3177 = vsel %vm515, %v3171, %v3173
        %3182 = vst [vmem:[#allocation5 + $0x20] sm:$0xff] %v3174
        %3183 = vst [vmem:[#allocation5 + $0x28] sm:$0xff] %v3175
        %3184 = vst [vmem:[#allocation5 + $0x30] sm:$0xff] %v3176
        %3185 = vst [vmem:[#allocation5 + $0x38] sm:$0xff] %v3177
        %v3186 = vld [vmem:[#allocation3] sm:$0xff]
        %v3187 = vld [vmem:[#allocation3 + $0x8] sm:$0xff]
        %v3188 = vld [vmem:[#allocation3 + $0x10] sm:$0xff]
        %v3189 = vld [vmem:[#allocation3 + $0x18] sm:$0xff]
        %v3190 = vld [vmem:[#allocation3 + $0x20] sm:$0xff]
        %v3191 = vld [vmem:[%s537] sm:$0xf]
        %v3193 = vlaneseq
        %v3194 = vshrl.u32 %v3193, 7
        %v3195 = vsub.s32 0, %v3194
        %v3196 = vrot.slane %v3191, %v3195
        %v3197 = vlaneseq
        %v3198 = vshrl.u32 %v3197, 7
        %v3199 = vsub.s32 1, %v3198
        %v3200 = vrot.slane %v3191, %v3199
        %v3201 = vlaneseq
        %v3202 = vshrl.u32 %v3201, 7
        %v3203 = vsub.s32 2, %v3202
        %v3204 = vrot.slane %v3191, %v3203
        %v3205 = vlaneseq
        %v3206 = vshrl.u32 %v3205, 7
        %v3207 = vsub.s32 3, %v3206
        %v3208 = vrot.slane %v3191, %v3207
        %3209 = vrot.lane.b32.xlu0 %v3196, 121
        %v3210 = vpop.permute.xlu0 %3209
        %3211 = vrot.lane.b32.xlu0 %v3200, 121
        %v3212 = vpop.permute.xlu0 %3211
        %3213 = vrot.lane.b32.xlu0 %v3204, 121
        %v3214 = vpop.permute.xlu0 %3213
        %3215 = vrot.lane.b32.xlu0 %v3208, 121
        %v3216 = vpop.permute.xlu0 %3215
        %v3217 = vsel %vm570, %v3210, %v3212
        %v3218 = vsel %vm570, %v3212, %v3214
        %v3219 = vsel %vm570, %v3214, %v3216
        %v3225 = vmul.f32 %v3186, %v3210
        %v3226 = vmul.f32 %v3187, %v3217
        %v3227 = vmul.f32 %v3188, %v3218
        %v3228 = vmul.f32 %v3189, %v3219
        %v3229 = vmul.f32 %v3190, %v3216
        %3235 = vrot.lane.b32.xlu0 %v3225, 7
        %v3236 = vpop.permute.xlu0 %3235
        %3237 = vrot.lane.b32.xlu0 %v3226, 7
        %v3238 = vpop.permute.xlu0 %3237
        %3239 = vrot.lane.b32.xlu0 %v3227, 7
        %v3240 = vpop.permute.xlu0 %3239
        %3241 = vrot.lane.b32.xlu0 %v3228, 7
        %v3242 = vpop.permute.xlu0 %3241
        %3243 = vrot.lane.b32.xlu0 %v3229, 7
        %v3244 = vpop.permute.xlu0 %3243
        %v3245 = vsel %vm605, %v3236, %v3238
        %v3246 = vsel %vm605, %v3238, %v3240
        %v3247 = vsel %vm605, %v3240, %v3242
        %v3248 = vsel %vm605, %v3242, %v3244
        %3253 = vst [vmem:[#allocation5 + $0x40] sm:$0xff] %v3245
        %3254 = vst [vmem:[#allocation5 + $0x48] sm:$0xff] %v3246
        %3255 = vst [vmem:[#allocation5 + $0x50] sm:$0xff] %v3247
        %3256 = vst [vmem:[#allocation5 + $0x58] sm:$0xff] %v3248
        %v3257 = vld [vmem:[#allocation3] sm:$0xff]
        %v3258 = vld [vmem:[#allocation3 + $0x8] sm:$0xff]
        %v3259 = vld [vmem:[#allocation3 + $0x10] sm:$0xff]
        %v3260 = vld [vmem:[#allocation3 + $0x18] sm:$0xff]
        %v3261 = vld [vmem:[#allocation3 + $0x20] sm:$0xff]
        %v3262 = vld [vmem:[%s627] sm:$0xf]
        %v3264 = vlaneseq
        %v3265 = vshrl.u32 %v3264, 7
        %v3266 = vsub.s32 0, %v3265
        %v3267 = vrot.slane %v3262, %v3266
        %v3268 = vlaneseq
        %v3269 = vshrl.u32 %v3268, 7
        %v3270 = vsub.s32 1, %v3269
        %v3271 = vrot.slane %v3262, %v3270
        %v3272 = vlaneseq
        %v3273 = vshrl.u32 %v3272, 7
        %v3274 = vsub.s32 2, %v3273
        %v3275 = vrot.slane %v3262, %v3274
        %v3276 = vlaneseq
        %v3277 = vshrl.u32 %v3276, 7
        %v3278 = vsub.s32 3, %v3277
        %v3279 = vrot.slane %v3262, %v3278
        %3280 = vrot.lane.b32.xlu0 %v3267, 127
        %v3281 = vpop.permute.xlu0 %3280
        %3282 = vrot.lane.b32.xlu0 %v3271, 127
        %v3283 = vpop.permute.xlu0 %3282
        %3284 = vrot.lane.b32.xlu0 %v3275, 127
        %v3285 = vpop.permute.xlu0 %3284
        %3286 = vrot.lane.b32.xlu0 %v3279, 127
        %v3287 = vpop.permute.xlu0 %3286
        %v3288 = vsel %vm660, %v3281, %v3283
        %v3289 = vsel %vm660, %v3283, %v3285
        %v3290 = vsel %vm660, %v3285, %v3287
        %v3296 = vmul.f32 %v3257, %v3281
        %v3297 = vmul.f32 %v3258, %v3288
        %v3298 = vmul.f32 %v3259, %v3289
        %v3299 = vmul.f32 %v3260, %v3290
        %v3300 = vmul.f32 %v3261, %v3287
        %3306 = vrot.lane.b32.xlu0 %v3296, 1
        %v3307 = vpop.permute.xlu0 %3306
        %3308 = vrot.lane.b32.xlu0 %v3297, 1
        %v3309 = vpop.permute.xlu0 %3308
        %3310 = vrot.lane.b32.xlu0 %v3298, 1
        %v3311 = vpop.permute.xlu0 %3310
        %3312 = vrot.lane.b32.xlu0 %v3299, 1
        %v3313 = vpop.permute.xlu0 %3312
        %3314 = vrot.lane.b32.xlu0 %v3300, 1
        %v3315 = vpop.permute.xlu0 %3314
        %v3316 = vsel %vm695, %v3307, %v3309
        %v3317 = vsel %vm695, %v3309, %v3311
        %v3318 = vsel %vm695, %v3311, %v3313
        %v3319 = vsel %vm695, %v3313, %v3315
        %3324 = vst [vmem:[#allocation5 + $0x60] sm:$0xff] %v3316
        %3325 = vst [vmem:[#allocation5 + $0x68] sm:$0xff] %v3317
        %3326 = vst [vmem:[#allocation5 + $0x70] sm:$0xff] %v3318
        %3327 = vst [vmem:[#allocation5 + $0x78] sm:$0xff] %v3319
        %v3328 = vld [vmem:[#allocation3 + $0x8] sm:$0xff]
        %v3329 = vld [vmem:[#allocation3 + $0x10] sm:$0xff]
        %v3330 = vld [vmem:[#allocation3 + $0x18] sm:$0xff]
        %v3331 = vld [vmem:[#allocation3 + $0x20] sm:$0xff]
        %v3332 = vld [vmem:[%s716] sm:$0xf]
        %v3334 = vlaneseq
        %v3335 = vshrl.u32 %v3334, 7
        %v3336 = vsub.s32 0, %v3335
        %v3337 = vrot.slane %v3332, %v3336
        %v3338 = vlaneseq
        %v3339 = vshrl.u32 %v3338, 7
        %v3340 = vsub.s32 1, %v3339
        %v3341 = vrot.slane %v3332, %v3340
        %v3342 = vlaneseq
        %v3343 = vshrl.u32 %v3342, 7
        %v3344 = vsub.s32 2, %v3343
        %v3345 = vrot.slane %v3332, %v3344
        %v3346 = vlaneseq
        %v3347 = vshrl.u32 %v3346, 7
        %v3348 = vsub.s32 3, %v3347
        %v3349 = vrot.slane %v3332, %v3348
        %v3354 = vmul.f32 %v3328, %v3337
        %v3355 = vmul.f32 %v3329, %v3341
        %v3356 = vmul.f32 %v3330, %v3345
        %v3357 = vmul.f32 %v3331, %v3349
        %3358 = vst [vmem:[#allocation5 + $0x80] sm:$0xff] %v3354
        %3359 = vst [vmem:[#allocation5 + $0x88] sm:$0xff] %v3355
        %3360 = vst [vmem:[#allocation5 + $0x90] sm:$0xff] %v3356
        %3361 = vst [vmem:[#allocation5 + $0x98] sm:$0xff] %v3357
        %v3362 = vld [vmem:[#allocation3 + $0x8] sm:$0xff]
        %v3363 = vld [vmem:[#allocation3 + $0x10] sm:$0xff]
        %v3364 = vld [vmem:[#allocation3 + $0x18] sm:$0xff]
        %v3365 = vld [vmem:[#allocation3 + $0x20] sm:$0xff]
        %v3366 = vld [vmem:[#allocation3 + $0x28] sm:$0xff]
        %v3367 = vld [vmem:[%s760] sm:$0xf]
        %v3369 = vlaneseq
        %v3370 = vshrl.u32 %v3369, 7
        %v3371 = vsub.s32 0, %v3370
        %v3372 = vrot.slane %v3367, %v3371
        %v3373 = vlaneseq
        %v3374 = vshrl.u32 %v3373, 7
        %v3375 = vsub.s32 1, %v3374
        %v3376 = vrot.slane %v3367, %v3375
        %v3377 = vlaneseq
        %v3378 = vshrl.u32 %v3377, 7
        %v3379 = vsub.s32 2, %v3378
        %v3380 = vrot.slane %v3367, %v3379
        %v3381 = vlaneseq
        %v3382 = vshrl.u32 %v3381, 7
        %v3383 = vsub.s32 3, %v3382
        %v3384 = vrot.slane %v3367, %v3383
        %3385 = vrot.lane.b32.xlu0 %v3372, 1
        %v3386 = vpop.permute.xlu0 %3385
        %3387 = vrot.lane.b32.xlu0 %v3376, 1
        %v3388 = vpop.permute.xlu0 %3387
        %3389 = vrot.lane.b32.xlu0 %v3380, 1
        %v3390 = vpop.permute.xlu0 %3389
        %3391 = vrot.lane.b32.xlu0 %v3384, 1
        %v3392 = vpop.permute.xlu0 %3391
        %v3393 = vsel %vm695, %v3386, %v3388
        %v3394 = vsel %vm695, %v3388, %v3390
        %v3395 = vsel %vm695, %v3390, %v3392
        %v3401 = vmul.f32 %v3362, %v3386
        %v3402 = vmul.f32 %v3363, %v3393
        %v3403 = vmul.f32 %v3364, %v3394
        %v3404 = vmul.f32 %v3365, %v3395
        %v3405 = vmul.f32 %v3366, %v3392
        %3411 = vrot.lane.b32.xlu0 %v3401, 127
        %v3412 = vpop.permute.xlu0 %3411
        %3413 = vrot.lane.b32.xlu0 %v3402, 127
        %v3414 = vpop.permute.xlu0 %3413
        %3415 = vrot.lane.b32.xlu0 %v3403, 127
        %v3416 = vpop.permute.xlu0 %3415
        %3417 = vrot.lane.b32.xlu0 %v3404, 127
        %v3418 = vpop.permute.xlu0 %3417
        %3419 = vrot.lane.b32.xlu0 %v3405, 127
        %v3420 = vpop.permute.xlu0 %3419
        %v3421 = vsel %vm660, %v3412, %v3414
        %v3422 = vsel %vm660, %v3414, %v3416
        %v3423 = vsel %vm660, %v3416, %v3418
        %v3424 = vsel %vm660, %v3418, %v3420
        %3429 = vst [vmem:[#allocation5 + $0xa0] sm:$0xff] %v3421
        %3430 = vst [vmem:[#allocation5 + $0xa8] sm:$0xff] %v3422
        %3431 = vst [vmem:[#allocation5 + $0xb0] sm:$0xff] %v3423
        %3432 = vst [vmem:[#allocation5 + $0xb8] sm:$0xff] %v3424
        %v3433 = vld [vmem:[#allocation3 + $0x8] sm:$0xff]
        %v3434 = vld [vmem:[#allocation3 + $0x10] sm:$0xff]
        %v3435 = vld [vmem:[#allocation3 + $0x18] sm:$0xff]
        %v3436 = vld [vmem:[#allocation3 + $0x20] sm:$0xff]
        %v3437 = vld [vmem:[#allocation3 + $0x28] sm:$0xff]
        %v3438 = vld [vmem:[%s848] sm:$0xf]
        %v3440 = vlaneseq
        %v3441 = vshrl.u32 %v3440, 7
        %v3442 = vsub.s32 0, %v3441
        %v3443 = vrot.slane %v3438, %v3442
        %v3444 = vlaneseq
        %v3445 = vshrl.u32 %v3444, 7
        %v3446 = vsub.s32 1, %v3445
        %v3447 = vrot.slane %v3438, %v3446
        %v3448 = vlaneseq
        %v3449 = vshrl.u32 %v3448, 7
        %v3450 = vsub.s32 2, %v3449
        %v3451 = vrot.slane %v3438, %v3450
        %v3452 = vlaneseq
        %v3453 = vshrl.u32 %v3452, 7
        %v3454 = vsub.s32 3, %v3453
        %v3455 = vrot.slane %v3438, %v3454
        %3456 = vrot.lane.b32.xlu0 %v3443, 7
        %v3457 = vpop.permute.xlu0 %3456
        %3458 = vrot.lane.b32.xlu0 %v3447, 7
        %v3459 = vpop.permute.xlu0 %3458
        %3460 = vrot.lane.b32.xlu0 %v3451, 7
        %v3461 = vpop.permute.xlu0 %3460
        %3462 = vrot.lane.b32.xlu0 %v3455, 7
        %v3463 = vpop.permute.xlu0 %3462
        %v3464 = vsel %vm605, %v3457, %v3459
        %v3465 = vsel %vm605, %v3459, %v3461
        %v3466 = vsel %vm605, %v3461, %v3463
        %v3472 = vmul.f32 %v3433, %v3457
        %v3473 = vmul.f32 %v3434, %v3464
        %v3474 = vmul.f32 %v3435, %v3465
        %v3475 = vmul.f32 %v3436, %v3466
        %v3476 = vmul.f32 %v3437, %v3463
        %3482 = vrot.lane.b32.xlu0 %v3472, 121
        %v3483 = vpop.permute.xlu0 %3482
        %3484 = vrot.lane.b32.xlu0 %v3473, 121
        %v3485 = vpop.permute.xlu0 %3484
        %3486 = vrot.lane.b32.xlu0 %v3474, 121
        %v3487 = vpop.permute.xlu0 %3486
        %3488 = vrot.lane.b32.xlu0 %v3475, 121
        %v3489 = vpop.permute.xlu0 %3488
        %3490 = vrot.lane.b32.xlu0 %v3476, 121
        %v3491 = vpop.permute.xlu0 %3490
        %v3492 = vsel %vm570, %v3483, %v3485
        %v3493 = vsel %vm570, %v3485, %v3487
        %v3494 = vsel %vm570, %v3487, %v3489
        %v3495 = vsel %vm570, %v3489, %v3491
        %3500 = vst [vmem:[#allocation5 + $0xc0] sm:$0xff] %v3492
        %3501 = vst [vmem:[#allocation5 + $0xc8] sm:$0xff] %v3493
        %3502 = vst [vmem:[#allocation5 + $0xd0] sm:$0xff] %v3494
        %3503 = vst [vmem:[#allocation5 + $0xd8] sm:$0xff] %v3495
        %v3504 = vld [vmem:[#allocation3 + $0x8] sm:$0xff]
        %v3505 = vld [vmem:[#allocation3 + $0x10] sm:$0xff]
        %v3506 = vld [vmem:[#allocation3 + $0x18] sm:$0xff]
        %v3507 = vld [vmem:[#allocation3 + $0x20] sm:$0xff]
        %v3508 = vld [vmem:[#allocation3 + $0x28] sm:$0xff]
        %v3509 = vld [vmem:[%s936] sm:$0xf]
        %v3511 = vlaneseq
        %v3512 = vshrl.u32 %v3511, 7
        %v3513 = vsub.s32 0, %v3512
        %v3514 = vrot.slane %v3509, %v3513
        %v3515 = vlaneseq
        %v3516 = vshrl.u32 %v3515, 7
        %v3517 = vsub.s32 1, %v3516
        %v3518 = vrot.slane %v3509, %v3517
        %v3519 = vlaneseq
        %v3520 = vshrl.u32 %v3519, 7
        %v3521 = vsub.s32 2, %v3520
        %v3522 = vrot.slane %v3509, %v3521
        %v3523 = vlaneseq
        %v3524 = vshrl.u32 %v3523, 7
        %v3525 = vsub.s32 3, %v3524
        %v3526 = vrot.slane %v3509, %v3525
        %3527 = vrot.lane.b32.xlu0 %v3514, 8
        %v3528 = vpop.permute.xlu0 %3527
        %3529 = vrot.lane.b32.xlu0 %v3518, 8
        %v3530 = vpop.permute.xlu0 %3529
        %3531 = vrot.lane.b32.xlu0 %v3522, 8
        %v3532 = vpop.permute.xlu0 %3531
        %3533 = vrot.lane.b32.xlu0 %v3526, 8
        %v3534 = vpop.permute.xlu0 %3533
        %v3535 = vsel %vm515, %v3528, %v3530
        %v3536 = vsel %vm515, %v3530, %v3532
        %v3537 = vsel %vm515, %v3532, %v3534
        %v3543 = vmul.f32 %v3504, %v3528
        %v3544 = vmul.f32 %v3505, %v3535
        %v3545 = vmul.f32 %v3506, %v3536
        %v3546 = vmul.f32 %v3507, %v3537
        %v3547 = vmul.f32 %v3508, %v3534
        %3553 = vrot.lane.b32.xlu0 %v3543, 120
        %v3554 = vpop.permute.xlu0 %3553
        %3555 = vrot.lane.b32.xlu0 %v3544, 120
        %v3556 = vpop.permute.xlu0 %3555
        %3557 = vrot.lane.b32.xlu0 %v3545, 120
        %v3558 = vpop.permute.xlu0 %3557
        %3559 = vrot.lane.b32.xlu0 %v3546, 120
        %v3560 = vpop.permute.xlu0 %3559
        %3561 = vrot.lane.b32.xlu0 %v3547, 120
        %v3562 = vpop.permute.xlu0 %3561
        %v3563 = vsel %vm480, %v3554, %v3556
        %v3564 = vsel %vm480, %v3556, %v3558
        %v3565 = vsel %vm480, %v3558, %v3560
        %v3566 = vsel %vm480, %v3560, %v3562
        %3571 = vst [vmem:[#allocation5 + $0xe0] sm:$0xff] %v3563
        %3572 = vst [vmem:[#allocation5 + $0xe8] sm:$0xff] %v3564
        %3573 = vst [vmem:[#allocation5 + $0xf0] sm:$0xff] %v3565
        %3574 = vst [vmem:[#allocation5 + $0xf8] sm:$0xff] %v3566
        %v3575 = vld [vmem:[#allocation3 + $0x8] sm:$0xff]
        %v3576 = vld [vmem:[#allocation3 + $0x10] sm:$0xff]
        %v3577 = vld [vmem:[#allocation3 + $0x18] sm:$0xff]
        %v3578 = vld [vmem:[#allocation3 + $0x20] sm:$0xff]
        %v3579 = vld [vmem:[#allocation3 + $0x28] sm:$0xff]
        %v3580 = vld [vmem:[%s1024] sm:$0xf]
        %v3582 = vlaneseq
        %v3583 = vshrl.u32 %v3582, 7
        %v3584 = vsub.s32 0, %v3583
        %v3585 = vrot.slane %v3580, %v3584
        %v3586 = vlaneseq
        %v3587 = vshrl.u32 %v3586, 7
        %v3588 = vsub.s32 1, %v3587
        %v3589 = vrot.slane %v3580, %v3588
        %v3590 = vlaneseq
        %v3591 = vshrl.u32 %v3590, 7
        %v3592 = vsub.s32 2, %v3591
        %v3593 = vrot.slane %v3580, %v3592
        %v3594 = vlaneseq
        %v3595 = vshrl.u32 %v3594, 7
        %v3596 = vsub.s32 3, %v3595
        %v3597 = vrot.slane %v3580, %v3596
        %3598 = vrot.lane.b32.xlu0 %v3585, 9
        %v3599 = vpop.permute.xlu0 %3598
        %3600 = vrot.lane.b32.xlu0 %v3589, 9
        %v3601 = vpop.permute.xlu0 %3600
        %3602 = vrot.lane.b32.xlu0 %v3593, 9
        %v3603 = vpop.permute.xlu0 %3602
        %3604 = vrot.lane.b32.xlu0 %v3597, 9
        %v3605 = vpop.permute.xlu0 %3604
        %v3606 = vsel %vm425, %v3599, %v3601
        %v3607 = vsel %vm425, %v3601, %v3603
        %v3608 = vsel %vm425, %v3603, %v3605
        %v3614 = vmul.f32 %v3575, %v3599
        %v3615 = vmul.f32 %v3576, %v3606
        %v3616 = vmul.f32 %v3577, %v3607
        %v3617 = vmul.f32 %v3578, %v3608
        %v3618 = vmul.f32 %v3579, %v3605
        %3624 = vrot.lane.b32.xlu0 %v3614, 119
        %v3625 = vpop.permute.xlu0 %3624
        %3626 = vrot.lane.b32.xlu0 %v3615, 119
        %v3627 = vpop.permute.xlu0 %3626
        %3628 = vrot.lane.b32.xlu0 %v3616, 119
        %v3629 = vpop.permute.xlu0 %3628
        %3630 = vrot.lane.b32.xlu0 %v3617, 119
        %v3631 = vpop.permute.xlu0 %3630
        %3632 = vrot.lane.b32.xlu0 %v3618, 119
        %v3633 = vpop.permute.xlu0 %3632
        %v3634 = vsel %vm390, %v3625, %v3627
        %v3635 = vsel %vm390, %v3627, %v3629
        %v3636 = vsel %vm390, %v3629, %v3631
        %v3637 = vsel %vm390, %v3631, %v3633
        %3642 = vst [vmem:[#allocation5 + $0x100] sm:$0xff] %v3634
        %3643 = vst [vmem:[#allocation5 + $0x108] sm:$0xff] %v3635
        %3644 = vst [vmem:[#allocation5 + $0x110] sm:$0xff] %v3636
        %3645 = vst [vmem:[#allocation5 + $0x118] sm:$0xff] %v3637
        %v3646 = vld [vmem:[#allocation3 + $0x8] sm:$0xff]
        %v3647 = vld [vmem:[#allocation3 + $0x10] sm:$0xff]
        %v3648 = vld [vmem:[#allocation3 + $0x18] sm:$0xff]
        %v3649 = vld [vmem:[#allocation3 + $0x20] sm:$0xff]
        %v3650 = vld [vmem:[#allocation3 + $0x28] sm:$0xff]
        %v3651 = vld [vmem:[#allocation9] sm:$0xf]
        %v3653 = vlaneseq
        %v3654 = vshrl.u32 %v3653, 7
        %v3655 = vsub.s32 0, %v3654
        %v3656 = vrot.slane %v3651, %v3655
        %v3657 = vlaneseq
        %v3658 = vshrl.u32 %v3657, 7
        %v3659 = vsub.s32 1, %v3658
        %v3660 = vrot.slane %v3651, %v3659
        %v3661 = vlaneseq
        %v3662 = vshrl.u32 %v3661, 7
        %v3663 = vsub.s32 2, %v3662
        %v3664 = vrot.slane %v3651, %v3663
        %v3665 = vlaneseq
        %v3666 = vshrl.u32 %v3665, 7
        %v3667 = vsub.s32 3, %v3666
        %v3668 = vrot.slane %v3651, %v3667
        %3669 = vrot.lane.b32.xlu0 %v3656, 55
        %v3670 = vpop.permute.xlu0 %3669
        %3671 = vrot.lane.b32.xlu0 %v3660, 55
        %v3672 = vpop.permute.xlu0 %3671
        %3673 = vrot.lane.b32.xlu0 %v3664, 55
        %v3674 = vpop.permute.xlu0 %3673
        %3675 = vrot.lane.b32.xlu0 %v3668, 55
        %v3676 = vpop.permute.xlu0 %3675
        %v3677 = vsel %vm1144, %v3670, %v3672
        %v3678 = vsel %vm1144, %v3672, %v3674
        %v3679 = vsel %vm1144, %v3674, %v3676
        %v3685 = vmul.f32 %v3646, %v3670
        %v3686 = vmul.f32 %v3647, %v3677
        %v3687 = vmul.f32 %v3648, %v3678
        %v3688 = vmul.f32 %v3649, %v3679
        %v3689 = vmul.f32 %v3650, %v3676
        %3695 = vrot.lane.b32.xlu0 %v3685, 73
        %v3696 = vpop.permute.xlu0 %3695
        %3697 = vrot.lane.b32.xlu0 %v3686, 73
        %v3698 = vpop.permute.xlu0 %3697
        %3699 = vrot.lane.b32.xlu0 %v3687, 73
        %v3700 = vpop.permute.xlu0 %3699
        %3701 = vrot.lane.b32.xlu0 %v3688, 73
        %v3702 = vpop.permute.xlu0 %3701
        %3703 = vrot.lane.b32.xlu0 %v3689, 73
        %v3704 = vpop.permute.xlu0 %3703
        %v3705 = vsel %vm1179, %v3696, %v3698
        %v3706 = vsel %vm1179, %v3698, %v3700
        %v3707 = vsel %vm1179, %v3700, %v3702
        %v3708 = vsel %vm1179, %v3702, %v3704
        %3713 = vst [vmem:[#allocation5 + $0x120] sm:$0xff] %v3705
        %3714 = vst [vmem:[#allocation5 + $0x128] sm:$0xff] %v3706
        %3715 = vst [vmem:[#allocation5 + $0x130] sm:$0xff] %v3707
        %3716 = vst [vmem:[#allocation5 + $0x138] sm:$0xff] %v3708
        %v3717 = vld [vmem:[#allocation3 + $0x8] sm:$0xff]
        %v3718 = vld [vmem:[#allocation3 + $0x10] sm:$0xff]
        %v3719 = vld [vmem:[#allocation3 + $0x18] sm:$0xff]
        %v3720 = vld [vmem:[#allocation3 + $0x20] sm:$0xff]
        %v3721 = vld [vmem:[#allocation3 + $0x28] sm:$0xff]
        %v3722 = vld [vmem:[%s447] sm:$0xf]
        %v3724 = vlaneseq
        %v3725 = vshrl.u32 %v3724, 7
        %v3726 = vsub.s32 0, %v3725
        %v3727 = vrot.slane %v3722, %v3726
        %v3728 = vlaneseq
        %v3729 = vshrl.u32 %v3728, 7
        %v3730 = vsub.s32 1, %v3729
        %v3731 = vrot.slane %v3722, %v3730
        %v3732 = vlaneseq
        %v3733 = vshrl.u32 %v3732, 7
        %v3734 = vsub.s32 2, %v3733
        %v3735 = vrot.slane %v3722, %v3734
        %v3736 = vlaneseq
        %v3737 = vshrl.u32 %v3736, 7
        %v3738 = vsub.s32 3, %v3737
        %v3739 = vrot.slane %v3722, %v3738
        %3740 = vrot.lane.b32.xlu0 %v3727, 56
        %v3741 = vpop.permute.xlu0 %3740
        %3742 = vrot.lane.b32.xlu0 %v3731, 56
        %v3743 = vpop.permute.xlu0 %3742
        %3744 = vrot.lane.b32.xlu0 %v3735, 56
        %v3745 = vpop.permute.xlu0 %3744
        %3746 = vrot.lane.b32.xlu0 %v3739, 56
        %v3747 = vpop.permute.xlu0 %3746
        %v3748 = vsel %vm1233, %v3741, %v3743
        %v3749 = vsel %vm1233, %v3743, %v3745
        %v3750 = vsel %vm1233, %v3745, %v3747
        %v3756 = vmul.f32 %v3717, %v3741
        %v3757 = vmul.f32 %v3718, %v3748
        %v3758 = vmul.f32 %v3719, %v3749
        %v3759 = vmul.f32 %v3720, %v3750
        %v3760 = vmul.f32 %v3721, %v3747
        %3766 = vrot.lane.b32.xlu0 %v3756, 72
        %v3767 = vpop.permute.xlu0 %3766
        %3768 = vrot.lane.b32.xlu0 %v3757, 72
        %v3769 = vpop.permute.xlu0 %3768
        %3770 = vrot.lane.b32.xlu0 %v3758, 72
        %v3771 = vpop.permute.xlu0 %3770
        %3772 = vrot.lane.b32.xlu0 %v3759, 72
        %v3773 = vpop.permute.xlu0 %3772
        %3774 = vrot.lane.b32.xlu0 %v3760, 72
        %v3775 = vpop.permute.xlu0 %3774
        %v3776 = vsel %vm1268, %v3767, %v3769
        %v3777 = vsel %vm1268, %v3769, %v3771
        %v3778 = vsel %vm1268, %v3771, %v3773
        %v3779 = vsel %vm1268, %v3773, %v3775
        %3784 = vst [vmem:[#allocation5 + $0x140] sm:$0xff] %v3776
        %3785 = vst [vmem:[#allocation5 + $0x148] sm:$0xff] %v3777
        %3786 = vst [vmem:[#allocation5 + $0x150] sm:$0xff] %v3778
        %3787 = vst [vmem:[#allocation5 + $0x158] sm:$0xff] %v3779
        %v3788 = vld [vmem:[#allocation3 + $0x8] sm:$0xff]
        %v3789 = vld [vmem:[#allocation3 + $0x10] sm:$0xff]
        %v3790 = vld [vmem:[#allocation3 + $0x18] sm:$0xff]
        %v3791 = vld [vmem:[#allocation3 + $0x20] sm:$0xff]
        %v3792 = vld [vmem:[#allocation3 + $0x28] sm:$0xff]
        %v3793 = vld [vmem:[%s537] sm:$0xf]
        %v3795 = vlaneseq
        %v3796 = vshrl.u32 %v3795, 7
        %v3797 = vsub.s32 0, %v3796
        %v3798 = vrot.slane %v3793, %v3797
        %v3799 = vlaneseq
        %v3800 = vshrl.u32 %v3799, 7
        %v3801 = vsub.s32 1, %v3800
        %v3802 = vrot.slane %v3793, %v3801
        %v3803 = vlaneseq
        %v3804 = vshrl.u32 %v3803, 7
        %v3805 = vsub.s32 2, %v3804
        %v3806 = vrot.slane %v3793, %v3805
        %v3807 = vlaneseq
        %v3808 = vshrl.u32 %v3807, 7
        %v3809 = vsub.s32 3, %v3808
        %v3810 = vrot.slane %v3793, %v3809
        %3811 = vrot.lane.b32.xlu0 %v3798, 57
        %v3812 = vpop.permute.xlu0 %3811
        %3813 = vrot.lane.b32.xlu0 %v3802, 57
        %v3814 = vpop.permute.xlu0 %3813
        %3815 = vrot.lane.b32.xlu0 %v3806, 57
        %v3816 = vpop.permute.xlu0 %3815
        %3817 = vrot.lane.b32.xlu0 %v3810, 57
        %v3818 = vpop.permute.xlu0 %3817
        %v3819 = vsel %vm1322, %v3812, %v3814
        %v3820 = vsel %vm1322, %v3814, %v3816
        %v3821 = vsel %vm1322, %v3816, %v3818
        %v3827 = vmul.f32 %v3788, %v3812
        %v3828 = vmul.f32 %v3789, %v3819
        %v3829 = vmul.f32 %v3790, %v3820
        %v3830 = vmul.f32 %v3791, %v3821
        %v3831 = vmul.f32 %v3792, %v3818
        %3837 = vrot.lane.b32.xlu0 %v3827, 71
        %v3838 = vpop.permute.xlu0 %3837
        %3839 = vrot.lane.b32.xlu0 %v3828, 71
        %v3840 = vpop.permute.xlu0 %3839
        %3841 = vrot.lane.b32.xlu0 %v3829, 71
        %v3842 = vpop.permute.xlu0 %3841
        %3843 = vrot.lane.b32.xlu0 %v3830, 71
        %v3844 = vpop.permute.xlu0 %3843
        %3845 = vrot.lane.b32.xlu0 %v3831, 71
        %v3846 = vpop.permute.xlu0 %3845
        %v3847 = vsel %vm1357, %v3838, %v3840
        %v3848 = vsel %vm1357, %v3840, %v3842
        %v3849 = vsel %vm1357, %v3842, %v3844
        %v3850 = vsel %vm1357, %v3844, %v3846
        %3855 = vst [vmem:[#allocation5 + $0x160] sm:$0xff] %v3847
        %3856 = vst [vmem:[#allocation5 + $0x168] sm:$0xff] %v3848
        %3857 = vst [vmem:[#allocation5 + $0x170] sm:$0xff] %v3849
        %3858 = vst [vmem:[#allocation5 + $0x178] sm:$0xff] %v3850
        %v3859 = vld [vmem:[#allocation3 + $0x8] sm:$0xff]
        %v3860 = vld [vmem:[#allocation3 + $0x10] sm:$0xff]
        %v3861 = vld [vmem:[#allocation3 + $0x18] sm:$0xff]
        %v3862 = vld [vmem:[#allocation3 + $0x20] sm:$0xff]
        %v3863 = vld [vmem:[#allocation3 + $0x28] sm:$0xff]
        %v3864 = vld [vmem:[%s627] sm:$0xf]
        %v3866 = vlaneseq
        %v3867 = vshrl.u32 %v3866, 7
        %v3868 = vsub.s32 0, %v3867
        %v3869 = vrot.slane %v3864, %v3868
        %v3870 = vlaneseq
        %v3871 = vshrl.u32 %v3870, 7
        %v3872 = vsub.s32 1, %v3871
        %v3873 = vrot.slane %v3864, %v3872
        %v3874 = vlaneseq
        %v3875 = vshrl.u32 %v3874, 7
        %v3876 = vsub.s32 2, %v3875
        %v3877 = vrot.slane %v3864, %v3876
        %v3878 = vlaneseq
        %v3879 = vshrl.u32 %v3878, 7
        %v3880 = vsub.s32 3, %v3879
        %v3881 = vrot.slane %v3864, %v3880
        %3882 = vrot.lane.b32.xlu0 %v3869, 63
        %v3883 = vpop.permute.xlu0 %3882
        %3884 = vrot.lane.b32.xlu0 %v3873, 63
        %v3885 = vpop.permute.xlu0 %3884
        %3886 = vrot.lane.b32.xlu0 %v3877, 63
        %v3887 = vpop.permute.xlu0 %3886
        %3888 = vrot.lane.b32.xlu0 %v3881, 63
        %v3889 = vpop.permute.xlu0 %3888
        %v3890 = vsel %vm1411, %v3883, %v3885
        %v3891 = vsel %vm1411, %v3885, %v3887
        %v3892 = vsel %vm1411, %v3887, %v3889
        %v3898 = vmul.f32 %v3859, %v3883
        %v3899 = vmul.f32 %v3860, %v3890
        %v3900 = vmul.f32 %v3861, %v3891
        %v3901 = vmul.f32 %v3862, %v3892
        %v3902 = vmul.f32 %v3863, %v3889
        %3908 = vrot.lane.b32.xlu0 %v3898, 65
        %v3909 = vpop.permute.xlu0 %3908
        %3910 = vrot.lane.b32.xlu0 %v3899, 65
        %v3911 = vpop.permute.xlu0 %3910
        %3912 = vrot.lane.b32.xlu0 %v3900, 65
        %v3913 = vpop.permute.xlu0 %3912
        %3914 = vrot.lane.b32.xlu0 %v3901, 65
        %v3915 = vpop.permute.xlu0 %3914
        %3916 = vrot.lane.b32.xlu0 %v3902, 65
        %v3917 = vpop.permute.xlu0 %3916
        %v3918 = vsel %vm1446, %v3909, %v3911
        %v3919 = vsel %vm1446, %v3911, %v3913
        %v3920 = vsel %vm1446, %v3913, %v3915
        %v3921 = vsel %vm1446, %v3915, %v3917
        %3926 = vst [vmem:[#allocation5 + $0x180] sm:$0xff] %v3918
        %3927 = vst [vmem:[#allocation5 + $0x188] sm:$0xff] %v3919
        %3928 = vst [vmem:[#allocation5 + $0x190] sm:$0xff] %v3920
        %3929 = vst [vmem:[#allocation5 + $0x198] sm:$0xff] %v3921
        %v3930 = vld [vmem:[#allocation3 + $0x8] sm:$0xff]
        %v3931 = vld [vmem:[#allocation3 + $0x10] sm:$0xff]
        %v3932 = vld [vmem:[#allocation3 + $0x18] sm:$0xff]
        %v3933 = vld [vmem:[#allocation3 + $0x20] sm:$0xff]
        %v3934 = vld [vmem:[#allocation3 + $0x28] sm:$0xff]
        %v3935 = vld [vmem:[%s716] sm:$0xf]
        %v3937 = vlaneseq
        %v3938 = vshrl.u32 %v3937, 7
        %v3939 = vsub.s32 0, %v3938
        %v3940 = vrot.slane %v3935, %v3939
        %v3941 = vlaneseq
        %v3942 = vshrl.u32 %v3941, 7
        %v3943 = vsub.s32 1, %v3942
        %v3944 = vrot.slane %v3935, %v3943
        %v3945 = vlaneseq
        %v3946 = vshrl.u32 %v3945, 7
        %v3947 = vsub.s32 2, %v3946
        %v3948 = vrot.slane %v3935, %v3947
        %v3949 = vlaneseq
        %v3950 = vshrl.u32 %v3949, 7
        %v3951 = vsub.s32 3, %v3950
        %v3952 = vrot.slane %v3935, %v3951
        %3953 = vrot.lane.b32.xlu0 %v3940, 64
        %v3954 = vpop.permute.xlu0 %3953
        %3955 = vrot.lane.b32.xlu0 %v3944, 64
        %v3956 = vpop.permute.xlu0 %3955
        %3957 = vrot.lane.b32.xlu0 %v3948, 64
        %v3958 = vpop.permute.xlu0 %3957
        %3959 = vrot.lane.b32.xlu0 %v3952, 64
        %v3960 = vpop.permute.xlu0 %3959
        %v3961 = vsel %vm1500, %v3954, %v3956
        %v3962 = vsel %vm1500, %v3956, %v3958
        %v3963 = vsel %vm1500, %v3958, %v3960
        %v3969 = vmul.f32 %v3930, %v3954
        %v3970 = vmul.f32 %v3931, %v3961
        %v3971 = vmul.f32 %v3932, %v3962
        %v3972 = vmul.f32 %v3933, %v3963
        %v3973 = vmul.f32 %v3934, %v3960
        %3979 = vrot.lane.b32.xlu0 %v3969, 64
        %v3980 = vpop.permute.xlu0 %3979
        %3981 = vrot.lane.b32.xlu0 %v3970, 64
        %v3982 = vpop.permute.xlu0 %3981
        %3983 = vrot.lane.b32.xlu0 %v3971, 64
        %v3984 = vpop.permute.xlu0 %3983
        %3985 = vrot.lane.b32.xlu0 %v3972, 64
        %v3986 = vpop.permute.xlu0 %3985
        %3987 = vrot.lane.b32.xlu0 %v3973, 64
        %v3988 = vpop.permute.xlu0 %3987
        %v3989 = vsel %vm1500, %v3980, %v3982
        %v3990 = vsel %vm1500, %v3982, %v3984
        %v3991 = vsel %vm1500, %v3984, %v3986
        %v3992 = vsel %vm1500, %v3986, %v3988
        %3997 = vst [vmem:[#allocation5 + $0x1a0] sm:$0xff] %v3989
        %3998 = vst [vmem:[#allocation5 + $0x1a8] sm:$0xff] %v3990
        %3999 = vst [vmem:[#allocation5 + $0x1b0] sm:$0xff] %v3991
        %4000 = vst [vmem:[#allocation5 + $0x1b8] sm:$0xff] %v3992
        %v4001 = vld [vmem:[#allocation3 + $0x8] sm:$0xff]
        %v4002 = vld [vmem:[#allocation3 + $0x10] sm:$0xff]
        %v4003 = vld [vmem:[#allocation3 + $0x18] sm:$0xff]
        %v4004 = vld [vmem:[#allocation3 + $0x20] sm:$0xff]
        %v4005 = vld [vmem:[#allocation3 + $0x28] sm:$0xff]
        %v4006 = vld [vmem:[%s760] sm:$0xf]
        %v4008 = vlaneseq
        %v4009 = vshrl.u32 %v4008, 7
        %v4010 = vsub.s32 0, %v4009
        %v4011 = vrot.slane %v4006, %v4010
        %v4012 = vlaneseq
        %v4013 = vshrl.u32 %v4012, 7
        %v4014 = vsub.s32 1, %v4013
        %v4015 = vrot.slane %v4006, %v4014
        %v4016 = vlaneseq
        %v4017 = vshrl.u32 %v4016, 7
        %v4018 = vsub.s32 2, %v4017
        %v4019 = vrot.slane %v4006, %v4018
        %v4020 = vlaneseq
        %v4021 = vshrl.u32 %v4020, 7
        %v4022 = vsub.s32 3, %v4021
        %v4023 = vrot.slane %v4006, %v4022
        %4024 = vrot.lane.b32.xlu0 %v4011, 65
        %v4025 = vpop.permute.xlu0 %4024
        %4026 = vrot.lane.b32.xlu0 %v4015, 65
        %v4027 = vpop.permute.xlu0 %4026
        %4028 = vrot.lane.b32.xlu0 %v4019, 65
        %v4029 = vpop.permute.xlu0 %4028
        %4030 = vrot.lane.b32.xlu0 %v4023, 65
        %v4031 = vpop.permute.xlu0 %4030
        %v4032 = vsel %vm1446, %v4025, %v4027
        %v4033 = vsel %vm1446, %v4027, %v4029
        %v4034 = vsel %vm1446, %v4029, %v4031
        %v4040 = vmul.f32 %v4001, %v4025
        %v4041 = vmul.f32 %v4002, %v4032
        %v4042 = vmul.f32 %v4003, %v4033
        %v4043 = vmul.f32 %v4004, %v4034
        %v4044 = vmul.f32 %v4005, %v4031
        %4050 = vrot.lane.b32.xlu0 %v4040, 63
        %v4051 = vpop.permute.xlu0 %4050
        %4052 = vrot.lane.b32.xlu0 %v4041, 63
        %v4053 = vpop.permute.xlu0 %4052
        %4054 = vrot.lane.b32.xlu0 %v4042, 63
        %v4055 = vpop.permute.xlu0 %4054
        %4056 = vrot.lane.b32.xlu0 %v4043, 63
        %v4057 = vpop.permute.xlu0 %4056
        %4058 = vrot.lane.b32.xlu0 %v4044, 63
        %v4059 = vpop.permute.xlu0 %4058
        %v4060 = vsel %vm1411, %v4051, %v4053
        %v4061 = vsel %vm1411, %v4053, %v4055
        %v4062 = vsel %vm1411, %v4055, %v4057
        %v4063 = vsel %vm1411, %v4057, %v4059
        %4068 = vst [vmem:[#allocation5 + $0x1c0] sm:$0xff] %v4060
        %4069 = vst [vmem:[#allocation5 + $0x1c8] sm:$0xff] %v4061
        %4070 = vst [vmem:[#allocation5 + $0x1d0] sm:$0xff] %v4062
        %4071 = vst [vmem:[#allocation5 + $0x1d8] sm:$0xff] %v4063
        %v4072 = vld [vmem:[#allocation3 + $0x8] sm:$0xff]
        %v4073 = vld [vmem:[#allocation3 + $0x10] sm:$0xff]
        %v4074 = vld [vmem:[#allocation3 + $0x18] sm:$0xff]
        %v4075 = vld [vmem:[#allocation3 + $0x20] sm:$0xff]
        %v4076 = vld [vmem:[#allocation3 + $0x28] sm:$0xff]
        %v4077 = vld [vmem:[%s848] sm:$0xf]
        %v4079 = vlaneseq
        %v4080 = vshrl.u32 %v4079, 7
        %v4081 = vsub.s32 0, %v4080
        %v4082 = vrot.slane %v4077, %v4081
        %v4083 = vlaneseq
        %v4084 = vshrl.u32 %v4083, 7
        %v4085 = vsub.s32 1, %v4084
        %v4086 = vrot.slane %v4077, %v4085
        %v4087 = vlaneseq
        %v4088 = vshrl.u32 %v4087, 7
        %v4089 = vsub.s32 2, %v4088
        %v4090 = vrot.slane %v4077, %v4089
        %v4091 = vlaneseq
        %v4092 = vshrl.u32 %v4091, 7
        %v4093 = vsub.s32 3, %v4092
        %v4094 = vrot.slane %v4077, %v4093
        %4095 = vrot.lane.b32.xlu0 %v4082, 71
        %v4096 = vpop.permute.xlu0 %4095
        %4097 = vrot.lane.b32.xlu0 %v4086, 71
        %v4098 = vpop.permute.xlu0 %4097
        %4099 = vrot.lane.b32.xlu0 %v4090, 71
        %v4100 = vpop.permute.xlu0 %4099
        %4101 = vrot.lane.b32.xlu0 %v4094, 71
        %v4102 = vpop.permute.xlu0 %4101
        %v4103 = vsel %vm1357, %v4096, %v4098
        %v4104 = vsel %vm1357, %v4098, %v4100
        %v4105 = vsel %vm1357, %v4100, %v4102
        %v4111 = vmul.f32 %v4072, %v4096
        %v4112 = vmul.f32 %v4073, %v4103
        %v4113 = vmul.f32 %v4074, %v4104
        %v4114 = vmul.f32 %v4075, %v4105
        %v4115 = vmul.f32 %v4076, %v4102
        %4121 = vrot.lane.b32.xlu0 %v4111, 57
        %v4122 = vpop.permute.xlu0 %4121
        %4123 = vrot.lane.b32.xlu0 %v4112, 57
        %v4124 = vpop.permute.xlu0 %4123
        %4125 = vrot.lane.b32.xlu0 %v4113, 57
        %v4126 = vpop.permute.xlu0 %4125
        %4127 = vrot.lane.b32.xlu0 %v4114, 57
        %v4128 = vpop.permute.xlu0 %4127
        %4129 = vrot.lane.b32.xlu0 %v4115, 57
        %v4130 = vpop.permute.xlu0 %4129
        %v4131 = vsel %vm1322, %v4122, %v4124
        %v4132 = vsel %vm1322, %v4124, %v4126
        %v4133 = vsel %vm1322, %v4126, %v4128
        %v4134 = vsel %vm1322, %v4128, %v4130
        %4139 = vst [vmem:[#allocation5 + $0x1e0] sm:$0xff] %v4131
        %4140 = vst [vmem:[#allocation5 + $0x1e8] sm:$0xff] %v4132
        %4141 = vst [vmem:[#allocation5 + $0x1f0] sm:$0xff] %v4133
        %4142 = vst [vmem:[#allocation5 + $0x1f8] sm:$0xff] %v4134
        %v4143 = vld [vmem:[#allocation3 + $0x8] sm:$0xff]
        %v4144 = vld [vmem:[#allocation3 + $0x10] sm:$0xff]
        %v4145 = vld [vmem:[#allocation3 + $0x18] sm:$0xff]
        %v4146 = vld [vmem:[#allocation3 + $0x20] sm:$0xff]
        %v4147 = vld [vmem:[#allocation3 + $0x28] sm:$0xff]
        %v4148 = vld [vmem:[%s936] sm:$0xf]
        %v4150 = vlaneseq
        %v4151 = vshrl.u32 %v4150, 7
        %v4152 = vsub.s32 0, %v4151
        %v4153 = vrot.slane %v4148, %v4152
        %v4154 = vlaneseq
        %v4155 = vshrl.u32 %v4154, 7
        %v4156 = vsub.s32 1, %v4155
        %v4157 = vrot.slane %v4148, %v4156
        %v4158 = vlaneseq
        %v4159 = vshrl.u32 %v4158, 7
        %v4160 = vsub.s32 2, %v4159
        %v4161 = vrot.slane %v4148, %v4160
        %v4162 = vlaneseq
        %v4163 = vshrl.u32 %v4162, 7
        %v4164 = vsub.s32 3, %v4163
        %v4165 = vrot.slane %v4148, %v4164
        %4166 = vrot.lane.b32.xlu0 %v4153, 72
        %v4167 = vpop.permute.xlu0 %4166
        %4168 = vrot.lane.b32.xlu0 %v4157, 72
        %v4169 = vpop.permute.xlu0 %4168
        %4170 = vrot.lane.b32.xlu0 %v4161, 72
        %v4171 = vpop.permute.xlu0 %4170
        %4172 = vrot.lane.b32.xlu0 %v4165, 72
        %v4173 = vpop.permute.xlu0 %4172
        %v4174 = vsel %vm1268, %v4167, %v4169
        %v4175 = vsel %vm1268, %v4169, %v4171
        %v4176 = vsel %vm1268, %v4171, %v4173
        %v4182 = vmul.f32 %v4143, %v4167
        %v4183 = vmul.f32 %v4144, %v4174
        %v4184 = vmul.f32 %v4145, %v4175
        %v4185 = vmul.f32 %v4146, %v4176
        %v4186 = vmul.f32 %v4147, %v4173
        %4192 = vrot.lane.b32.xlu0 %v4182, 56
        %v4193 = vpop.permute.xlu0 %4192
        %4194 = vrot.lane.b32.xlu0 %v4183, 56
        %v4195 = vpop.permute.xlu0 %4194
        %4196 = vrot.lane.b32.xlu0 %v4184, 56
        %v4197 = vpop.permute.xlu0 %4196
        %4198 = vrot.lane.b32.xlu0 %v4185, 56
        %v4199 = vpop.permute.xlu0 %4198
        %4200 = vrot.lane.b32.xlu0 %v4186, 56
        %v4201 = vpop.permute.xlu0 %4200
        %v4202 = vsel %vm1233, %v4193, %v4195
        %v4203 = vsel %vm1233, %v4195, %v4197
        %v4204 = vsel %vm1233, %v4197, %v4199
        %v4205 = vsel %vm1233, %v4199, %v4201
        %4210 = vst [vmem:[#allocation5 + $0x200] sm:$0xff] %v4202
        %4211 = vst [vmem:[#allocation5 + $0x208] sm:$0xff] %v4203
        %4212 = vst [vmem:[#allocation5 + $0x210] sm:$0xff] %v4204
        %4213 = vst [vmem:[#allocation5 + $0x218] sm:$0xff] %v4205
        %v4214 = vld [vmem:[#allocation3 + $0x8] sm:$0xff]
        %v4215 = vld [vmem:[#allocation3 + $0x10] sm:$0xff]
        %v4216 = vld [vmem:[#allocation3 + $0x18] sm:$0xff]
        %v4217 = vld [vmem:[#allocation3 + $0x20] sm:$0xff]
        %v4218 = vld [vmem:[#allocation3 + $0x28] sm:$0xff]
        %v4219 = vld [vmem:[%s1024] sm:$0xf]
        %v4221 = vlaneseq
        %v4222 = vshrl.u32 %v4221, 7
        %v4223 = vsub.s32 0, %v4222
        %v4224 = vrot.slane %v4219, %v4223
        %v4225 = vlaneseq
        %v4226 = vshrl.u32 %v4225, 7
        %v4227 = vsub.s32 1, %v4226
        %v4228 = vrot.slane %v4219, %v4227
        %v4229 = vlaneseq
        %v4230 = vshrl.u32 %v4229, 7
        %v4231 = vsub.s32 2, %v4230
        %v4232 = vrot.slane %v4219, %v4231
        %v4233 = vlaneseq
        %v4234 = vshrl.u32 %v4233, 7
        %v4235 = vsub.s32 3, %v4234
        %v4236 = vrot.slane %v4219, %v4235
        %4237 = vrot.lane.b32.xlu0 %v4224, 73
        %v4238 = vpop.permute.xlu0 %4237
        %4239 = vrot.lane.b32.xlu0 %v4228, 73
        %v4240 = vpop.permute.xlu0 %4239
        %4241 = vrot.lane.b32.xlu0 %v4232, 73
        %v4242 = vpop.permute.xlu0 %4241
        %4243 = vrot.lane.b32.xlu0 %v4236, 73
        %v4244 = vpop.permute.xlu0 %4243
        %v4245 = vsel %vm1179, %v4238, %v4240
        %v4246 = vsel %vm1179, %v4240, %v4242
        %v4247 = vsel %vm1179, %v4242, %v4244
        %v4253 = vmul.f32 %v4214, %v4238
        %v4254 = vmul.f32 %v4215, %v4245
        %v4255 = vmul.f32 %v4216, %v4246
        %v4256 = vmul.f32 %v4217, %v4247
        %v4257 = vmul.f32 %v4218, %v4244
        %4263 = vrot.lane.b32.xlu0 %v4253, 55
        %v4264 = vpop.permute.xlu0 %4263
        %4265 = vrot.lane.b32.xlu0 %v4254, 55
        %v4266 = vpop.permute.xlu0 %4265
        %4267 = vrot.lane.b32.xlu0 %v4255, 55
        %v4268 = vpop.permute.xlu0 %4267
        %4269 = vrot.lane.b32.xlu0 %v4256, 55
        %v4270 = vpop.permute.xlu0 %4269
        %4271 = vrot.lane.b32.xlu0 %v4257, 55
        %v4272 = vpop.permute.xlu0 %4271
        %v4273 = vsel %vm1144, %v4264, %v4266
        %v4274 = vsel %vm1144, %v4266, %v4268
        %v4275 = vsel %vm1144, %v4268, %v4270
        %v4276 = vsel %vm1144, %v4270, %v4272
        %4281 = vst [vmem:[#allocation5 + $0x220] sm:$0xff] %v4273
        %4282 = vst [vmem:[#allocation5 + $0x228] sm:$0xff] %v4274
        %4283 = vst [vmem:[#allocation5 + $0x230] sm:$0xff] %v4275
        %4284 = vst [vmem:[#allocation5 + $0x238] sm:$0xff] %v4276
        %v4285 = vld [vmem:[#allocation3 + $0x8] sm:$0xff]
        %v4286 = vld [vmem:[#allocation3 + $0x10] sm:$0xff]
        %v4287 = vld [vmem:[#allocation3 + $0x18] sm:$0xff]
        %v4288 = vld [vmem:[#allocation3 + $0x20] sm:$0xff]
        %v4289 = vld [vmem:[#allocation3 + $0x28] sm:$0xff]
        %v4290 = vld [vmem:[#allocation9] sm:$0xf]
        %v4292 = vlaneseq
        %v4293 = vshrl.u32 %v4292, 7
        %v4294 = vsub.s32 0, %v4293
        %v4295 = vrot.slane %v4290, %v4294
        %v4296 = vlaneseq
        %v4297 = vshrl.u32 %v4296, 7
        %v4298 = vsub.s32 1, %v4297
        %v4299 = vrot.slane %v4290, %v4298
        %v4300 = vlaneseq
        %v4301 = vshrl.u32 %v4300, 7
        %v4302 = vsub.s32 2, %v4301
        %v4303 = vrot.slane %v4290, %v4302
        %v4304 = vlaneseq
        %v4305 = vshrl.u32 %v4304, 7
        %v4306 = vsub.s32 3, %v4305
        %v4307 = vrot.slane %v4290, %v4306
        %4308 = vrot.lane.b32.xlu0 %v4295, 119
        %v4309 = vpop.permute.xlu0 %4308
        %4310 = vrot.lane.b32.xlu0 %v4299, 119
        %v4311 = vpop.permute.xlu0 %4310
        %4312 = vrot.lane.b32.xlu0 %v4303, 119
        %v4313 = vpop.permute.xlu0 %4312
        %4314 = vrot.lane.b32.xlu0 %v4307, 119
        %v4315 = vpop.permute.xlu0 %4314
        %v4316 = vsel %vm390, %v4309, %v4311
        %v4317 = vsel %vm390, %v4311, %v4313
        %v4318 = vsel %vm390, %v4313, %v4315
        %v4324 = vmul.f32 %v4285, %v4309
        %v4325 = vmul.f32 %v4286, %v4316
        %v4326 = vmul.f32 %v4287, %v4317
        %v4327 = vmul.f32 %v4288, %v4318
        %v4328 = vmul.f32 %v4289, %v4315
        %4334 = vrot.lane.b32.xlu0 %v4324, 9
        %v4335 = vpop.permute.xlu0 %4334
        %4336 = vrot.lane.b32.xlu0 %v4325, 9
        %v4337 = vpop.permute.xlu0 %4336
        %4338 = vrot.lane.b32.xlu0 %v4326, 9
        %v4339 = vpop.permute.xlu0 %4338
        %4340 = vrot.lane.b32.xlu0 %v4327, 9
        %v4341 = vpop.permute.xlu0 %4340
        %4342 = vrot.lane.b32.xlu0 %v4328, 9
        %v4343 = vpop.permute.xlu0 %4342
        %v4344 = vsel %vm425, %v4335, %v4337
        %v4345 = vsel %vm425, %v4337, %v4339
        %v4346 = vsel %vm425, %v4339, %v4341
        %v4347 = vsel %vm425, %v4341, %v4343
        %4352 = vst [vmem:[#allocation5 + $0x240] sm:$0xff] %v4344
        %4353 = vst [vmem:[#allocation5 + $0x248] sm:$0xff] %v4345
        %4354 = vst [vmem:[#allocation5 + $0x250] sm:$0xff] %v4346
        %4355 = vst [vmem:[#allocation5 + $0x258] sm:$0xff] %v4347
        %v4356 = vld [vmem:[#allocation3 + $0x8] sm:$0xff]
        %v4357 = vld [vmem:[#allocation3 + $0x10] sm:$0xff]
        %v4358 = vld [vmem:[#allocation3 + $0x18] sm:$0xff]
        %v4359 = vld [vmem:[#allocation3 + $0x20] sm:$0xff]
        %v4360 = vld [vmem:[#allocation3 + $0x28] sm:$0xff]
        %v4361 = vld [vmem:[%s447] sm:$0xf]
        %v4363 = vlaneseq
        %v4364 = vshrl.u32 %v4363, 7
        %v4365 = vsub.s32 0, %v4364
        %v4366 = vrot.slane %v4361, %v4365
        %v4367 = vlaneseq
        %v4368 = vshrl.u32 %v4367, 7
        %v4369 = vsub.s32 1, %v4368
        %v4370 = vrot.slane %v4361, %v4369
        %v4371 = vlaneseq
        %v4372 = vshrl.u32 %v4371, 7
        %v4373 = vsub.s32 2, %v4372
        %v4374 = vrot.slane %v4361, %v4373
        %v4375 = vlaneseq
        %v4376 = vshrl.u32 %v4375, 7
        %v4377 = vsub.s32 3, %v4376
        %v4378 = vrot.slane %v4361, %v4377
        %4379 = vrot.lane.b32.xlu0 %v4366, 120
        %v4380 = vpop.permute.xlu0 %4379
        %4381 = vrot.lane.b32.xlu0 %v4370, 120
        %v4382 = vpop.permute.xlu0 %4381
        %4383 = vrot.lane.b32.xlu0 %v4374, 120
        %v4384 = vpop.permute.xlu0 %4383
        %4385 = vrot.lane.b32.xlu0 %v4378, 120
        %v4386 = vpop.permute.xlu0 %4385
        %v4387 = vsel %vm480, %v4380, %v4382
        %v4388 = vsel %vm480, %v4382, %v4384
        %v4389 = vsel %vm480, %v4384, %v4386
        %v4395 = vmul.f32 %v4356, %v4380
        %v4396 = vmul.f32 %v4357, %v4387
        %v4397 = vmul.f32 %v4358, %v4388
        %v4398 = vmul.f32 %v4359, %v4389
        %v4399 = vmul.f32 %v4360, %v4386
        %4405 = vrot.lane.b32.xlu0 %v4395, 8
        %v4406 = vpop.permute.xlu0 %4405
        %4407 = vrot.lane.b32.xlu0 %v4396, 8
        %v4408 = vpop.permute.xlu0 %4407
        %4409 = vrot.lane.b32.xlu0 %v4397, 8
        %v4410 = vpop.permute.xlu0 %4409
        %4411 = vrot.lane.b32.xlu0 %v4398, 8
        %v4412 = vpop.permute.xlu0 %4411
        %4413 = vrot.lane.b32.xlu0 %v4399, 8
        %v4414 = vpop.permute.xlu0 %4413
        %v4415 = vsel %vm515, %v4406, %v4408
        %v4416 = vsel %vm515, %v4408, %v4410
        %v4417 = vsel %vm515, %v4410, %v4412
        %v4418 = vsel %vm515, %v4412, %v4414
        %4423 = vst [vmem:[#allocation5 + $0x260] sm:$0xff] %v4415
        %4424 = vst [vmem:[#allocation5 + $0x268] sm:$0xff] %v4416
        %4425 = vst [vmem:[#allocation5 + $0x270] sm:$0xff] %v4417
        %4426 = vst [vmem:[#allocation5 + $0x278] sm:$0xff] %v4418
        %v4427 = vld [vmem:[#allocation3 + $0x8] sm:$0xff]
        %v4428 = vld [vmem:[#allocation3 + $0x10] sm:$0xff]
        %v4429 = vld [vmem:[#allocation3 + $0x18] sm:$0xff]
        %v4430 = vld [vmem:[#allocation3 + $0x20] sm:$0xff]
        %v4431 = vld [vmem:[#allocation3 + $0x28] sm:$0xff]
        %v4432 = vld [vmem:[%s537] sm:$0xf]
        %v4434 = vlaneseq
        %v4435 = vshrl.u32 %v4434, 7
        %v4436 = vsub.s32 0, %v4435
        %v4437 = vrot.slane %v4432, %v4436
        %v4438 = vlaneseq
        %v4439 = vshrl.u32 %v4438, 7
        %v4440 = vsub.s32 1, %v4439
        %v4441 = vrot.slane %v4432, %v4440
        %v4442 = vlaneseq
        %v4443 = vshrl.u32 %v4442, 7
        %v4444 = vsub.s32 2, %v4443
        %v4445 = vrot.slane %v4432, %v4444
        %v4446 = vlaneseq
        %v4447 = vshrl.u32 %v4446, 7
        %v4448 = vsub.s32 3, %v4447
        %v4449 = vrot.slane %v4432, %v4448
        %4450 = vrot.lane.b32.xlu0 %v4437, 121
        %v4451 = vpop.permute.xlu0 %4450
        %4452 = vrot.lane.b32.xlu0 %v4441, 121
        %v4453 = vpop.permute.xlu0 %4452
        %4454 = vrot.lane.b32.xlu0 %v4445, 121
        %v4455 = vpop.permute.xlu0 %4454
        %4456 = vrot.lane.b32.xlu0 %v4449, 121
        %v4457 = vpop.permute.xlu0 %4456
        %v4458 = vsel %vm570, %v4451, %v4453
        %v4459 = vsel %vm570, %v4453, %v4455
        %v4460 = vsel %vm570, %v4455, %v4457
        %v4466 = vmul.f32 %v4427, %v4451
        %v4467 = vmul.f32 %v4428, %v4458
        %v4468 = vmul.f32 %v4429, %v4459
        %v4469 = vmul.f32 %v4430, %v4460
        %v4470 = vmul.f32 %v4431, %v4457
        %4476 = vrot.lane.b32.xlu0 %v4466, 7
        %v4477 = vpop.permute.xlu0 %4476
        %4478 = vrot.lane.b32.xlu0 %v4467, 7
        %v4479 = vpop.permute.xlu0 %4478
        %4480 = vrot.lane.b32.xlu0 %v4468, 7
        %v4481 = vpop.permute.xlu0 %4480
        %4482 = vrot.lane.b32.xlu0 %v4469, 7
        %v4483 = vpop.permute.xlu0 %4482
        %4484 = vrot.lane.b32.xlu0 %v4470, 7
        %v4485 = vpop.permute.xlu0 %4484
        %v4486 = vsel %vm605, %v4477, %v4479
        %v4487 = vsel %vm605, %v4479, %v4481
        %v4488 = vsel %vm605, %v4481, %v4483
        %v4489 = vsel %vm605, %v4483, %v4485
        %4494 = vst [vmem:[#allocation5 + $0x280] sm:$0xff] %v4486
        %4495 = vst [vmem:[#allocation5 + $0x288] sm:$0xff] %v4487
        %4496 = vst [vmem:[#allocation5 + $0x290] sm:$0xff] %v4488
        %4497 = vst [vmem:[#allocation5 + $0x298] sm:$0xff] %v4489
        %v4498 = vld [vmem:[#allocation3 + $0x8] sm:$0xff]
        %v4499 = vld [vmem:[#allocation3 + $0x10] sm:$0xff]
        %v4500 = vld [vmem:[#allocation3 + $0x18] sm:$0xff]
        %v4501 = vld [vmem:[#allocation3 + $0x20] sm:$0xff]
        %v4502 = vld [vmem:[#allocation3 + $0x28] sm:$0xff]
        %v4503 = vld [vmem:[%s627] sm:$0xf]
        %v4505 = vlaneseq
        %v4506 = vshrl.u32 %v4505, 7
        %v4507 = vsub.s32 0, %v4506
        %v4508 = vrot.slane %v4503, %v4507
        %v4509 = vlaneseq
        %v4510 = vshrl.u32 %v4509, 7
        %v4511 = vsub.s32 1, %v4510
        %v4512 = vrot.slane %v4503, %v4511
        %v4513 = vlaneseq
        %v4514 = vshrl.u32 %v4513, 7
        %v4515 = vsub.s32 2, %v4514
        %v4516 = vrot.slane %v4503, %v4515
        %v4517 = vlaneseq
        %v4518 = vshrl.u32 %v4517, 7
        %v4519 = vsub.s32 3, %v4518
        %v4520 = vrot.slane %v4503, %v4519
        %4521 = vrot.lane.b32.xlu0 %v4508, 127
        %v4522 = vpop.permute.xlu0 %4521
        %4523 = vrot.lane.b32.xlu0 %v4512, 127
        %v4524 = vpop.permute.xlu0 %4523
        %4525 = vrot.lane.b32.xlu0 %v4516, 127
        %v4526 = vpop.permute.xlu0 %4525
        %4527 = vrot.lane.b32.xlu0 %v4520, 127
        %v4528 = vpop.permute.xlu0 %4527
        %v4529 = vsel %vm660, %v4522, %v4524
        %v4530 = vsel %vm660, %v4524, %v4526
        %v4531 = vsel %vm660, %v4526, %v4528
        %v4537 = vmul.f32 %v4498, %v4522
        %v4538 = vmul.f32 %v4499, %v4529
        %v4539 = vmul.f32 %v4500, %v4530
        %v4540 = vmul.f32 %v4501, %v4531
        %v4541 = vmul.f32 %v4502, %v4528
        %4547 = vrot.lane.b32.xlu0 %v4537, 1
        %v4548 = vpop.permute.xlu0 %4547
        %4549 = vrot.lane.b32.xlu0 %v4538, 1
        %v4550 = vpop.permute.xlu0 %4549
        %4551 = vrot.lane.b32.xlu0 %v4539, 1
        %v4552 = vpop.permute.xlu0 %4551
        %4553 = vrot.lane.b32.xlu0 %v4540, 1
        %v4554 = vpop.permute.xlu0 %4553
        %4555 = vrot.lane.b32.xlu0 %v4541, 1
        %v4556 = vpop.permute.xlu0 %4555
        %v4557 = vsel %vm695, %v4548, %v4550
        %v4558 = vsel %vm695, %v4550, %v4552
        %v4559 = vsel %vm695, %v4552, %v4554
        %v4560 = vsel %vm695, %v4554, %v4556
        %4565 = vst [vmem:[#allocation5 + $0x2a0] sm:$0xff] %v4557
        %4566 = vst [vmem:[#allocation5 + $0x2a8] sm:$0xff] %v4558
        %4567 = vst [vmem:[#allocation5 + $0x2b0] sm:$0xff] %v4559
        %4568 = vst [vmem:[#allocation5 + $0x2b8] sm:$0xff] %v4560
        %v4569 = vld [vmem:[#allocation3 + $0x10] sm:$0xff]
        %v4570 = vld [vmem:[#allocation3 + $0x18] sm:$0xff]
        %v4571 = vld [vmem:[#allocation3 + $0x20] sm:$0xff]
        %v4572 = vld [vmem:[#allocation3 + $0x28] sm:$0xff]
        %v4573 = vld [vmem:[%s716] sm:$0xf]
        %v4575 = vlaneseq
        %v4576 = vshrl.u32 %v4575, 7
        %v4577 = vsub.s32 0, %v4576
        %v4578 = vrot.slane %v4573, %v4577
        %v4579 = vlaneseq
        %v4580 = vshrl.u32 %v4579, 7
        %v4581 = vsub.s32 1, %v4580
        %v4582 = vrot.slane %v4573, %v4581
        %v4583 = vlaneseq
        %v4584 = vshrl.u32 %v4583, 7
        %v4585 = vsub.s32 2, %v4584
        %v4586 = vrot.slane %v4573, %v4585
        %v4587 = vlaneseq
        %v4588 = vshrl.u32 %v4587, 7
        %v4589 = vsub.s32 3, %v4588
        %v4590 = vrot.slane %v4573, %v4589
        %v4595 = vmul.f32 %v4569, %v4578
        %v4596 = vmul.f32 %v4570, %v4582
        %v4597 = vmul.f32 %v4571, %v4586
        %v4598 = vmul.f32 %v4572, %v4590
        %4599 = vst [vmem:[#allocation5 + $0x2c0] sm:$0xff] %v4595
        %4600 = vst [vmem:[#allocation5 + $0x2c8] sm:$0xff] %v4596
        %4601 = vst [vmem:[#allocation5 + $0x2d0] sm:$0xff] %v4597
        %4602 = vst [vmem:[#allocation5 + $0x2d8] sm:$0xff] %v4598
        %v4603 = vld [vmem:[#allocation3 + $0x10] sm:$0xff]
        %v4604 = vld [vmem:[#allocation3 + $0x18] sm:$0xff]
        %v4605 = vld [vmem:[#allocation3 + $0x20] sm:$0xff]
        %v4606 = vld [vmem:[#allocation3 + $0x28] sm:$0xff]
        %v4607 = vld [vmem:[#allocation3 + $0x30] sm:$0xff]
        %v4608 = vld [vmem:[%s760] sm:$0xf]
        %v4610 = vlaneseq
        %v4611 = vshrl.u32 %v4610, 7
        %v4612 = vsub.s32 0, %v4611
        %v4613 = vrot.slane %v4608, %v4612
        %v4614 = vlaneseq
        %v4615 = vshrl.u32 %v4614, 7
        %v4616 = vsub.s32 1, %v4615
        %v4617 = vrot.slane %v4608, %v4616
        %v4618 = vlaneseq
        %v4619 = vshrl.u32 %v4618, 7
        %v4620 = vsub.s32 2, %v4619
        %v4621 = vrot.slane %v4608, %v4620
        %v4622 = vlaneseq
        %v4623 = vshrl.u32 %v4622, 7
        %v4624 = vsub.s32 3, %v4623
        %v4625 = vrot.slane %v4608, %v4624
        %4626 = vrot.lane.b32.xlu0 %v4613, 1
        %v4627 = vpop.permute.xlu0 %4626
        %4628 = vrot.lane.b32.xlu0 %v4617, 1
        %v4629 = vpop.permute.xlu0 %4628
        %4630 = vrot.lane.b32.xlu0 %v4621, 1
        %v4631 = vpop.permute.xlu0 %4630
        %4632 = vrot.lane.b32.xlu0 %v4625, 1
        %v4633 = vpop.permute.xlu0 %4632
        %v4634 = vsel %vm695, %v4627, %v4629
        %v4635 = vsel %vm695, %v4629, %v4631
        %v4636 = vsel %vm695, %v4631, %v4633
        %v4642 = vmul.f32 %v4603, %v4627
        %v4643 = vmul.f32 %v4604, %v4634
        %v4644 = vmul.f32 %v4605, %v4635
        %v4645 = vmul.f32 %v4606, %v4636
        %v4646 = vmul.f32 %v4607, %v4633
        %4652 = vrot.lane.b32.xlu0 %v4642, 127
        %v4653 = vpop.permute.xlu0 %4652
        %4654 = vrot.lane.b32.xlu0 %v4643, 127
        %v4655 = vpop.permute.xlu0 %4654
        %4656 = vrot.lane.b32.xlu0 %v4644, 127
        %v4657 = vpop.permute.xlu0 %4656
        %4658 = vrot.lane.b32.xlu0 %v4645, 127
        %v4659 = vpop.permute.xlu0 %4658
        %4660 = vrot.lane.b32.xlu0 %v4646, 127
        %v4661 = vpop.permute.xlu0 %4660
        %v4662 = vsel %vm660, %v4653, %v4655
        %v4663 = vsel %vm660, %v4655, %v4657
        %v4664 = vsel %vm660, %v4657, %v4659
        %v4665 = vsel %vm660, %v4659, %v4661
        %4670 = vst [vmem:[#allocation5 + $0x2e0] sm:$0xff] %v4662
        %4671 = vst [vmem:[#allocation5 + $0x2e8] sm:$0xff] %v4663
        %4672 = vst [vmem:[#allocation5 + $0x2f0] sm:$0xff] %v4664
        %4673 = vst [vmem:[#allocation5 + $0x2f8] sm:$0xff] %v4665
        %v4674 = vld [vmem:[#allocation3 + $0x10] sm:$0xff]
        %v4675 = vld [vmem:[#allocation3 + $0x18] sm:$0xff]
        %v4676 = vld [vmem:[#allocation3 + $0x20] sm:$0xff]
        %v4677 = vld [vmem:[#allocation3 + $0x28] sm:$0xff]
        %v4678 = vld [vmem:[#allocation3 + $0x30] sm:$0xff]
        %v4679 = vld [vmem:[%s848] sm:$0xf]
        %v4681 = vlaneseq
        %v4682 = vshrl.u32 %v4681, 7
        %v4683 = vsub.s32 0, %v4682
        %v4684 = vrot.slane %v4679, %v4683
        %v4685 = vlaneseq
        %v4686 = vshrl.u32 %v4685, 7
        %v4687 = vsub.s32 1, %v4686
        %v4688 = vrot.slane %v4679, %v4687
        %v4689 = vlaneseq
        %v4690 = vshrl.u32 %v4689, 7
        %v4691 = vsub.s32 2, %v4690
        %v4692 = vrot.slane %v4679, %v4691
        %v4693 = vlaneseq
        %v4694 = vshrl.u32 %v4693, 7
        %v4695 = vsub.s32 3, %v4694
        %v4696 = vrot.slane %v4679, %v4695
        %4697 = vrot.lane.b32.xlu0 %v4684, 7
        %v4698 = vpop.permute.xlu0 %4697
        %4699 = vrot.lane.b32.xlu0 %v4688, 7
        %v4700 = vpop.permute.xlu0 %4699
        %4701 = vrot.lane.b32.xlu0 %v4692, 7
        %v4702 = vpop.permute.xlu0 %4701
        %4703 = vrot.lane.b32.xlu0 %v4696, 7
        %v4704 = vpop.permute.xlu0 %4703
        %v4705 = vsel %vm605, %v4698, %v4700
        %v4706 = vsel %vm605, %v4700, %v4702
        %v4707 = vsel %vm605, %v4702, %v4704
        %v4713 = vmul.f32 %v4674, %v4698
        %v4714 = vmul.f32 %v4675, %v4705
        %v4715 = vmul.f32 %v4676, %v4706
        %v4716 = vmul.f32 %v4677, %v4707
        %v4717 = vmul.f32 %v4678, %v4704
        %4723 = vrot.lane.b32.xlu0 %v4713, 121
        %v4724 = vpop.permute.xlu0 %4723
        %4725 = vrot.lane.b32.xlu0 %v4714, 121
        %v4726 = vpop.permute.xlu0 %4725
        %4727 = vrot.lane.b32.xlu0 %v4715, 121
        %v4728 = vpop.permute.xlu0 %4727
        %4729 = vrot.lane.b32.xlu0 %v4716, 121
        %v4730 = vpop.permute.xlu0 %4729
        %4731 = vrot.lane.b32.xlu0 %v4717, 121
        %v4732 = vpop.permute.xlu0 %4731
        %v4733 = vsel %vm570, %v4724, %v4726
        %v4734 = vsel %vm570, %v4726, %v4728
        %v4735 = vsel %vm570, %v4728, %v4730
        %v4736 = vsel %vm570, %v4730, %v4732
        %4741 = vst [vmem:[#allocation5 + $0x300] sm:$0xff] %v4733
        %4742 = vst [vmem:[#allocation5 + $0x308] sm:$0xff] %v4734
        %4743 = vst [vmem:[#allocation5 + $0x310] sm:$0xff] %v4735
        %4744 = vst [vmem:[#allocation5 + $0x318] sm:$0xff] %v4736
        %v4745 = vld [vmem:[#allocation3 + $0x10] sm:$0xff]
        %v4746 = vld [vmem:[#allocation3 + $0x18] sm:$0xff]
        %v4747 = vld [vmem:[#allocation3 + $0x20] sm:$0xff]
        %v4748 = vld [vmem:[#allocation3 + $0x28] sm:$0xff]
        %v4749 = vld [vmem:[#allocation3 + $0x30] sm:$0xff]
        %v4750 = vld [vmem:[%s936] sm:$0xf]
        %v4752 = vlaneseq
        %v4753 = vshrl.u32 %v4752, 7
        %v4754 = vsub.s32 0, %v4753
        %v4755 = vrot.slane %v4750, %v4754
        %v4756 = vlaneseq
        %v4757 = vshrl.u32 %v4756, 7
        %v4758 = vsub.s32 1, %v4757
        %v4759 = vrot.slane %v4750, %v4758
        %v4760 = vlaneseq
        %v4761 = vshrl.u32 %v4760, 7
        %v4762 = vsub.s32 2, %v4761
        %v4763 = vrot.slane %v4750, %v4762
        %v4764 = vlaneseq
        %v4765 = vshrl.u32 %v4764, 7
        %v4766 = vsub.s32 3, %v4765
        %v4767 = vrot.slane %v4750, %v4766
        %4768 = vrot.lane.b32.xlu0 %v4755, 8
        %v4769 = vpop.permute.xlu0 %4768
        %4770 = vrot.lane.b32.xlu0 %v4759, 8
        %v4771 = vpop.permute.xlu0 %4770
        %4772 = vrot.lane.b32.xlu0 %v4763, 8
        %v4773 = vpop.permute.xlu0 %4772
        %4774 = vrot.lane.b32.xlu0 %v4767, 8
        %v4775 = vpop.permute.xlu0 %4774
        %v4776 = vsel %vm515, %v4769, %v4771
        %v4777 = vsel %vm515, %v4771, %v4773
        %v4778 = vsel %vm515, %v4773, %v4775
        %v4784 = vmul.f32 %v4745, %v4769
        %v4785 = vmul.f32 %v4746, %v4776
        %v4786 = vmul.f32 %v4747, %v4777
        %v4787 = vmul.f32 %v4748, %v4778
        %v4788 = vmul.f32 %v4749, %v4775
        %4794 = vrot.lane.b32.xlu0 %v4784, 120
        %v4795 = vpop.permute.xlu0 %4794
        %4796 = vrot.lane.b32.xlu0 %v4785, 120
        %v4797 = vpop.permute.xlu0 %4796
        %4798 = vrot.lane.b32.xlu0 %v4786, 120
        %v4799 = vpop.permute.xlu0 %4798
        %4800 = vrot.lane.b32.xlu0 %v4787, 120
        %v4801 = vpop.permute.xlu0 %4800
        %4802 = vrot.lane.b32.xlu0 %v4788, 120
        %v4803 = vpop.permute.xlu0 %4802
        %v4804 = vsel %vm480, %v4795, %v4797
        %v4805 = vsel %vm480, %v4797, %v4799
        %v4806 = vsel %vm480, %v4799, %v4801
        %v4807 = vsel %vm480, %v4801, %v4803
        %4812 = vst [vmem:[#allocation5 + $0x320] sm:$0xff] %v4804
        %4813 = vst [vmem:[#allocation5 + $0x328] sm:$0xff] %v4805
        %4814 = vst [vmem:[#allocation5 + $0x330] sm:$0xff] %v4806
        %4815 = vst [vmem:[#allocation5 + $0x338] sm:$0xff] %v4807
        %v4816 = vld [vmem:[#allocation3 + $0x10] sm:$0xff]
        %v4817 = vld [vmem:[#allocation3 + $0x18] sm:$0xff]
        %v4818 = vld [vmem:[#allocation3 + $0x20] sm:$0xff]
        %v4819 = vld [vmem:[#allocation3 + $0x28] sm:$0xff]
        %v4820 = vld [vmem:[#allocation3 + $0x30] sm:$0xff]
        %v4821 = vld [vmem:[%s1024] sm:$0xf]
        %v4823 = vlaneseq
        %v4824 = vshrl.u32 %v4823, 7
        %v4825 = vsub.s32 0, %v4824
        %v4826 = vrot.slane %v4821, %v4825
        %v4827 = vlaneseq
        %v4828 = vshrl.u32 %v4827, 7
        %v4829 = vsub.s32 1, %v4828
        %v4830 = vrot.slane %v4821, %v4829
        %v4831 = vlaneseq
        %v4832 = vshrl.u32 %v4831, 7
        %v4833 = vsub.s32 2, %v4832
        %v4834 = vrot.slane %v4821, %v4833
        %v4835 = vlaneseq
        %v4836 = vshrl.u32 %v4835, 7
        %v4837 = vsub.s32 3, %v4836
        %v4838 = vrot.slane %v4821, %v4837
        %4839 = vrot.lane.b32.xlu0 %v4826, 9
        %v4840 = vpop.permute.xlu0 %4839
        %4841 = vrot.lane.b32.xlu0 %v4830, 9
        %v4842 = vpop.permute.xlu0 %4841
        %4843 = vrot.lane.b32.xlu0 %v4834, 9
        %v4844 = vpop.permute.xlu0 %4843
        %4845 = vrot.lane.b32.xlu0 %v4838, 9
        %v4846 = vpop.permute.xlu0 %4845
        %v4847 = vsel %vm425, %v4840, %v4842
        %v4848 = vsel %vm425, %v4842, %v4844
        %v4849 = vsel %vm425, %v4844, %v4846
        %v4855 = vmul.f32 %v4816, %v4840
        %v4856 = vmul.f32 %v4817, %v4847
        %v4857 = vmul.f32 %v4818, %v4848
        %v4858 = vmul.f32 %v4819, %v4849
        %v4859 = vmul.f32 %v4820, %v4846
        %4865 = vrot.lane.b32.xlu0 %v4855, 119
        %v4866 = vpop.permute.xlu0 %4865
        %4867 = vrot.lane.b32.xlu0 %v4856, 119
        %v4868 = vpop.permute.xlu0 %4867
        %4869 = vrot.lane.b32.xlu0 %v4857, 119
        %v4870 = vpop.permute.xlu0 %4869
        %4871 = vrot.lane.b32.xlu0 %v4858, 119
        %v4872 = vpop.permute.xlu0 %4871
        %4873 = vrot.lane.b32.xlu0 %v4859, 119
        %v4874 = vpop.permute.xlu0 %4873
        %v4875 = vsel %vm390, %v4866, %v4868
        %v4876 = vsel %vm390, %v4868, %v4870
        %v4877 = vsel %vm390, %v4870, %v4872
        %v4878 = vsel %vm390, %v4872, %v4874
        %4883 = vst [vmem:[#allocation5 + $0x340] sm:$0xff] %v4875
        %4884 = vst [vmem:[#allocation5 + $0x348] sm:$0xff] %v4876
        %4885 = vst [vmem:[#allocation5 + $0x350] sm:$0xff] %v4877
        %4886 = vst [vmem:[#allocation5 + $0x358] sm:$0xff] %v4878
        %v4887 = vld [vmem:[#allocation14] sm:$0xff]
        %v4888 = vld [vmem:[#allocation5] sm:$0xff]
        %v4889 = vld [vmem:[#allocation5 + $0x8] sm:$0xff]
        %v4890 = vld [vmem:[#allocation5 + $0x10] sm:$0xff]
        %v4891 = vld [vmem:[#allocation5 + $0x18] sm:$0xff]
        %v4892 = vld [vmem:[#allocation5 + $0x20] sm:$0xff]
        %v4893 = vld [vmem:[#allocation5 + $0x28] sm:$0xff]
        %v4894 = vld [vmem:[#allocation5 + $0x30] sm:$0xff]
        %v4895 = vld [vmem:[#allocation5 + $0x38] sm:$0xff]
        %v4896 = vld [vmem:[#allocation5 + $0x40] sm:$0xff]
        %v4897 = vld [vmem:[#allocation5 + $0x48] sm:$0xff]
        %v4898 = vld [vmem:[#allocation5 + $0x50] sm:$0xff]
        %v4899 = vld [vmem:[#allocation5 + $0x58] sm:$0xff]
        %v4900 = vld [vmem:[#allocation5 + $0x60] sm:$0xff]
        %v4901 = vld [vmem:[#allocation5 + $0x68] sm:$0xff]
        %v4902 = vld [vmem:[#allocation5 + $0x70] sm:$0xff]
        %v4903 = vld [vmem:[#allocation5 + $0x78] sm:$0xff]
        %v4904 = vld [vmem:[#allocation5 + $0x80] sm:$0xff]
        %v4905 = vld [vmem:[#allocation5 + $0x88] sm:$0xff]
        %v4906 = vld [vmem:[#allocation5 + $0x90] sm:$0xff]
        %v4907 = vld [vmem:[#allocation5 + $0x98] sm:$0xff]
        %v4908 = vld [vmem:[#allocation5 + $0xa0] sm:$0xff]
        %v4909 = vld [vmem:[#allocation5 + $0xa8] sm:$0xff]
        %v4910 = vld [vmem:[#allocation5 + $0xb0] sm:$0xff]
        %v4911 = vld [vmem:[#allocation5 + $0xb8] sm:$0xff]
        %v4912 = vld [vmem:[#allocation5 + $0xc0] sm:$0xff]
        %v4913 = vld [vmem:[#allocation5 + $0xc8] sm:$0xff]
        %v4914 = vld [vmem:[#allocation5 + $0xd0] sm:$0xff]
        %v4915 = vld [vmem:[#allocation5 + $0xd8] sm:$0xff]
        %v4916 = vld [vmem:[#allocation5 + $0xe0] sm:$0xff]
        %v4917 = vld [vmem:[#allocation5 + $0xe8] sm:$0xff]
        %v4918 = vld [vmem:[#allocation5 + $0xf0] sm:$0xff]
        %v4919 = vld [vmem:[#allocation5 + $0xf8] sm:$0xff]
        %v4920 = vld [vmem:[#allocation5 + $0x100] sm:$0xff]
        %v4921 = vld [vmem:[#allocation5 + $0x108] sm:$0xff]
        %v4922 = vld [vmem:[#allocation5 + $0x110] sm:$0xff]
        %v4923 = vld [vmem:[#allocation5 + $0x118] sm:$0xff]
        %v4924 = vld [vmem:[#allocation5 + $0x120] sm:$0xff]
        %v4925 = vld [vmem:[#allocation5 + $0x128] sm:$0xff]
        %v4926 = vld [vmem:[#allocation5 + $0x130] sm:$0xff]
        %v4927 = vld [vmem:[#allocation5 + $0x138] sm:$0xff]
        %v4928 = vld [vmem:[#allocation5 + $0x140] sm:$0xff]
        %v4929 = vld [vmem:[#allocation5 + $0x148] sm:$0xff]
        %v4930 = vld [vmem:[#allocation5 + $0x150] sm:$0xff]
        %v4931 = vld [vmem:[#allocation5 + $0x158] sm:$0xff]
        %v4932 = vld [vmem:[#allocation5 + $0x160] sm:$0xff]
        %v4933 = vld [vmem:[#allocation5 + $0x168] sm:$0xff]
        %v4934 = vld [vmem:[#allocation5 + $0x170] sm:$0xff]
        %v4935 = vld [vmem:[#allocation5 + $0x178] sm:$0xff]
        %v4936 = vld [vmem:[#allocation5 + $0x180] sm:$0xff]
        %v4937 = vld [vmem:[#allocation5 + $0x188] sm:$0xff]
        %v4938 = vld [vmem:[#allocation5 + $0x190] sm:$0xff]
        %v4939 = vld [vmem:[#allocation5 + $0x198] sm:$0xff]
        %v4940 = vld [vmem:[#allocation5 + $0x1a0] sm:$0xff]
        %v4941 = vld [vmem:[#allocation5 + $0x1a8] sm:$0xff]
        %v4942 = vld [vmem:[#allocation5 + $0x1b0] sm:$0xff]
        %v4943 = vld [vmem:[#allocation5 + $0x1b8] sm:$0xff]
        %v4944 = vld [vmem:[#allocation5 + $0x1c0] sm:$0xff]
        %v4945 = vld [vmem:[#allocation5 + $0x1c8] sm:$0xff]
        %v4946 = vld [vmem:[#allocation5 + $0x1d0] sm:$0xff]
        %v4947 = vld [vmem:[#allocation5 + $0x1d8] sm:$0xff]
        %v4948 = vld [vmem:[#allocation5 + $0x1e0] sm:$0xff]
        %v4949 = vld [vmem:[#allocation5 + $0x1e8] sm:$0xff]
        %v4950 = vld [vmem:[#allocation5 + $0x1f0] sm:$0xff]
        %v4951 = vld [vmem:[#allocation5 + $0x1f8] sm:$0xff]
        %v4952 = vld [vmem:[#allocation5 + $0x200] sm:$0xff]
        %v4953 = vld [vmem:[#allocation5 + $0x208] sm:$0xff]
        %v4954 = vld [vmem:[#allocation5 + $0x210] sm:$0xff]
        %v4955 = vld [vmem:[#allocation5 + $0x218] sm:$0xff]
        %v4956 = vld [vmem:[#allocation5 + $0x220] sm:$0xff]
        %v4957 = vld [vmem:[#allocation5 + $0x228] sm:$0xff]
        %v4958 = vld [vmem:[#allocation5 + $0x230] sm:$0xff]
        %v4959 = vld [vmem:[#allocation5 + $0x238] sm:$0xff]
        %v4960 = vld [vmem:[#allocation5 + $0x240] sm:$0xff]
        %v4961 = vld [vmem:[#allocation5 + $0x248] sm:$0xff]
        %v4962 = vld [vmem:[#allocation5 + $0x250] sm:$0xff]
        %v4963 = vld [vmem:[#allocation5 + $0x258] sm:$0xff]
        %v4964 = vld [vmem:[#allocation5 + $0x260] sm:$0xff]
        %v4965 = vld [vmem:[#allocation5 + $0x268] sm:$0xff]
        %v4966 = vld [vmem:[#allocation5 + $0x270] sm:$0xff]
        %v4967 = vld [vmem:[#allocation5 + $0x278] sm:$0xff]
        %v4968 = vld [vmem:[#allocation5 + $0x280] sm:$0xff]
        %v4969 = vld [vmem:[#allocation5 + $0x288] sm:$0xff]
        %v4970 = vld [vmem:[#allocation5 + $0x290] sm:$0xff]
        %v4971 = vld [vmem:[#allocation5 + $0x298] sm:$0xff]
        %v4972 = vld [vmem:[#allocation5 + $0x2a0] sm:$0xff]
        %v4973 = vld [vmem:[#allocation5 + $0x2a8] sm:$0xff]
        %v4974 = vld [vmem:[#allocation5 + $0x2b0] sm:$0xff]
        %v4975 = vld [vmem:[#allocation5 + $0x2b8] sm:$0xff]
        %v4976 = vld [vmem:[#allocation5 + $0x2c0] sm:$0xff]
        %v4977 = vld [vmem:[#allocation5 + $0x2c8] sm:$0xff]
        %v4978 = vld [vmem:[#allocation5 + $0x2d0] sm:$0xff]
        %v4979 = vld [vmem:[#allocation5 + $0x2d8] sm:$0xff]
        %v4980 = vld [vmem:[#allocation5 + $0x2e0] sm:$0xff]
        %v4981 = vld [vmem:[#allocation5 + $0x2e8] sm:$0xff]
        %v4982 = vld [vmem:[#allocation5 + $0x2f0] sm:$0xff]
        %v4983 = vld [vmem:[#allocation5 + $0x2f8] sm:$0xff]
        %v4984 = vld [vmem:[#allocation5 + $0x300] sm:$0xff]
        %v4985 = vld [vmem:[#allocation5 + $0x308] sm:$0xff]
        %v4986 = vld [vmem:[#allocation5 + $0x310] sm:$0xff]
        %v4987 = vld [vmem:[#allocation5 + $0x318] sm:$0xff]
        %v4988 = vld [vmem:[#allocation5 + $0x320] sm:$0xff]
        %v4989 = vld [vmem:[#allocation5 + $0x328] sm:$0xff]
        %v4990 = vld [vmem:[#allocation5 + $0x330] sm:$0xff]
        %v4991 = vld [vmem:[#allocation5 + $0x338] sm:$0xff]
        %v4992 = vld [vmem:[#allocation5 + $0x340] sm:$0xff]
        %v4993 = vld [vmem:[#allocation5 + $0x348] sm:$0xff]
        %v4994 = vld [vmem:[#allocation5 + $0x350] sm:$0xff]
        %v4995 = vld [vmem:[#allocation5 + $0x358] sm:$0xff]
        %v4996 = vpack.c.bf16 %v4892, %v4888
        %v4997 = vpack.c.bf16 %v4893, %v4889
        %v4998 = vpack.c.bf16 %v4894, %v4890
        %v4999 = vpack.c.bf16 %v4895, %v4891
        %v5000 = vpack.c.bf16 %v4900, %v4896
        %v5001 = vpack.c.bf16 %v4901, %v4897
        %v5002 = vpack.c.bf16 %v4902, %v4898
        %v5003 = vpack.c.bf16 %v4903, %v4899
        %v5004 = vpack.c.bf16 %v4908, %v4904
        %v5005 = vpack.c.bf16 %v4909, %v4905
        %v5006 = vpack.c.bf16 %v4910, %v4906
        %v5007 = vpack.c.bf16 %v4911, %v4907
        %v5008 = vpack.c.bf16 %v4916, %v4912
        %v5009 = vpack.c.bf16 %v4917, %v4913
        %v5010 = vpack.c.bf16 %v4918, %v4914
        %v5011 = vpack.c.bf16 %v4919, %v4915
        %v5012 = vpack.c.bf16 %v4924, %v4920
        %v5013 = vpack.c.bf16 %v4925, %v4921
        %v5014 = vpack.c.bf16 %v4926, %v4922
        %v5015 = vpack.c.bf16 %v4927, %v4923
        %v5016 = vpack.c.bf16 %v4932, %v4928
        %v5017 = vpack.c.bf16 %v4933, %v4929
        %v5018 = vpack.c.bf16 %v4934, %v4930
        %v5019 = vpack.c.bf16 %v4935, %v4931
        %v5020 = vpack.c.bf16 %v4940, %v4936
        %v5021 = vpack.c.bf16 %v4941, %v4937
        %v5022 = vpack.c.bf16 %v4942, %v4938
        %v5023 = vpack.c.bf16 %v4943, %v4939
        %v5024 = vpack.c.bf16 %v4948, %v4944
        %v5025 = vpack.c.bf16 %v4949, %v4945
        %v5026 = vpack.c.bf16 %v4950, %v4946
        %v5027 = vpack.c.bf16 %v4951, %v4947
        %v5028 = vpack.c.bf16 %v4956, %v4952
        %v5029 = vpack.c.bf16 %v4957, %v4953
        %v5030 = vpack.c.bf16 %v4958, %v4954
        %v5031 = vpack.c.bf16 %v4959, %v4955
        %v5032 = vpack.c.bf16 %v4964, %v4960
        %v5033 = vpack.c.bf16 %v4965, %v4961
        %v5034 = vpack.c.bf16 %v4966, %v4962
        %v5035 = vpack.c.bf16 %v4967, %v4963
        %v5036 = vpack.c.bf16 %v4972, %v4968
        %v5037 = vpack.c.bf16 %v4973, %v4969
        %v5038 = vpack.c.bf16 %v4974, %v4970
        %v5039 = vpack.c.bf16 %v4975, %v4971
        %v5040 = vpack.c.bf16 %v4980, %v4976
        %v5041 = vpack.c.bf16 %v4981, %v4977
        %v5042 = vpack.c.bf16 %v4982, %v4978
        %v5043 = vpack.c.bf16 %v4983, %v4979
        %v5044 = vpack.c.bf16 %v4988, %v4984
        %v5045 = vpack.c.bf16 %v4989, %v4985
        %v5046 = vpack.c.bf16 %v4990, %v4986
        %v5047 = vpack.c.bf16 %v4991, %v4987
        %v5048 = vpack.c.bf16 %v4992, %v4992
        %v5049 = vpack.c.bf16 %v4993, %v4993
        %v5050 = vpack.c.bf16 %v4994, %v4994
        %v5051 = vpack.c.bf16 %v4995, %v4995
        %v5053 = vunpack.c.l.b16 %v4887
        %v5054 = vunpack.c.h.b16 %v4887
        %v5055 = vpack.c.b16 %v5053, %v5053
        %v5056 = vpack.c.b16 %v5054, %v5054
        %v5059 = vsel %vm2848, %v5056, 0
        %v5062 = vsel %vm2852, %v5048, 0
        %v5065 = vsel %vm2852, %v5049, 0
        %v5068 = vsel %vm2852, %v5050, 0
        %v5071 = vsel %vm2852, %v5051, 0
        %5073 = vmatprep.subr.bf16.mxu0 %v5025
        %5074 = vmatpush1.bf16.msra.mxu0 %v5024
        %5075 = vmatprep.subr.bf16.mxu0 %v5021
        %5076 = vmatpush1.bf16.msra.mxu0 %v5020
        %5077 = vmatprep.subr.bf16.mxu0 %v5017
        %5078 = vmatpush1.bf16.msra.mxu0 %v5016
        %5079 = vmatprep.subr.bf16.mxu0 %v5013
        %5080 = vmatpush1.bf16.msra.mxu0 %v5012
        %5081 = vmatprep.subr.bf16.mxu0 %v5009
        %5082 = vmatpush1.bf16.msra.mxu0 %v5008
        %5083 = vmatprep.subr.bf16.mxu0 %v5005
        %5084 = vmatpush1.bf16.msra.mxu0 %v5004
        %5085 = vmatprep.subr.bf16.mxu0 %v5001
        %5086 = vmatpush1.bf16.msra.mxu0 %v5000
        %5087 = vmatprep.subr.bf16.mxu0 %v4997
        %5088 = vmatpush1.bf16.msra.mxu0 %v4996
        %5089 = vmatprep.subr.bf16.mxu0 0
        %5090 = vmatpush2.bf16.msra.mxu0 0
        %5091 = vmatprep.subr.bf16.mxu0 0
        %5092 = vmatpush2.bf16.msra.mxu0 0
        %5093 = vmatprep.subr.bf16.mxu0 %v5065
        %5094 = vmatpush2.bf16.msra.mxu0 %v5062
        %5095 = vmatprep.subr.bf16.mxu0 %v5045
        %5096 = vmatpush2.bf16.msra.mxu0 %v5044
        %5097 = vmatprep.subr.bf16.mxu0 %v5041
        %5098 = vmatpush2.bf16.msra.mxu0 %v5040
        %5099 = vmatprep.subr.bf16.mxu0 %v5037
        %5100 = vmatpush2.bf16.msra.mxu0 %v5036
        %5101 = vmatprep.subr.bf16.mxu0 %v5033
        %5102 = vmatpush2.bf16.msra.mxu0 %v5032
        %5103 = vmatprep.subr.bf16.mxu0 %v5029
        %5104 = vmatpush2.bf16.msra.mxu0 %v5028
        %5105 = vmatprep.mubr.bf16.mxu0 %v5059
        %5106 = vmatmul.mubr.bf16.gmra.mxu0 %v5055
        %v5107 = vpop.f32.mrf.mxu0
        %v5108 = vadd.f32 %v321, %v5107
        %v5109 = vpop.f32.mrf.mxu0
        %v5110 = vadd.f32 %v322, %v5109
        %v5111 = vpop.f32.mrf.mxu0
        %v5112 = vpop.f32.mrf.mxu0
        %5113 = vdwg.mxu0
        %5114 = vmatprep.subr.bf16.mxu0 %v5027
        %5115 = vmatpush1.bf16.msra.mxu0 %v5026
        %5116 = vmatprep.subr.bf16.mxu0 %v5023
        %5117 = vmatpush1.bf16.msra.mxu0 %v5022
        %5118 = vmatprep.subr.bf16.mxu0 %v5019
        %5119 = vmatpush1.bf16.msra.mxu0 %v5018
        %5120 = vmatprep.subr.bf16.mxu0 %v5015
        %5121 = vmatpush1.bf16.msra.mxu0 %v5014
        %5122 = vmatprep.subr.bf16.mxu0 %v5011
        %5123 = vmatpush1.bf16.msra.mxu0 %v5010
        %5124 = vmatprep.subr.bf16.mxu0 %v5007
        %5125 = vmatpush1.bf16.msra.mxu0 %v5006
        %5126 = vmatprep.subr.bf16.mxu0 %v5003
        %5127 = vmatpush1.bf16.msra.mxu0 %v5002
        %5128 = vmatprep.subr.bf16.mxu0 %v4999
        %5129 = vmatpush1.bf16.msra.mxu0 %v4998
        %5130 = vmatprep.subr.bf16.mxu0 0
        %5131 = vmatpush2.bf16.msra.mxu0 0
        %5132 = vmatprep.subr.bf16.mxu0 0
        %5133 = vmatpush2.bf16.msra.mxu0 0
        %5134 = vmatprep.subr.bf16.mxu0 %v5071
        %5135 = vmatpush2.bf16.msra.mxu0 %v5068
        %5136 = vmatprep.subr.bf16.mxu0 %v5047
        %5137 = vmatpush2.bf16.msra.mxu0 %v5046
        %5138 = vmatprep.subr.bf16.mxu0 %v5043
        %5139 = vmatpush2.bf16.msra.mxu0 %v5042
        %5140 = vmatprep.subr.bf16.mxu0 %v5039
        %5141 = vmatpush2.bf16.msra.mxu0 %v5038
        %5142 = vmatprep.subr.bf16.mxu0 %v5035
        %5143 = vmatpush2.bf16.msra.mxu0 %v5034
        %5144 = vmatprep.subr.bf16.mxu0 %v5031
        %5145 = vmatpush2.bf16.msra.mxu0 %v5030
        %5146 = vmatprep.mubr.bf16.mxu0 %v5059
        %5147 = vmatmul.mubr.bf16.gmra.mxu0 %v5055
        %v5148 = vpop.f32.mrf.mxu0
        %v5149 = vadd.f32 %v323, %v5148
        %v5150 = vpop.f32.mrf.mxu0
        %v5151 = vadd.f32 %v324, %v5150
        %v5152 = vpop.f32.mrf.mxu0
        %v5153 = vpop.f32.mrf.mxu0
        %5154 = vdwg.mxu0
        %5155 = vst [vmem:[%s318] sm:$0xff] %v5108
        %5156 = vst [vmem:[%s318 + $0x8] sm:$0xff] %v5110
        %5157 = vst [vmem:[%s318 + $0x10] sm:$0xff] %v5149
        %5158 = vst [vmem:[%s318 + $0x18] sm:$0xff] %v5151
        %s5159 = sand.u32 %s163, 1
        %s5160 = scalar_lea.sflag [#allocation8], %s5159
        %s5161 = sand.u32 %s163, 1
        %s5162 = smul.addr %s5161, 32
        %s5163 = scalar_lea.vmem [#allocation15], %s5162
        // Predicated region
        $region61: #{tpu_custom_call.1} parent=39 // pred_check
          %p5164 = pneg %p173
        $region62: #{tpu_custom_call.1} parent=39 // pred_check_branch
          %5166 = sbr.rel (%p5164) target = $region64
        $region63: #{tpu_custom_call.1} parent=39 // pred_region
          %s5168 = ssub.s32 512, 512
          %5169 = vsyncadd %s5160, %s5168
          %s5170 = smul.addr %s29, 4
          %s5171 = smul.addr %s28, 4
          %s5172 = sadd.s32 %s5170, %s5171
          %s5173 = smul.addr %s5172, 128
          %s5174 = scalar_lea.hbm %s5, %s5173
          %s5176 = sshll.u32 %s5163, 4
          %s5177 = int_to_ptr.vmem [resolvable:$true] %s5176
          %5179 = dma.vmem_to_hbm [thread:$0]  %s5177, 512, %s5174, %s5160
        $region64: #{tpu_custom_call.1} parent=39 // pred_fallthru
          _
      $region40: #{tpu_custom_call.1} parent=5 // pred_fallthru
        _
      %p5180 = scmp.le.s32.totalorder 2, %s19
      // Predicated region
      $region65: #{tpu_custom_call.1} parent=5 // pred_check
        %p5181 = pneg %p5180
      $region66: #{tpu_custom_call.1} parent=5 // pred_check_branch
        %5183 = sbr.rel (%p5181) target = $region68
      $region67: #{tpu_custom_call.1} parent=5 // pred_region
        %s5184 = ssub.s32 %s19, 2
        // Predicated region
        $region69: #{tpu_custom_call.1} parent=67 // pred_check
          %p5185 = pneg %p179
        $region70: #{tpu_custom_call.1} parent=67 // pred_check_branch
          %5187 = sbr.rel (%p5185) target = $region72
        $region71: #{tpu_custom_call.1} parent=67 // pred_region
          %s5188 = sand.u32 %s164, 1
          %s5189 = scalar_lea.sflag [#allocation8], %s5188
          %s5190 = sand.u32 %s164, 1
          %s5191 = smul.addr %s5190, 32
          %s5192 = scalar_lea.vmem [#allocation15], %s5191
          %5193 = dma.done %s5189, 512
        $region72: #{tpu_custom_call.1} parent=67 // pred_fallthru
          _
      $region68: #{tpu_custom_call.1} parent=5 // pred_fallthru
        _
    $region6: #{tpu_custom_call.1} parent=1 // loop_footer
      %s23 = sadd.s32 1, %s19
    $region7: #{tpu_custom_call.1} parent=1 // loop_footer_branch
      %18 = sbr.rel target = $region3
    $region8: #{tpu_custom_call.1} parent=1 // loop_exit
      _
    %5194 = vsyncpa [#allocation7], 1
    %s5195 = scalar_lea.sflag [#allocation7], 1
    %5196 = vsyncpa %s5195, 1
    %5197 = vsyncpa [#allocation10], 1
    %5198 = vsyncpa [#allocation13], 1
    %5199 = vsyncpa [#allocation8], 1
    %s5200 = scalar_lea.sflag [#allocation8], 1
    %5201 = vsyncpa %s5200, 1

</llo_original>
